<compile_context>
chip_gen: v6e
topology: v6e:2x2x1
jax: 0.10.0
libtpu: 0.0.40
codegen_flags: <defaults>
</compile_context>

<pallas_src>
import functools

import jax
import jax.numpy as jnp
from jax.experimental import pallas as pl
from jax.experimental.pallas import tpu as pltpu

# ---- small, module-consistent configuration -------------------------------
BATCH = 2
IN_CH = 3
IMG = 32
PATCH = 16
HIDDEN = 128            # in_planes stand-in (768 for vit_base); lane-dense
HEADS = 2
HEAD_DIM = HIDDEN // HEADS
MLP_HIDDEN = 4 * HIDDEN
DEPTH = 2
NUM_CLASSES = 8
GRID_HW = IMG // PATCH
NUM_PATCHES = GRID_HW * GRID_HW
SEQ = NUM_PATCHES + 1   # 5 (cls + patches)
SEQ_PAD = 8             # padded token count (sublane multiple); extra keys masked
PATCH_IN = IN_CH * PATCH * PATCH
LN_EPS = 1e-6           # TODO(synk): timm ViT eps; nn.LayerNorm default is 1e-5
BN_EPS = 1e-5
CLS_PAD = 128           # lane-padded classifier output width (sliced in wrapper)
CDT = jnp.bfloat16      # MXU operand dtype (f32 accumulation)


# ---------------------------------------------------------------------------
# helpers
# ---------------------------------------------------------------------------
def _ln(x, g, b, eps=LN_EPS):
    mu = jnp.mean(x, axis=-1, keepdims=True)
    var = jnp.mean((x - mu) ** 2, axis=-1, keepdims=True)
    return (x - mu) * jax.lax.rsqrt(var + eps) * g + b


# ---------------------------------------------------------------------------
# single fused kernel: grid = (DEPTH,)
#   step 0        : patch-embed matmul + token assembly into VMEM scratch
#   every step l  : transformer block l (weights streamed via index_map)
#   last step     : final LayerNorm on CLS rows + BN bottlenecks + classifiers
# ---------------------------------------------------------------------------
def _sevit_kernel(xtok_ref, pw_ref, add_ref,
                  ln1_g, ln1_b, qkv_w, qkv_b, proj_w, proj_b,
                  ln2_g, ln2_b, fc1_w, fc1_b, fc2_w, fc2_b,
                  lnf_g, lnf_b, hw_ref, hb_ref,
                  scores_ref, gfeat_ref,
                  tok_ref, *, batch):
    l = pl.program_id(0)
    bs = batch * SEQ_PAD

    # ---- layer 0: fused patch-embed + token assembly (cls + pos + bias) ----
    @pl.when(l == 0)
    def _():
        pe = jnp.dot(xtok_ref[...].astype(CDT), pw_ref[...],
                     preferred_element_type=jnp.float32)
        tok_ref[...] = pe + add_ref[...]

    x = tok_ref[...]                                          # (BS, D) f32

    # ---- attention sub-block (pre-LN) --------------------------------------
    h = _ln(x, ln1_g[0], ln1_b[0]).astype(CDT)
    qkv = jnp.dot(h, qkv_w[0], preferred_element_type=jnp.float32) + qkv_b[0]
    scale = HEAD_DIM ** -0.5
    q = (qkv[:, 0:HIDDEN] * scale).reshape(batch, SEQ_PAD, HIDDEN)
    k = qkv[:, HIDDEN:2 * HIDDEN].reshape(batch, SEQ_PAD, HIDDEN)
    v = qkv[:, 2 * HIDDEN:3 * HIDDEN].reshape(batch, SEQ_PAD, HIDDEN)

    # mask padded key tokens (SEQ..SEQ_PAD-1)
    kidx = jax.lax.broadcasted_iota(jnp.int32, (1, 1, SEQ_PAD), 2)
    kmask = jnp.where(kidx < SEQ, 0.0, -1e30).astype(jnp.float32)

    heads = []
    for hh in range(HEADS):                                   # static, tiny
        lo = hh * HEAD_DIM
        qh = q[..., lo:lo + HEAD_DIM].astype(CDT)
        kh = k[..., lo:lo + HEAD_DIM].astype(CDT)
        vh = v[..., lo:lo + HEAD_DIM].astype(CDT)
        s = jnp.einsum('bqd,bkd->bqk', qh, kh,
                       preferred_element_type=jnp.float32) + kmask
        s = s - jnp.max(s, axis=-1, keepdims=True)
        p = jnp.exp(s)
        p = p * pl.reciprocal(jnp.sum(p, axis=-1, keepdims=True), approx=True)
        heads.append(jnp.einsum('bqk,bkd->bqd', p.astype(CDT), vh,
                                preferred_element_type=jnp.float32))
    o = jnp.concatenate(heads, axis=-1).reshape(bs, HIDDEN).astype(CDT)
    x = x + jnp.dot(o, proj_w[0], preferred_element_type=jnp.float32) + proj_b[0]

    # ---- MLP sub-block ------------------------------------------------------
    h = _ln(x, ln2_g[0], ln2_b[0]).astype(CDT)
    h1 = jnp.dot(h, fc1_w[0], preferred_element_type=jnp.float32) + fc1_b[0]
    # TODO(synk): nn.GELU default is exact erf GELU; tanh approximation used here.
    h1 = jax.nn.gelu(h1, approximate=True).astype(CDT)
    x = x + jnp.dot(h1, fc2_w[0], preferred_element_type=jnp.float32) + fc2_b[0]

    tok_ref[...] = x                                          # layer-to-layer carry

    # ---- final LN (CLS only) + BN bottlenecks + classifiers at last step ---
    @pl.when(l == pl.num_programs(0) - 1)
    def _():
        cls_rows = x.reshape(batch, SEQ_PAD, HIDDEN)[:, 0:1, :].reshape(batch, HIDDEN)
        g = _ln(cls_rows, lnf_g[...], lnf_b[...])             # (B, D) f32
        gfeat_ref[...] = g.astype(gfeat_ref.dtype)
        mu = jnp.mean(g, axis=0, keepdims=True)
        var = jnp.mean((g - mu) ** 2, axis=0, keepdims=True)  # biased var (train mode)
        xn = (g - mu) * jax.lax.rsqrt(var + BN_EPS)
        scores_ref[...] = (jnp.dot(xn.astype(CDT), hw_ref[...],
                                   preferred_element_type=jnp.float32)
                           + hb_ref[...]).astype(scores_ref.dtype)


# ---------------------------------------------------------------------------
# forward pass (mirrors build_SEViT.forward)
# ---------------------------------------------------------------------------
def sevit_forward(x, params, training=True):
    p = params['base']
    hp = params['head']
    b, c, hh, ww = x.shape
    gh, gw = hh // PATCH, ww // PATCH

    # patchify: conv(P, stride=P) == matmul over flattened (C, P, P) patches;
    # rows for cls token / pad tokens are zeros so one matmul covers all tokens.
    xp = x.reshape(b, c, gh, PATCH, gw, PATCH).transpose(0, 2, 4, 1, 3, 5)
    xp = xp.reshape(b, gh * gw, c * PATCH * PATCH)
    x_tok = jnp.zeros((b, SEQ_PAD, PATCH_IN), jnp.float32)
    x_tok = x_tok.at[:, 1:SEQ, :].set(xp)
    x_tok = x_tok.reshape(b * SEQ_PAD, PATCH_IN)

    # per-token additive term: cls row = cls_token + pos[0];
    # patch rows = pos + conv bias; pad rows = 0.
    add = jnp.zeros((SEQ_PAD, HIDDEN), jnp.float32)
    add = add.at[0].set(p['cls_token'][0, 0] + p['pos_embed'][0, 0])
    add = add.at[1:SEQ].set(p['pos_embed'][0, 1:SEQ] + p['patch_b'][None, :])
    add_tok = jnp.broadcast_to(add[None], (b, SEQ_PAD, HIDDEN)
                               ).reshape(b * SEQ_PAD, HIDDEN)

    # Fold BN affine into the bias-free classifier weights; pad to 128 lanes.
    w1 = hp['bn1_g'][:, None] * hp['cls_w1']
    w2 = hp['bn2_g'][:, None] * hp['cls_w2']
    head_w = jnp.zeros((HIDDEN, CLS_PAD), jnp.float32)
    head_w = head_w.at[:, :NUM_CLASSES].set(w1)
    head_w = head_w.at[:, NUM_CLASSES:2 * NUM_CLASSES].set(w2)
    head_b = jnp.zeros((1, CLS_PAD), jnp.float32)
    head_b = head_b.at[0, :NUM_CLASSES].set(hp['bn1_b'] @ hp['cls_w1'])
    head_b = head_b.at[0, NUM_CLASSES:2 * NUM_CLASSES].set(hp['bn2_b'] @ hp['cls_w2'])

    def wspec(arr):
        return pl.BlockSpec((1,) + arr.shape[1:], lambda li: (li, 0, 0))

    def cspec(arr):
        return pl.BlockSpec(arr.shape, lambda li: (0,) * arr.ndim)

    scores, gfeat = pl.pallas_call(
        functools.partial(_sevit_kernel, batch=b),
        out_shape=(jax.ShapeDtypeStruct((b, CLS_PAD), jnp.float32),
                   jax.ShapeDtypeStruct((b, HIDDEN), jnp.float32)),
        grid=(DEPTH,),
        in_specs=[
            cspec(x_tok), cspec(p['patch_w']), cspec(add_tok),
            wspec(p['ln1_g']), wspec(p['ln1_b']),
            wspec(p['qkv_w']), wspec(p['qkv_b']),
            wspec(p['proj_w']), wspec(p['proj_b']),
            wspec(p['ln2_g']), wspec(p['ln2_b']),
            wspec(p['fc1_w']), wspec(p['fc1_b']),
            wspec(p['fc2_w']), wspec(p['fc2_b']),
            cspec(p['ln_g']), cspec(p['ln_b']),
            pl.BlockSpec((HIDDEN, CLS_PAD), lambda li: (0, 0)),
            pl.BlockSpec((1, CLS_PAD), lambda li: (0, 0)),
        ],
        out_specs=(pl.BlockSpec((b, CLS_PAD), lambda li: (0, 0)),
                   pl.BlockSpec((b, HIDDEN), lambda li: (0, 0))),
        scratch_shapes=[pltpu.VMEM((b * SEQ_PAD, HIDDEN), jnp.float32)],
        compiler_params=pltpu.CompilerParams(
            dimension_semantics=("arbitrary",)),
    )(x_tok, p['patch_w'], add_tok,
      p['ln1_g'], p['ln1_b'], p['qkv_w'], p['qkv_b'],
      p['proj_w'], p['proj_b'],
      p['ln2_g'], p['ln2_b'], p['fc1_w'], p['fc1_b'],
      p['fc2_w'], p['fc2_b'],
      p['ln_g'], p['ln_b'], head_w.astype(CDT), head_b)

    if training:
        return [scores[:, :NUM_CLASSES],
                scores[:, NUM_CLASSES:2 * NUM_CLASSES]], gfeat
    # eval, neck_feat == 'before' -> global_feat
    # TODO(synk): BN running stats not tracked; neck_feat=='after' path omitted.
    return gfeat


# ---------------------------------------------------------------------------
# deterministic parameter init (mirrors __init__ shapes / init schemes);
# per-layer weights stacked along a leading DEPTH axis for BlockSpec delivery.
# ---------------------------------------------------------------------------
def init_params(key):
    keys = iter(jax.random.split(key, 10))
    nk = lambda: next(keys)

    base = {
        'patch_w': (jax.random.normal(nk(), (PATCH_IN, HIDDEN), jnp.float32)
                    * (2.0 / PATCH_IN) ** 0.5).astype(CDT),
        'patch_b': jnp.zeros((HIDDEN,), jnp.float32),
        'cls_token': jax.random.normal(nk(), (1, 1, HIDDEN), jnp.float32) * 0.02,
        'pos_embed': jax.random.normal(nk(), (1, SEQ, HIDDEN), jnp.float32) * 0.02,
        'ln_g': jnp.ones((1, HIDDEN), jnp.float32),
        'ln_b': jnp.zeros((1, HIDDEN), jnp.float32),
        'ln1_g': jnp.ones((DEPTH, 1, HIDDEN), jnp.float32),
        'ln1_b': jnp.zeros((DEPTH, 1, HIDDEN), jnp.float32),
        'qkv_w': (jax.random.normal(nk(), (DEPTH, HIDDEN, 3 * HIDDEN),
                                    jnp.float32) * 0.02).astype(CDT),
        'qkv_b': jnp.zeros((DEPTH, 1, 3 * HIDDEN), jnp.float32),
        'proj_w': (jax.random.normal(nk(), (DEPTH, HIDDEN, HIDDEN),
                                     jnp.float32) * 0.02).astype(CDT),
        'proj_b': jnp.zeros((DEPTH, 1, HIDDEN), jnp.float32),
        'ln2_g': jnp.ones((DEPTH, 1, HIDDEN), jnp.float32),
        'ln2_b': jnp.zeros((DEPTH, 1, HIDDEN), jnp.float32),
        'fc1_w': (jax.random.normal(nk(), (DEPTH, HIDDEN, MLP_HIDDEN),
                                    jnp.float32) * 0.02).astype(CDT),
        'fc1_b': jnp.zeros((DEPTH, 1, MLP_HIDDEN), jnp.float32),
        'fc2_w': (jax.random.normal(nk(), (DEPTH, MLP_HIDDEN, HIDDEN),
                                    jnp.float32) * 0.02).astype(CDT),
        'fc2_b': jnp.zeros((DEPTH, 1, HIDDEN), jnp.float32),
    }
    head = {
        # BatchNorm1d bottlenecks: weight=1, bias=0 (weights_init_kaiming, bias frozen)
        'bn1_g': jnp.ones((HIDDEN,), jnp.float32),
        'bn1_b': jnp.zeros((HIDDEN,), jnp.float32),
        'bn2_g': jnp.ones((HIDDEN,), jnp.float32),
        'bn2_b': jnp.zeros((HIDDEN,), jnp.float32),
        # Linear(in_planes, num_classes, bias=False), std=0.001; stored pre-transposed
        'cls_w1': jax.random.normal(nk(), (HIDDEN, NUM_CLASSES), jnp.float32) * 0.001,
        'cls_w2': jax.random.normal(nk(), (HIDDEN, NUM_CLASSES), jnp.float32) * 0.001,
    }
    return {'base': base, 'head': head}


if __name__ == "__main__":
    root = jax.random.PRNGKey(0)
    kx, kp = jax.random.split(root)
    x = jax.random.normal(kx, (BATCH, IN_CH, IMG, IMG), dtype=jnp.float32)
    params = init_params(kp)

    fwd = jax.jit(lambda xx, pp: sevit_forward(xx, pp, training=True))
    cls_scores, global_feat = fwd(x, params)
    jax.block_until_ready(cls_scores)
    jax.block_until_ready(global_feat)

    assert cls_scores[0].shape == (BATCH, NUM_CLASSES)
    assert cls_scores[1].shape == (BATCH, NUM_CLASSES)
    assert global_feat.shape == (BATCH, HIDDEN)
    assert bool(jnp.all(jnp.isfinite(cls_scores[0])))
    assert bool(jnp.all(jnp.isfinite(cls_scores[1])))
    assert bool(jnp.all(jnp.isfinite(global_feat)))
    print("KERNEL_OK")
</pallas_src>

<mosaic_0001>
module attributes {stable_mosaic.version = 11 : i64} {
  func.func @_sevit_kernel(%arg0: i32, %arg1: memref<16x768xf32, #tpu.memory_space<vmem>>, %arg2: memref<768x128xbf16, #tpu.memory_space<vmem>>, %arg3: memref<16x128xf32, #tpu.memory_space<vmem>>, %arg4: memref<1x1x128xf32, #tpu.memory_space<vmem>>, %arg5: memref<1x1x128xf32, #tpu.memory_space<vmem>>, %arg6: memref<1x128x384xbf16, #tpu.memory_space<vmem>>, %arg7: memref<1x1x384xf32, #tpu.memory_space<vmem>>, %arg8: memref<1x128x128xbf16, #tpu.memory_space<vmem>>, %arg9: memref<1x1x128xf32, #tpu.memory_space<vmem>>, %arg10: memref<1x1x128xf32, #tpu.memory_space<vmem>>, %arg11: memref<1x1x128xf32, #tpu.memory_space<vmem>>, %arg12: memref<1x128x512xbf16, #tpu.memory_space<vmem>>, %arg13: memref<1x1x512xf32, #tpu.memory_space<vmem>>, %arg14: memref<1x512x128xbf16, #tpu.memory_space<vmem>>, %arg15: memref<1x1x128xf32, #tpu.memory_space<vmem>>, %arg16: memref<1x128xf32, #tpu.memory_space<vmem>>, %arg17: memref<1x128xf32, #tpu.memory_space<vmem>>, %arg18: memref<128x128xbf16, #tpu.memory_space<vmem>>, %arg19: memref<1x128xf32, #tpu.memory_space<vmem>>, %arg20: memref<2x128xf32, #tpu.memory_space<vmem>>, %arg21: memref<2x128xf32, #tpu.memory_space<vmem>>, %arg22: memref<16x128xf32, #tpu.memory_space<vmem>>) attributes {dimension_semantics = [#tpu.dimension_semantics<arbitrary>], iteration_bounds = array<i64: 2>, scalar_prefetch = 0 : i64, scratch_operands = 1 : i64, tpu.core_type = #tpu.core_type<tc>, window_params = [{pipeline_mode = #tpu.pipeline_mode<synchronous>, transform_indices = @transform_0, window_bounds = array<i64: 16, 768>}, {pipeline_mode = #tpu.pipeline_mode<synchronous>, transform_indices = @transform_1, window_bounds = array<i64: 768, 128>}, {pipeline_mode = #tpu.pipeline_mode<synchronous>, transform_indices = @transform_2, window_bounds = array<i64: 16, 128>}, {transform_indices = @transform_3, window_bounds = array<i64: 1, 1, 128>}, {transform_indices = @transform_4, window_bounds = array<i64: 1, 1, 128>}, {transform_indices = @transform_5, window_bounds = array<i64: 1, 128, 384>}, {transform_indices = @transform_6, window_bounds = array<i64: 1, 1, 384>}, {transform_indices = @transform_7, window_bounds = array<i64: 1, 128, 128>}, {transform_indices = @transform_8, window_bounds = array<i64: 1, 1, 128>}, {transform_indices = @transform_9, window_bounds = array<i64: 1, 1, 128>}, {transform_indices = @transform_10, window_bounds = array<i64: 1, 1, 128>}, {transform_indices = @transform_11, window_bounds = array<i64: 1, 128, 512>}, {transform_indices = @transform_12, window_bounds = array<i64: 1, 1, 512>}, {transform_indices = @transform_13, window_bounds = array<i64: 1, 512, 128>}, {transform_indices = @transform_14, window_bounds = array<i64: 1, 1, 128>}, {pipeline_mode = #tpu.pipeline_mode<synchronous>, transform_indices = @transform_15, window_bounds = array<i64: 1, 128>}, {pipeline_mode = #tpu.pipeline_mode<synchronous>, transform_indices = @transform_16, window_bounds = array<i64: 1, 128>}, {pipeline_mode = #tpu.pipeline_mode<synchronous>, transform_indices = @transform_17, window_bounds = array<i64: 128, 128>}, {pipeline_mode = #tpu.pipeline_mode<synchronous>, transform_indices = @transform_18, window_bounds = array<i64: 1, 128>}, {pipeline_mode = #tpu.pipeline_mode<synchronous>, transform_indices = @transform_19, window_bounds = array<i64: 2, 128>}, {pipeline_mode = #tpu.pipeline_mode<synchronous>, transform_indices = @transform_20, window_bounds = array<i64: 2, 128>}]} {
    %c0_i32 = arith.constant 0 : i32
    %0 = arith.cmpi eq, %arg0, %c0_i32 : i32
    %1 = arith.extui %0 : i1 to i32
    %c0_i32_0 = arith.constant 0 : i32
    %2 = arith.cmpi ne, %1, %c0_i32_0 : i32
    scf.if %2 {
      %c0_69 = arith.constant 0 : index
      %c0_70 = arith.constant 0 : index
      %165 = vector.load %arg1[%c0_69, %c0_70] : memref<16x768xf32, #tpu.memory_space<vmem>>, vector<16x768xf32>
      %166 = arith.truncf %165 : vector<16x768xf32> to vector<16x768xbf16>
      %c0_71 = arith.constant 0 : index
      %c0_72 = arith.constant 0 : index
      %167 = vector.load %arg2[%c0_71, %c0_72] : memref<768x128xbf16, #tpu.memory_space<vmem>>, vector<768x128xbf16>
      %cst_73 = arith.constant dense<0.000000e+00> : vector<16x128xf32>
      %168 = tpu.matmul %166, %167, %cst_73 {dimension_numbers = #tpu.dot_dimension_numbers<[1], [0], [0], [1], [0, 0, 1, 1], [], []>} : vector<16x768xbf16>, vector<768x128xbf16>, vector<16x128xf32> -> vector<16x128xf32>
      %c0_74 = arith.constant 0 : index
      %c0_75 = arith.constant 0 : index
      %169 = vector.load %arg3[%c0_74, %c0_75] : memref<16x128xf32, #tpu.memory_space<vmem>>, vector<16x128xf32>
      %170 = arith.addf %168, %169 : vector<16x128xf32>
      %c0_76 = arith.constant 0 : index
      %c0_77 = arith.constant 0 : index
      %171 = vector.load %arg22[%c0_76, %c0_77] : memref<16x128xf32, #tpu.memory_space<vmem>>, vector<16x128xf32>
      tpu.vector_store %arg22[%c0_76, %c0_77], %170 {strides = array<i32>} : memref<16x128xf32, #tpu.memory_space<vmem>>, vector<16x128xf32>,
    } else {
    }
    %c0 = arith.constant 0 : index
    %c0_1 = arith.constant 0 : index
    %3 = vector.load %arg22[%c0, %c0_1] : memref<16x128xf32, #tpu.memory_space<vmem>>, vector<16x128xf32>
    %c0_2 = arith.constant 0 : index
    %c0_3 = arith.constant 0 : index
    %c0_4 = arith.constant 0 : index
    %4 = vector.load %arg4[%c0_2, %c0_3, %c0_4] : memref<1x1x128xf32, #tpu.memory_space<vmem>>, vector<1x1x128xf32>
    %5 = vector.shape_cast %4 : vector<1x1x128xf32> to vector<1x128xf32>
    %c0_5 = arith.constant 0 : index
    %c0_6 = arith.constant 0 : index
    %c0_7 = arith.constant 0 : index
    %6 = vector.load %arg5[%c0_5, %c0_6, %c0_7] : memref<1x1x128xf32, #tpu.memory_space<vmem>>, vector<1x1x128xf32>
    %7 = vector.shape_cast %6 : vector<1x1x128xf32> to vector<1x128xf32>
    %cst = arith.constant dense<0.000000e+00> : vector<16xf32>
    %8 = vector.multi_reduction <add>, %3, %cst [1] : vector<16x128xf32> to vector<16xf32>
    %9 = vector.shape_cast %8 : vector<16xf32> to vector<16x1xf32>
    %cst_8 = arith.constant 1.280000e+02 : f32
    %10 = vector.broadcast %cst_8 : f32 to vector<16x1xf32>
    %11 = arith.divf %9, %10 : vector<16x1xf32>
    %12 = vector.broadcast %11 : vector<16x1xf32> to vector<16x128xf32>
    %13 = arith.subf %3, %12 : vector<16x128xf32>
    %14 = arith.mulf %13, %13 : vector<16x128xf32>
    %cst_9 = arith.constant dense<0.000000e+00> : vector<16xf32>
    %15 = vector.multi_reduction <add>, %14, %cst_9 [1] : vector<16x128xf32> to vector<16xf32>
    %16 = vector.shape_cast %15 : vector<16xf32> to vector<16x1xf32>
    %cst_10 = arith.constant 1.280000e+02 : f32
    %17 = vector.broadcast %cst_10 : f32 to vector<16x1xf32>
    %18 = arith.divf %16, %17 : vector<16x1xf32>
    %19 = vector.broadcast %11 : vector<16x1xf32> to vector<16x128xf32>
    %20 = arith.subf %3, %19 : vector<16x128xf32>
    %cst_11 = arith.constant 9.99999997E-7 : f32
    %21 = vector.broadcast %cst_11 : f32 to vector<16x1xf32>
    %22 = arith.addf %18, %21 : vector<16x1xf32>
    %23 = math.rsqrt %22 : vector<16x1xf32>
    %24 = vector.broadcast %23 : vector<16x1xf32> to vector<16x128xf32>
    %25 = arith.mulf %20, %24 : vector<16x128xf32>
    %26 = vector.broadcast %5 : vector<1x128xf32> to vector<16x128xf32>
    %27 = arith.mulf %25, %26 : vector<16x128xf32>
    %28 = vector.broadcast %7 : vector<1x128xf32> to vector<16x128xf32>
    %29 = arith.addf %27, %28 : vector<16x128xf32>
    %30 = arith.truncf %29 : vector<16x128xf32> to vector<16x128xbf16>
    %c0_12 = arith.constant 0 : index
    %c0_13 = arith.constant 0 : index
    %c0_14 = arith.constant 0 : index
    %31 = vector.load %arg6[%c0_12, %c0_13, %c0_14] : memref<1x128x384xbf16, #tpu.memory_space<vmem>>, vector<1x128x384xbf16>
    %32 = vector.shape_cast %31 : vector<1x128x384xbf16> to vector<128x384xbf16>
    %cst_15 = arith.constant dense<0.000000e+00> : vector<16x384xf32>
    %33 = tpu.matmul %30, %32, %cst_15 {dimension_numbers = #tpu.dot_dimension_numbers<[1], [0], [0], [1], [0, 0, 1, 1], [], []>} : vector<16x128xbf16>, vector<128x384xbf16>, vector<16x384xf32> -> vector<16x384xf32>
    %c0_16 = arith.constant 0 : index
    %c0_17 = arith.constant 0 : index
    %c0_18 = arith.constant 0 : index
    %34 = vector.load %arg7[%c0_16, %c0_17, %c0_18] : memref<1x1x384xf32, #tpu.memory_space<vmem>>, vector<1x1x384xf32>
    %35 = vector.shape_cast %34 : vector<1x1x384xf32> to vector<1x384xf32>
    %36 = vector.broadcast %35 : vector<1x384xf32> to vector<16x384xf32>
    %37 = arith.addf %33, %36 : vector<16x384xf32>
    %38 = vector.extract_strided_slice %37 {offsets = [0, 0], sizes = [16, 128], strides = [1, 1]} : vector<16x384xf32> to vector<16x128xf32>
    %cst_19 = arith.constant 1.250000e-01 : f32
    %39 = vector.broadcast %cst_19 : f32 to vector<16x128xf32>
    %40 = arith.mulf %38, %39 : vector<16x128xf32>
    %41 = vector.shape_cast %40 : vector<16x128xf32> to vector<2x8x128xf32>
    %42 = vector.extract_strided_slice %37 {offsets = [0, 128], sizes = [16, 128], strides = [1, 1]} : vector<16x384xf32> to vector<16x128xf32>
    %43 = vector.shape_cast %42 : vector<16x128xf32> to vector<2x8x128xf32>
    %44 = vector.extract_strided_slice %37 {offsets = [0, 256], sizes = [16, 128], strides = [1, 1]} : vector<16x384xf32> to vector<16x128xf32>
    %45 = vector.shape_cast %44 : vector<16x128xf32> to vector<2x8x128xf32>
    %46 = tpu.iota {dimensions = array<i32: 2>} : vector<1x1x8xi32>
    %c5_i32 = arith.constant 5 : i32
    %47 = vector.broadcast %c5_i32 : i32 to vector<1x1x8xi32>
    %48 = arith.cmpi slt, %46, %47 : vector<1x1x8xi32>
    %cst_20 = arith.constant 0.000000e+00 : f32
    %cst_21 = arith.constant -1.000000e+30 : f32
    %49 = vector.broadcast %cst_20 : f32 to vector<1x1x8xf32>
    %50 = vector.broadcast %cst_21 : f32 to vector<1x1x8xf32>
    %51 = arith.select %48, %49, %50 : vector<1x1x8xi1>, vector<1x1x8xf32>
    %52 = vector.extract_strided_slice %41 {offsets = [0, 0, 0], sizes = [2, 8, 64], strides = [1, 1, 1]} : vector<2x8x128xf32> to vector<2x8x64xf32>
    %53 = arith.truncf %52 : vector<2x8x64xf32> to vector<2x8x64xbf16>
    %54 = vector.extract_strided_slice %43 {offsets = [0, 0, 0], sizes = [2, 8, 64], strides = [1, 1, 1]} : vector<2x8x128xf32> to vector<2x8x64xf32>
    %55 = arith.truncf %54 : vector<2x8x64xf32> to vector<2x8x64xbf16>
    %56 = vector.extract_strided_slice %45 {offsets = [0, 0, 0], sizes = [2, 8, 64], strides = [1, 1, 1]} : vector<2x8x128xf32> to vector<2x8x64xf32>
    %57 = arith.truncf %56 : vector<2x8x64xf32> to vector<2x8x64xbf16>
    "tpu.trace_start"() <{level = 10 : i32, message = "bqd,bkd->bqk"}> : () -> ()
    %cst_22 = arith.constant dense<0.000000e+00> : vector<2x8x8xf32>
    %58 = tpu.matmul %53, %55, %cst_22 {dimension_numbers = #tpu.dot_dimension_numbers<[2], [2], [1], [1], [0, 0, 0, 1, 1, 1], [0], [0]>} : vector<2x8x64xbf16>, vector<2x8x64xbf16>, vector<2x8x8xf32> -> vector<2x8x8xf32>
    "tpu.trace_stop"() : () -> ()
    %59 = vector.broadcast %51 : vector<1x1x8xf32> to vector<2x8x8xf32>
    %60 = arith.addf %58, %59 : vector<2x8x8xf32>
    %cst_23 = arith.constant dense<0xFF800000> : vector<2x8xf32>
    %61 = vector.multi_reduction <maximumf>, %60, %cst_23 [2] : vector<2x8x8xf32> to vector<2x8xf32>
    %62 = vector.shape_cast %61 : vector<2x8xf32> to vector<2x8x1xf32>
    %63 = vector.broadcast %62 : vector<2x8x1xf32> to vector<2x8x8xf32>
    %64 = arith.subf %60, %63 : vector<2x8x8xf32>
    %65 = math.exp %64 : vector<2x8x8xf32>
    %cst_24 = arith.constant dense<0.000000e+00> : vector<2x8xf32>
    %66 = vector.multi_reduction <add>, %65, %cst_24 [2] : vector<2x8x8xf32> to vector<2x8xf32>
    %67 = vector.shape_cast %66 : vector<2x8xf32> to vector<2x8x1xf32>
    %68 = tpu.reciprocal %67 {approx = true} : vector<2x8x1xf32> -> vector<2x8x1xf32>
    %69 = vector.broadcast %68 : vector<2x8x1xf32> to vector<2x8x8xf32>
    %70 = arith.mulf %65, %69 : vector<2x8x8xf32>
    %71 = arith.truncf %70 : vector<2x8x8xf32> to vector<2x8x8xbf16>
    "tpu.trace_start"() <{level = 10 : i32, message = "bqk,bkd->bqd"}> : () -> ()
    %cst_25 = arith.constant dense<0.000000e+00> : vector<2x8x64xf32>
    %72 = tpu.matmul %71, %57, %cst_25 {dimension_numbers = #tpu.dot_dimension_numbers<[2], [1], [1], [2], [0, 0, 0, 1, 1, 2], [0], [0]>} : vector<2x8x8xbf16>, vector<2x8x64xbf16>, vector<2x8x64xf32> -> vector<2x8x64xf32>
    "tpu.trace_stop"() : () -> ()
    %73 = vector.extract_strided_slice %41 {offsets = [0, 0, 64], sizes = [2, 8, 64], strides = [1, 1, 1]} : vector<2x8x128xf32> to vector<2x8x64xf32>
    %74 = arith.truncf %73 : vector<2x8x64xf32> to vector<2x8x64xbf16>
    %75 = vector.extract_strided_slice %43 {offsets = [0, 0, 64], sizes = [2, 8, 64], strides = [1, 1, 1]} : vector<2x8x128xf32> to vector<2x8x64xf32>
    %76 = arith.truncf %75 : vector<2x8x64xf32> to vector<2x8x64xbf16>
    %77 = vector.extract_strided_slice %45 {offsets = [0, 0, 64], sizes = [2, 8, 64], strides = [1, 1, 1]} : vector<2x8x128xf32> to vector<2x8x64xf32>
    %78 = arith.truncf %77 : vector<2x8x64xf32> to vector<2x8x64xbf16>
    "tpu.trace_start"() <{level = 10 : i32, message = "bqd,bkd->bqk"}> : () -> ()
    %cst_26 = arith.constant dense<0.000000e+00> : vector<2x8x8xf32>
    %79 = tpu.matmul %74, %76, %cst_26 {dimension_numbers = #tpu.dot_dimension_numbers<[2], [2], [1], [1], [0, 0, 0, 1, 1, 1], [0], [0]>} : vector<2x8x64xbf16>, vector<2x8x64xbf16>, vector<2x8x8xf32> -> vector<2x8x8xf32>
    "tpu.trace_stop"() : () -> ()
    %80 = vector.broadcast %51 : vector<1x1x8xf32> to vector<2x8x8xf32>
    %81 = arith.addf %79, %80 : vector<2x8x8xf32>
    %cst_27 = arith.constant dense<0xFF800000> : vector<2x8xf32>
    %82 = vector.multi_reduction <maximumf>, %81, %cst_27 [2] : vector<2x8x8xf32> to vector<2x8xf32>
    %83 = vector.shape_cast %82 : vector<2x8xf32> to vector<2x8x1xf32>
    %84 = vector.broadcast %83 : vector<2x8x1xf32> to vector<2x8x8xf32>
    %85 = arith.subf %81, %84 : vector<2x8x8xf32>
    %86 = math.exp %85 : vector<2x8x8xf32>
    %cst_28 = arith.constant dense<0.000000e+00> : vector<2x8xf32>
    %87 = vector.multi_reduction <add>, %86, %cst_28 [2] : vector<2x8x8xf32> to vector<2x8xf32>
    %88 = vector.shape_cast %87 : vector<2x8xf32> to vector<2x8x1xf32>
    %89 = tpu.reciprocal %88 {approx = true} : vector<2x8x1xf32> -> vector<2x8x1xf32>
    %90 = vector.broadcast %89 : vector<2x8x1xf32> to vector<2x8x8xf32>
    %91 = arith.mulf %86, %90 : vector<2x8x8xf32>
    %92 = arith.truncf %91 : vector<2x8x8xf32> to vector<2x8x8xbf16>
    "tpu.trace_start"() <{level = 10 : i32, message = "bqk,bkd->bqd"}> : () -> ()
    %cst_29 = arith.constant dense<0.000000e+00> : vector<2x8x64xf32>
    %93 = tpu.matmul %92, %78, %cst_29 {dimension_numbers = #tpu.dot_dimension_numbers<[2], [1], [1], [2], [0, 0, 0, 1, 1, 2], [0], [0]>} : vector<2x8x8xbf16>, vector<2x8x64xbf16>, vector<2x8x64xf32> -> vector<2x8x64xf32>
    "tpu.trace_stop"() : () -> ()
    %94 = tpu.concatenate %72, %93 in 2 : vector<2x8x64xf32>, vector<2x8x64xf32> -> vector<2x8x128xf32>
    %95 = vector.shape_cast %94 : vector<2x8x128xf32> to vector<16x128xf32>
    %96 = arith.truncf %95 : vector<16x128xf32> to vector<16x128xbf16>
    %c0_30 = arith.constant 0 : index
    %c0_31 = arith.constant 0 : index
    %c0_32 = arith.constant 0 : index
    %97 = vector.load %arg8[%c0_30, %c0_31, %c0_32] : memref<1x128x128xbf16, #tpu.memory_space<vmem>>, vector<1x128x128xbf16>
    %98 = vector.shape_cast %97 : vector<1x128x128xbf16> to vector<128x128xbf16>
    %cst_33 = arith.constant dense<0.000000e+00> : vector<16x128xf32>
    %99 = tpu.matmul %96, %98, %cst_33 {dimension_numbers = #tpu.dot_dimension_numbers<[1], [0], [0], [1], [0, 0, 1, 1], [], []>} : vector<16x128xbf16>, vector<128x128xbf16>, vector<16x128xf32> -> vector<16x128xf32>
    %100 = arith.addf %3, %99 : vector<16x128xf32>
    %c0_34 = arith.constant 0 : index
    %c0_35 = arith.constant 0 : index
    %c0_36 = arith.constant 0 : index
    %101 = vector.load %arg9[%c0_34, %c0_35, %c0_36] : memref<1x1x128xf32, #tpu.memory_space<vmem>>, vector<1x1x128xf32>
    %102 = vector.shape_cast %101 : vector<1x1x128xf32> to vector<1x128xf32>
    %103 = vector.broadcast %102 : vector<1x128xf32> to vector<16x128xf32>
    %104 = arith.addf %100, %103 : vector<16x128xf32>
    %c0_37 = arith.constant 0 : index
    %c0_38 = arith.constant 0 : index
    %c0_39 = arith.constant 0 : index
    %105 = vector.load %arg10[%c0_37, %c0_38, %c0_39] : memref<1x1x128xf32, #tpu.memory_space<vmem>>, vector<1x1x128xf32>
    %106 = vector.shape_cast %105 : vector<1x1x128xf32> to vector<1x128xf32>
    %c0_40 = arith.constant 0 : index
    %c0_41 = arith.constant 0 : index
    %c0_42 = arith.constant 0 : index
    %107 = vector.load %arg11[%c0_40, %c0_41, %c0_42] : memref<1x1x128xf32, #tpu.memory_space<vmem>>, vector<1x1x128xf32>
    %108 = vector.shape_cast %107 : vector<1x1x128xf32> to vector<1x128xf32>
    %cst_43 = arith.constant dense<0.000000e+00> : vector<16xf32>
    %109 = vector.multi_reduction <add>, %104, %cst_43 [1] : vector<16x128xf32> to vector<16xf32>
    %110 = vector.shape_cast %109 : vector<16xf32> to vector<16x1xf32>
    %cst_44 = arith.constant 1.280000e+02 : f32
    %111 = vector.broadcast %cst_44 : f32 to vector<16x1xf32>
    %112 = arith.divf %110, %111 : vector<16x1xf32>
    %113 = vector.broadcast %112 : vector<16x1xf32> to vector<16x128xf32>
    %114 = arith.subf %104, %113 : vector<16x128xf32>
    %115 = arith.mulf %114, %114 : vector<16x128xf32>
    %cst_45 = arith.constant dense<0.000000e+00> : vector<16xf32>
    %116 = vector.multi_reduction <add>, %115, %cst_45 [1] : vector<16x128xf32> to vector<16xf32>
    %117 = vector.shape_cast %116 : vector<16xf32> to vector<16x1xf32>
    %cst_46 = arith.constant 1.280000e+02 : f32
    %118 = vector.broadcast %cst_46 : f32 to vector<16x1xf32>
    %119 = arith.divf %117, %118 : vector<16x1xf32>
    %120 = vector.broadcast %112 : vector<16x1xf32> to vector<16x128xf32>
    %121 = arith.subf %104, %120 : vector<16x128xf32>
    %cst_47 = arith.constant 9.99999997E-7 : f32
    %122 = vector.broadcast %cst_47 : f32 to vector<16x1xf32>
    %123 = arith.addf %119, %122 : vector<16x1xf32>
    %124 = math.rsqrt %123 : vector<16x1xf32>
    %125 = vector.broadcast %124 : vector<16x1xf32> to vector<16x128xf32>
    %126 = arith.mulf %121, %125 : vector<16x128xf32>
    %127 = vector.broadcast %106 : vector<1x128xf32> to vector<16x128xf32>
    %128 = arith.mulf %126, %127 : vector<16x128xf32>
    %129 = vector.broadcast %108 : vector<1x128xf32> to vector<16x128xf32>
    %130 = arith.addf %128, %129 : vector<16x128xf32>
    %131 = arith.truncf %130 : vector<16x128xf32> to vector<16x128xbf16>
    %c0_48 = arith.constant 0 : index
    %c0_49 = arith.constant 0 : index
    %c0_50 = arith.constant 0 : index
    %132 = vector.load %arg12[%c0_48, %c0_49, %c0_50] : memref<1x128x512xbf16, #tpu.memory_space<vmem>>, vector<1x128x512xbf16>
    %133 = vector.shape_cast %132 : vector<1x128x512xbf16> to vector<128x512xbf16>
    %cst_51 = arith.constant dense<0.000000e+00> : vector<16x512xf32>
    %134 = tpu.matmul %131, %133, %cst_51 {dimension_numbers = #tpu.dot_dimension_numbers<[1], [0], [0], [1], [0, 0, 1, 1], [], []>} : vector<16x128xbf16>, vector<128x512xbf16>, vector<16x512xf32> -> vector<16x512xf32>
    %c0_52 = arith.constant 0 : index
    %c0_53 = arith.constant 0 : index
    %c0_54 = arith.constant 0 : index
    %135 = vector.load %arg13[%c0_52, %c0_53, %c0_54] : memref<1x1x512xf32, #tpu.memory_space<vmem>>, vector<1x1x512xf32>
    %136 = vector.shape_cast %135 : vector<1x1x512xf32> to vector<1x512xf32>
    %137 = vector.broadcast %136 : vector<1x512xf32> to vector<16x512xf32>
    %138 = arith.addf %134, %137 : vector<16x512xf32>
    %139 = arith.mulf %138, %138 : vector<16x512xf32>
    %140 = arith.mulf %138, %139 : vector<16x512xf32>
    %cst_55 = arith.constant 4.471500e-02 : f32
    %141 = vector.broadcast %cst_55 : f32 to vector<16x512xf32>
    %142 = arith.mulf %141, %140 : vector<16x512xf32>
    %143 = arith.addf %138, %142 : vector<16x512xf32>
    %cst_56 = arith.constant 0.797884583 : f32
    %144 = vector.broadcast %cst_56 : f32 to vector<16x512xf32>
    %145 = arith.mulf %144, %143 : vector<16x512xf32>
    %146 = math.tanh %145 : vector<16x512xf32>
    %cst_57 = arith.constant 1.000000e+00 : f32
    %147 = vector.broadcast %cst_57 : f32 to vector<16x512xf32>
    %148 = arith.addf %147, %146 : vector<16x512xf32>
    %cst_58 = arith.constant 5.000000e-01 : f32
    %149 = vector.broadcast %cst_58 : f32 to vector<16x512xf32>
    %150 = arith.mulf %149, %148 : vector<16x512xf32>
    %151 = arith.mulf %138, %150 : vector<16x512xf32>
    %152 = arith.truncf %151 : vector<16x512xf32> to vector<16x512xbf16>
    %c0_59 = arith.constant 0 : index
    %c0_60 = arith.constant 0 : index
    %c0_61 = arith.constant 0 : index
    %153 = vector.load %arg14[%c0_59, %c0_60, %c0_61] : memref<1x512x128xbf16, #tpu.memory_space<vmem>>, vector<1x512x128xbf16>
    %154 = vector.shape_cast %153 : vector<1x512x128xbf16> to vector<512x128xbf16>
    %cst_62 = arith.constant dense<0.000000e+00> : vector<16x128xf32>
    %155 = tpu.matmul %152, %154, %cst_62 {dimension_numbers = #tpu.dot_dimension_numbers<[1], [0], [0], [1], [0, 0, 1, 1], [], []>} : vector<16x512xbf16>, vector<512x128xbf16>, vector<16x128xf32> -> vector<16x128xf32>
    %156 = arith.addf %104, %155 : vector<16x128xf32>
    %c0_63 = arith.constant 0 : index
    %c0_64 = arith.constant 0 : index
    %c0_65 = arith.constant 0 : index
    %157 = vector.load %arg15[%c0_63, %c0_64, %c0_65] : memref<1x1x128xf32, #tpu.memory_space<vmem>>, vector<1x1x128xf32>
    %158 = vector.shape_cast %157 : vector<1x1x128xf32> to vector<1x128xf32>
    %159 = vector.broadcast %158 : vector<1x128xf32> to vector<16x128xf32>
    %160 = arith.addf %156, %159 : vector<16x128xf32>
    %c0_66 = arith.constant 0 : index
    %c0_67 = arith.constant 0 : index
    %161 = vector.load %arg22[%c0_66, %c0_67] : memref<16x128xf32, #tpu.memory_space<vmem>>, vector<16x128xf32>
    tpu.vector_store %arg22[%c0_66, %c0_67], %160 {strides = array<i32>} : memref<16x128xf32, #tpu.memory_space<vmem>>, vector<16x128xf32>,
    %c1_i32 = arith.constant 1 : i32
    %162 = arith.cmpi eq, %arg0, %c1_i32 : i32
    %163 = arith.extui %162 : i1 to i32
    %c0_i32_68 = arith.constant 0 : i32
    %164 = arith.cmpi ne, %163, %c0_i32_68 : i32
    scf.if %164 {
      %165 = vector.shape_cast %160 : vector<16x128xf32> to vector<2x8x128xf32>
      %166 = vector.extract_strided_slice %165 {offsets = [0, 0, 0], sizes = [2, 1, 128], strides = [1, 1, 1]} : vector<2x8x128xf32> to vector<2x1x128xf32>
      %167 = vector.shape_cast %166 : vector<2x1x128xf32> to vector<2x128xf32>
      %c0_69 = arith.constant 0 : index
      %c0_70 = arith.constant 0 : index
      %168 = vector.load %arg16[%c0_69, %c0_70] : memref<1x128xf32, #tpu.memory_space<vmem>>, vector<1x128xf32>
      %c0_71 = arith.constant 0 : index
      %c0_72 = arith.constant 0 : index
      %169 = vector.load %arg17[%c0_71, %c0_72] : memref<1x128xf32, #tpu.memory_space<vmem>>, vector<1x128xf32>
      %cst_73 = arith.constant dense<0.000000e+00> : vector<2xf32>
      %170 = vector.multi_reduction <add>, %167, %cst_73 [1] : vector<2x128xf32> to vector<2xf32>
      %171 = vector.shape_cast %170 : vector<2xf32> to vector<2x1xf32>
      %cst_74 = arith.constant 1.280000e+02 : f32
      %172 = vector.broadcast %cst_74 : f32 to vector<2x1xf32>
      %173 = arith.divf %171, %172 : vector<2x1xf32>
      %174 = vector.broadcast %173 : vector<2x1xf32> to vector<2x128xf32>
      %175 = arith.subf %167, %174 : vector<2x128xf32>
      %176 = arith.mulf %175, %175 : vector<2x128xf32>
      %cst_75 = arith.constant dense<0.000000e+00> : vector<2xf32>
      %177 = vector.multi_reduction <add>, %176, %cst_75 [1] : vector<2x128xf32> to vector<2xf32>
      %178 = vector.shape_cast %177 : vector<2xf32> to vector<2x1xf32>
      %cst_76 = arith.constant 1.280000e+02 : f32
      %179 = vector.broadcast %cst_76 : f32 to vector<2x1xf32>
      %180 = arith.divf %178, %179 : vector<2x1xf32>
      %181 = vector.broadcast %173 : vector<2x1xf32> to vector<2x128xf32>
      %182 = arith.subf %167, %181 : vector<2x128xf32>
      %cst_77 = arith.constant 9.99999997E-7 : f32
      %183 = vector.broadcast %cst_77 : f32 to vector<2x1xf32>
      %184 = arith.addf %180, %183 : vector<2x1xf32>
      %185 = math.rsqrt %184 : vector<2x1xf32>
      %186 = vector.broadcast %185 : vector<2x1xf32> to vector<2x128xf32>
      %187 = arith.mulf %182, %186 : vector<2x128xf32>
      %188 = vector.broadcast %168 : vector<1x128xf32> to vector<2x128xf32>
      %189 = arith.mulf %187, %188 : vector<2x128xf32>
      %190 = vector.broadcast %169 : vector<1x128xf32> to vector<2x128xf32>
      %191 = arith.addf %189, %190 : vector<2x128xf32>
      %c0_78 = arith.constant 0 : index
      %c0_79 = arith.constant 0 : index
      %192 = vector.load %arg21[%c0_78, %c0_79] : memref<2x128xf32, #tpu.memory_space<vmem>>, vector<2x128xf32>
      tpu.vector_store %arg21[%c0_78, %c0_79], %191 {strides = array<i32>} : memref<2x128xf32, #tpu.memory_space<vmem>>, vector<2x128xf32>,
      %cst_80 = arith.constant dense<0.000000e+00> : vector<128xf32>
      %193 = vector.multi_reduction <add>, %191, %cst_80 [0] : vector<2x128xf32> to vector<128xf32>
      %194 = vector.shape_cast %193 : vector<128xf32> to vector<1x128xf32>
      %cst_81 = arith.constant 2.000000e+00 : f32
      %195 = vector.broadcast %cst_81 : f32 to vector<1x128xf32>
      %196 = arith.divf %194, %195 : vector<1x128xf32>
      %197 = vector.broadcast %196 : vector<1x128xf32> to vector<2x128xf32>
      %198 = arith.subf %191, %197 : vector<2x128xf32>
      %199 = arith.mulf %198, %198 : vector<2x128xf32>
      %cst_82 = arith.constant dense<0.000000e+00> : vector<128xf32>
      %200 = vector.multi_reduction <add>, %199, %cst_82 [0] : vector<2x128xf32> to vector<128xf32>
      %201 = vector.shape_cast %200 : vector<128xf32> to vector<1x128xf32>
      %cst_83 = arith.constant 2.000000e+00 : f32
      %202 = vector.broadcast %cst_83 : f32 to vector<1x128xf32>
      %203 = arith.divf %201, %202 : vector<1x128xf32>
      %204 = vector.broadcast %196 : vector<1x128xf32> to vector<2x128xf32>
      %205 = arith.subf %191, %204 : vector<2x128xf32>
      %cst_84 = arith.constant 9.99999974E-6 : f32
      %206 = vector.broadcast %cst_84 : f32 to vector<1x128xf32>
      %207 = arith.addf %203, %206 : vector<1x128xf32>
      %208 = math.rsqrt %207 : vector<1x128xf32>
      %209 = vector.broadcast %208 : vector<1x128xf32> to vector<2x128xf32>
      %210 = arith.mulf %205, %209 : vector<2x128xf32>
      %211 = arith.truncf %210 : vector<2x128xf32> to vector<2x128xbf16>
      %c0_85 = arith.constant 0 : index
      %c0_86 = arith.constant 0 : index
      %212 = vector.load %arg18[%c0_85, %c0_86] : memref<128x128xbf16, #tpu.memory_space<vmem>>, vector<128x128xbf16>
      %cst_87 = arith.constant dense<0.000000e+00> : vector<2x128xf32>
      %213 = tpu.matmul %211, %212, %cst_87 {dimension_numbers = #tpu.dot_dimension_numbers<[1], [0], [0], [1], [0, 0, 1, 1], [], []>} : vector<2x128xbf16>, vector<128x128xbf16>, vector<2x128xf32> -> vector<2x128xf32>
      %c0_88 = arith.constant 0 : index
      %c0_89 = arith.constant 0 : index
      %214 = vector.load %arg19[%c0_88, %c0_89] : memref<1x128xf32, #tpu.memory_space<vmem>>, vector<1x128xf32>
      %215 = vector.broadcast %214 : vector<1x128xf32> to vector<2x128xf32>
      %216 = arith.addf %213, %215 : vector<2x128xf32>
      %c0_90 = arith.constant 0 : index
      %c0_91 = arith.constant 0 : index
      %217 = vector.load %arg20[%c0_90, %c0_91] : memref<2x128xf32, #tpu.memory_space<vmem>>, vector<2x128xf32>
      tpu.vector_store %arg20[%c0_90, %c0_91], %216 {strides = array<i32>} : memref<2x128xf32, #tpu.memory_space<vmem>>, vector<2x128xf32>,
    } else {
    }
    return
  }
  func.func @transform_0(%arg0: i32) -> (i32, i32) {
    %c0_i32 = arith.constant 0 : i32
    %c0_i32_0 = arith.constant 0 : i32
    %c0_i32_1 = arith.constant 0 : i32
    return %c0_i32, %c0_i32_0 : i32, i32
  }
  func.func @transform_1(%arg0: i32) -> (i32, i32) {
    %c0_i32 = arith.constant 0 : i32
    %c0_i32_0 = arith.constant 0 : i32
    %c0_i32_1 = arith.constant 0 : i32
    return %c0_i32, %c0_i32_0 : i32, i32
  }
  func.func @transform_2(%arg0: i32) -> (i32, i32) {
    %c0_i32 = arith.constant 0 : i32
    %c0_i32_0 = arith.constant 0 : i32
    %c0_i32_1 = arith.constant 0 : i32
    return %c0_i32, %c0_i32_0 : i32, i32
  }
  func.func @transform_3(%arg0: i32) -> (i32, i32, i32) {
    %c0_i32 = arith.constant 0 : i32
    %c0_i32_0 = arith.constant 0 : i32
    %c0_i32_1 = arith.constant 0 : i32
    return %arg0, %c0_i32, %c0_i32_0 : i32, i32, i32
  }
  func.func @transform_4(%arg0: i32) -> (i32, i32, i32) {
    %c0_i32 = arith.constant 0 : i32
    %c0_i32_0 = arith.constant 0 : i32
    %c0_i32_1 = arith.constant 0 : i32
    return %arg0, %c0_i32, %c0_i32_0 : i32, i32, i32
  }
  func.func @transform_5(%arg0: i32) -> (i32, i32, i32) {
    %c0_i32 = arith.constant 0 : i32
    %c0_i32_0 = arith.constant 0 : i32
    %c0_i32_1 = arith.constant 0 : i32
    return %arg0, %c0_i32, %c0_i32_0 : i32, i32, i32
  }
  func.func @transform_6(%arg0: i32) -> (i32, i32, i32) {
    %c0_i32 = arith.constant 0 : i32
    %c0_i32_0 = arith.constant 0 : i32
    %c0_i32_1 = arith.constant 0 : i32
    return %arg0, %c0_i32, %c0_i32_0 : i32, i32, i32
  }
  func.func @transform_7(%arg0: i32) -> (i32, i32, i32) {
    %c0_i32 = arith.constant 0 : i32
    %c0_i32_0 = arith.constant 0 : i32
    %c0_i32_1 = arith.constant 0 : i32
    return %arg0, %c0_i32, %c0_i32_0 : i32, i32, i32
  }
  func.func @transform_8(%arg0: i32) -> (i32, i32, i32) {
    %c0_i32 = arith.constant 0 : i32
    %c0_i32_0 = arith.constant 0 : i32
    %c0_i32_1 = arith.constant 0 : i32
    return %arg0, %c0_i32, %c0_i32_0 : i32, i32, i32
  }
  func.func @transform_9(%arg0: i32) -> (i32, i32, i32) {
    %c0_i32 = arith.constant 0 : i32
    %c0_i32_0 = arith.constant 0 : i32
    %c0_i32_1 = arith.constant 0 : i32
    return %arg0, %c0_i32, %c0_i32_0 : i32, i32, i32
  }
  func.func @transform_10(%arg0: i32) -> (i32, i32, i32) {
    %c0_i32 = arith.constant 0 : i32
    %c0_i32_0 = arith.constant 0 : i32
    %c0_i32_1 = arith.constant 0 : i32
    return %arg0, %c0_i32, %c0_i32_0 : i32, i32, i32
  }
  func.func @transform_11(%arg0: i32) -> (i32, i32, i32) {
    %c0_i32 = arith.constant 0 : i32
    %c0_i32_0 = arith.constant 0 : i32
    %c0_i32_1 = arith.constant 0 : i32
    return %arg0, %c0_i32, %c0_i32_0 : i32, i32, i32
  }
  func.func @transform_12(%arg0: i32) -> (i32, i32, i32) {
    %c0_i32 = arith.constant 0 : i32
    %c0_i32_0 = arith.constant 0 : i32
    %c0_i32_1 = arith.constant 0 : i32
    return %arg0, %c0_i32, %c0_i32_0 : i32, i32, i32
  }
  func.func @transform_13(%arg0: i32) -> (i32, i32, i32) {
    %c0_i32 = arith.constant 0 : i32
    %c0_i32_0 = arith.constant 0 : i32
    %c0_i32_1 = arith.constant 0 : i32
    return %arg0, %c0_i32, %c0_i32_0 : i32, i32, i32
  }
  func.func @transform_14(%arg0: i32) -> (i32, i32, i32) {
    %c0_i32 = arith.constant 0 : i32
    %c0_i32_0 = arith.constant 0 : i32
    %c0_i32_1 = arith.constant 0 : i32
    return %arg0, %c0_i32, %c0_i32_0 : i32, i32, i32
  }
  func.func @transform_15(%arg0: i32) -> (i32, i32) {
    %c0_i32 = arith.constant 0 : i32
    %c0_i32_0 = arith.constant 0 : i32
    %c0_i32_1 = arith.constant 0 : i32
    return %c0_i32, %c0_i32_0 : i32, i32
  }
  func.func @transform_16(%arg0: i32) -> (i32, i32) {
    %c0_i32 = arith.constant 0 : i32
    %c0_i32_0 = arith.constant 0 : i32
    %c0_i32_1 = arith.constant 0 : i32
    return %c0_i32, %c0_i32_0 : i32, i32
  }
  func.func @transform_17(%arg0: i32) -> (i32, i32) {
    %c0_i32 = arith.constant 0 : i32
    %c0_i32_0 = arith.constant 0 : i32
    %c0_i32_1 = arith.constant 0 : i32
    return %c0_i32, %c0_i32_0 : i32, i32
  }
  func.func @transform_18(%arg0: i32) -> (i32, i32) {
    %c0_i32 = arith.constant 0 : i32
    %c0_i32_0 = arith.constant 0 : i32
    %c0_i32_1 = arith.constant 0 : i32
    return %c0_i32, %c0_i32_0 : i32, i32
  }
  func.func @transform_19(%arg0: i32) -> (i32, i32) {
    %c0_i32 = arith.constant 0 : i32
    %c0_i32_0 = arith.constant 0 : i32
    %c0_i32_1 = arith.constant 0 : i32
    return %c0_i32, %c0_i32_0 : i32, i32
  }
  func.func @transform_20(%arg0: i32) -> (i32, i32) {
    %c0_i32 = arith.constant 0 : i32
    %c0_i32_0 = arith.constant 0 : i32
    %c0_i32_1 = arith.constant 0 : i32
    return %c0_i32, %c0_i32_0 : i32, i32
  }
}

</mosaic_0001>

<llo_original>
// kernel: _lambda_.1
$region0: #{_lambda_.1}
  #allocation0 [shape = 'u32[]', space=smem, size = 0x4, offset = 0x4, fixed_abs, tag = 'smem constant byte address 0x4 - core index']
  #allocation1 [shape = 'u32[144,128]{1,0:T(1,128)}', space=vmem, size = 0x12000, scoped, tag = 'internal scratch']
  #allocation2 [shape = 'f32[16,128]{1,0:T(8,128)}', space=vmem, size = 0x2000, scoped, tag = 'scratch operand']
  %s0 = inlined_call_operand.vmem [shape: f32[16,768], index: 0, kind: input, shape index: {}]
  %s1 = inlined_call_operand.vmem [shape: bf16[768,128], index: 1, kind: input, shape index: {}]
  %s2 = inlined_call_operand.vmem [shape: f32[16,128], index: 2, kind: input, shape index: {}]
  %s3 = inlined_call_operand.vmem [shape: f32[2,1,128], index: 3, kind: input, shape index: {}]
  %s4 = inlined_call_operand.vmem [shape: f32[2,1,128], index: 4, kind: input, shape index: {}]
  %s5 = inlined_call_operand.vmem [shape: bf16[2,128,384], index: 5, kind: input, shape index: {}]
  %s6 = inlined_call_operand.vmem [shape: f32[2,1,384], index: 6, kind: input, shape index: {}]
  %s7 = inlined_call_operand.vmem [shape: bf16[2,128,128], index: 7, kind: input, shape index: {}]
  %s8 = inlined_call_operand.vmem [shape: f32[2,1,128], index: 8, kind: input, shape index: {}]
  %s9 = inlined_call_operand.vmem [shape: f32[2,1,128], index: 9, kind: input, shape index: {}]
  %s10 = inlined_call_operand.vmem [shape: f32[2,1,128], index: 10, kind: input, shape index: {}]
  %s11 = inlined_call_operand.vmem [shape: bf16[2,128,512], index: 11, kind: input, shape index: {}]
  %s12 = inlined_call_operand.vmem [shape: f32[2,1,512], index: 12, kind: input, shape index: {}]
  %s13 = inlined_call_operand.vmem [shape: bf16[2,512,128], index: 13, kind: input, shape index: {}]
  %s14 = inlined_call_operand.vmem [shape: f32[2,1,128], index: 14, kind: input, shape index: {}]
  %s15 = inlined_call_operand.vmem [shape: f32[1,128], index: 15, kind: input, shape index: {}]
  %s16 = inlined_call_operand.vmem [shape: f32[1,128], index: 16, kind: input, shape index: {}]
  %s17 = inlined_call_operand.vmem [shape: bf16[128,128], index: 17, kind: input, shape index: {}]
  %s18 = inlined_call_operand.vmem [shape: f32[1,128], index: 18, kind: input, shape index: {}]
  %s19 = inlined_call_operand.vmem [shape: f32[2,128], index: 19, kind: output, shape index: {0}]
  %s20 = inlined_call_operand.hbm [shape: f32[2,128], index: 20, kind: output, shape index: {1}]
  %21 = xla_tuple %s19, %s20
  %s22 = sld [smem:[#allocation0]]
  $region125: #{_lambda_.1} parent=0
    _
  %s24 = ssub.s32 1, %s22
  %s25 = scalar_select 0, %s24, %s22
  $region1: #{_lambda_.1} parent=0
    #allocation3 [shape = 'u8[1024]{0}', space=vmem, size = 0x400, scoped, tag = 'output window, operand 1, single buffered']
    #allocation4 [shape = 's32[2]{0}', space=sflag, size = 0x8, scoped, tag = 'scoped memory for _lambda_.1']
    %26 = vsyncpa [#allocation4], 0
    loop: start=0, step=1, limit=4
    $region2: #{_lambda_.1} parent=1 // loop_pre_header
      _
    $region3: #{_lambda_.1} parent=1 // loop_header
      %s28 = sphi 0, %s32
      %p29 = scmp.ge.s32.totalorder %s28, 4
      %s36 = sphi 0, %s36
      %s38 = sphi 0, %s36
      %s39 = sphi 0, %s38
      %s53 = sphi 0, %s39
      %s57 = sphi 0, %s57
      %s59 = sphi 0, %s57
      %s60 = sphi 0, %s59
      %s74 = sphi 0, %s60
      %s78 = sphi 0, %s78
      %s80 = sphi 0, %s78
      %s81 = sphi 0, %s80
      %s95 = sphi 0, %s81
      %s101 = sphi 0, %s103
      %s104 = sphi 0, %s101
      %s105 = sphi 0, %s104
      %s121 = sphi 0, %s105
      %s127 = sphi 0, %s129
      %s130 = sphi 0, %s127
      %s131 = sphi 0, %s130
      %s147 = sphi 0, %s131
      %s153 = sphi 0, %s155
      %s156 = sphi 0, %s153
      %s157 = sphi 0, %s156
      %s173 = sphi 0, %s157
      %s179 = sphi 0, %s181
      %s182 = sphi 0, %s179
      %s183 = sphi 0, %s182
      %s199 = sphi 0, %s183
      %s205 = sphi 0, %s207
      %s208 = sphi 0, %s205
      %s209 = sphi 0, %s208
      %s225 = sphi 0, %s209
      %s231 = sphi 0, %s233
      %s234 = sphi 0, %s231
      %s235 = sphi 0, %s234
      %s251 = sphi 0, %s235
      %s257 = sphi 0, %s259
      %s260 = sphi 0, %s257
      %s261 = sphi 0, %s260
      %s277 = sphi 0, %s261
      %s283 = sphi 0, %s285
      %s286 = sphi 0, %s283
      %s287 = sphi 0, %s286
      %s303 = sphi 0, %s287
      %s309 = sphi 0, %s311
      %s312 = sphi 0, %s309
      %s313 = sphi 0, %s312
      %s329 = sphi 0, %s313
      %s335 = sphi 0, %s337
      %s338 = sphi 0, %s335
      %s339 = sphi 0, %s338
      %s355 = sphi 0, %s339
      %s361 = sphi 0, %s363
      %s364 = sphi 0, %s361
      %s365 = sphi 0, %s364
      %s381 = sphi 0, %s365
      %s387 = sphi 0, %s389
      %s390 = sphi 0, %s387
      %s391 = sphi 0, %s390
      %s407 = sphi 0, %s391
      %s411 = sphi 0, %s411
      %s413 = sphi 0, %s411
      %s414 = sphi 0, %s413
      %s428 = sphi 0, %s414
      %s432 = sphi 0, %s432
      %s434 = sphi 0, %s432
      %s435 = sphi 0, %s434
      %s449 = sphi 0, %s435
      %s453 = sphi 0, %s453
      %s455 = sphi 0, %s453
      %s456 = sphi 0, %s455
      %s470 = sphi 0, %s456
      %s474 = sphi 0, %s474
      %s476 = sphi 0, %s474
      %s477 = sphi 0, %s476
      %s491 = sphi 0, %s477
      %s495 = sphi 0, %s495
      %s497 = sphi 0, %s495
      %s498 = sphi 0, %s497
      %s512 = sphi 0, %s498
      %s516 = sphi 0, %s516
      %s518 = sphi 0, %s516
      %s519 = sphi 0, %s518
      %s533 = sphi 0, %s519
    $region4: #{_lambda_.1} parent=1 // loop_header_branch
      %31 = sbr.rel (%p29) target = $region8
    $region5: #{_lambda_.1} parent=1 // loop_body
      %s33 = ssub.s32 %s28, 1
      %s34 = ssub.s32 %s28, 2
      %s35 = sadd.s32 %s28, 1
      %s37 = sadd.s32 %s36, 1
      %p40 = scmp.eq.s32.totalorder %s28, 1
      %p41 = scmp.ne.s32.totalorder %s36, %s38
      %p42 = scmp.eq.s32.totalorder %s28, 0
      %p43 = por %p41, %p42
      %p44 = scmp.ne.s32.totalorder %s36, %s38
      %p45 = scmp.eq.s32.totalorder %s33, 1
      %p46 = por %p44, %p45
      %p47 = scmp.ne.s32.totalorder %s38, %s39
      %p48 = scmp.eq.s32.totalorder %s33, 0
      %p49 = por %p47, %p48
      %p50 = scmp.ne.s32.totalorder %s38, %s39
      %p51 = scmp.eq.s32.totalorder %s34, 1
      %p52 = por %p50, %p51
      %p54 = scmp.ne.s32.totalorder %s39, %s53
      %p55 = scmp.eq.s32.totalorder %s34, 0
      %p56 = por %p54, %p55
      %s58 = sadd.s32 %s57, 1
      %p61 = scmp.eq.s32.totalorder %s28, 1
      %p62 = scmp.ne.s32.totalorder %s57, %s59
      %p63 = scmp.eq.s32.totalorder %s28, 0
      %p64 = por %p62, %p63
      %p65 = scmp.ne.s32.totalorder %s57, %s59
      %p66 = scmp.eq.s32.totalorder %s33, 1
      %p67 = por %p65, %p66
      %p68 = scmp.ne.s32.totalorder %s59, %s60
      %p69 = scmp.eq.s32.totalorder %s33, 0
      %p70 = por %p68, %p69
      %p71 = scmp.ne.s32.totalorder %s59, %s60
      %p72 = scmp.eq.s32.totalorder %s34, 1
      %p73 = por %p71, %p72
      %p75 = scmp.ne.s32.totalorder %s60, %s74
      %p76 = scmp.eq.s32.totalorder %s34, 0
      %p77 = por %p75, %p76
      %s79 = sadd.s32 %s78, 1
      %p82 = scmp.eq.s32.totalorder %s28, 1
      %p83 = scmp.ne.s32.totalorder %s78, %s80
      %p84 = scmp.eq.s32.totalorder %s28, 0
      %p85 = por %p83, %p84
      %p86 = scmp.ne.s32.totalorder %s78, %s80
      %p87 = scmp.eq.s32.totalorder %s33, 1
      %p88 = por %p86, %p87
      %p89 = scmp.ne.s32.totalorder %s80, %s81
      %p90 = scmp.eq.s32.totalorder %s33, 0
      %p91 = por %p89, %p90
      %p92 = scmp.ne.s32.totalorder %s80, %s81
      %p93 = scmp.eq.s32.totalorder %s34, 1
      %p94 = por %p92, %p93
      %p96 = scmp.ne.s32.totalorder %s81, %s95
      %p97 = scmp.eq.s32.totalorder %s34, 0
      %p98 = por %p96, %p97
      %s99 = ssub.s32 %s28, %s35
      %p100 = scmp.eq.s32.totalorder %s99, 0
      %s102 = sadd.s32 %s101, 1
      %s103 = scalar_select %p100, %s101, %s102
      %p106 = pneg %p100
      %p107 = scmp.eq.s32.totalorder %s28, 1
      %p108 = por %p106, %p107
      %p109 = scmp.ne.s32.totalorder %s101, %s104
      %p110 = scmp.eq.s32.totalorder %s28, 0
      %p111 = por %p109, %p110
      %p112 = scmp.ne.s32.totalorder %s101, %s104
      %p113 = scmp.eq.s32.totalorder %s33, 1
      %p114 = por %p112, %p113
      %p115 = scmp.ne.s32.totalorder %s104, %s105
      %p116 = scmp.eq.s32.totalorder %s33, 0
      %p117 = por %p115, %p116
      %p118 = scmp.ne.s32.totalorder %s104, %s105
      %p119 = scmp.eq.s32.totalorder %s34, 1
      %p120 = por %p118, %p119
      %p122 = scmp.ne.s32.totalorder %s105, %s121
      %p123 = scmp.eq.s32.totalorder %s34, 0
      %p124 = por %p122, %p123
      %s125 = ssub.s32 %s28, %s35
      %p126 = scmp.eq.s32.totalorder %s125, 0
      %s128 = sadd.s32 %s127, 1
      %s129 = scalar_select %p126, %s127, %s128
      %p132 = pneg %p126
      %p133 = scmp.eq.s32.totalorder %s28, 1
      %p134 = por %p132, %p133
      %p135 = scmp.ne.s32.totalorder %s127, %s130
      %p136 = scmp.eq.s32.totalorder %s28, 0
      %p137 = por %p135, %p136
      %p138 = scmp.ne.s32.totalorder %s127, %s130
      %p139 = scmp.eq.s32.totalorder %s33, 1
      %p140 = por %p138, %p139
      %p141 = scmp.ne.s32.totalorder %s130, %s131
      %p142 = scmp.eq.s32.totalorder %s33, 0
      %p143 = por %p141, %p142
      %p144 = scmp.ne.s32.totalorder %s130, %s131
      %p145 = scmp.eq.s32.totalorder %s34, 1
      %p146 = por %p144, %p145
      %p148 = scmp.ne.s32.totalorder %s131, %s147
      %p149 = scmp.eq.s32.totalorder %s34, 0
      %p150 = por %p148, %p149
      %s151 = ssub.s32 %s28, %s35
      %p152 = scmp.eq.s32.totalorder %s151, 0
      %s154 = sadd.s32 %s153, 1
      %s155 = scalar_select %p152, %s153, %s154
      %p158 = pneg %p152
      %p159 = scmp.eq.s32.totalorder %s28, 1
      %p160 = por %p158, %p159
      %p161 = scmp.ne.s32.totalorder %s153, %s156
      %p162 = scmp.eq.s32.totalorder %s28, 0
      %p163 = por %p161, %p162
      %p164 = scmp.ne.s32.totalorder %s153, %s156
      %p165 = scmp.eq.s32.totalorder %s33, 1
      %p166 = por %p164, %p165
      %p167 = scmp.ne.s32.totalorder %s156, %s157
      %p168 = scmp.eq.s32.totalorder %s33, 0
      %p169 = por %p167, %p168
      %p170 = scmp.ne.s32.totalorder %s156, %s157
      %p171 = scmp.eq.s32.totalorder %s34, 1
      %p172 = por %p170, %p171
      %p174 = scmp.ne.s32.totalorder %s157, %s173
      %p175 = scmp.eq.s32.totalorder %s34, 0
      %p176 = por %p174, %p175
      %s177 = ssub.s32 %s28, %s35
      %p178 = scmp.eq.s32.totalorder %s177, 0
      %s180 = sadd.s32 %s179, 1
      %s181 = scalar_select %p178, %s179, %s180
      %p184 = pneg %p178
      %p185 = scmp.eq.s32.totalorder %s28, 1
      %p186 = por %p184, %p185
      %p187 = scmp.ne.s32.totalorder %s179, %s182
      %p188 = scmp.eq.s32.totalorder %s28, 0
      %p189 = por %p187, %p188
      %p190 = scmp.ne.s32.totalorder %s179, %s182
      %p191 = scmp.eq.s32.totalorder %s33, 1
      %p192 = por %p190, %p191
      %p193 = scmp.ne.s32.totalorder %s182, %s183
      %p194 = scmp.eq.s32.totalorder %s33, 0
      %p195 = por %p193, %p194
      %p196 = scmp.ne.s32.totalorder %s182, %s183
      %p197 = scmp.eq.s32.totalorder %s34, 1
      %p198 = por %p196, %p197
      %p200 = scmp.ne.s32.totalorder %s183, %s199
      %p201 = scmp.eq.s32.totalorder %s34, 0
      %p202 = por %p200, %p201
      %s203 = ssub.s32 %s28, %s35
      %p204 = scmp.eq.s32.totalorder %s203, 0
      %s206 = sadd.s32 %s205, 1
      %s207 = scalar_select %p204, %s205, %s206
      %p210 = pneg %p204
      %p211 = scmp.eq.s32.totalorder %s28, 1
      %p212 = por %p210, %p211
      %p213 = scmp.ne.s32.totalorder %s205, %s208
      %p214 = scmp.eq.s32.totalorder %s28, 0
      %p215 = por %p213, %p214
      %p216 = scmp.ne.s32.totalorder %s205, %s208
      %p217 = scmp.eq.s32.totalorder %s33, 1
      %p218 = por %p216, %p217
      %p219 = scmp.ne.s32.totalorder %s208, %s209
      %p220 = scmp.eq.s32.totalorder %s33, 0
      %p221 = por %p219, %p220
      %p222 = scmp.ne.s32.totalorder %s208, %s209
      %p223 = scmp.eq.s32.totalorder %s34, 1
      %p224 = por %p222, %p223
      %p226 = scmp.ne.s32.totalorder %s209, %s225
      %p227 = scmp.eq.s32.totalorder %s34, 0
      %p228 = por %p226, %p227
      %s229 = ssub.s32 %s28, %s35
      %p230 = scmp.eq.s32.totalorder %s229, 0
      %s232 = sadd.s32 %s231, 1
      %s233 = scalar_select %p230, %s231, %s232
      %p236 = pneg %p230
      %p237 = scmp.eq.s32.totalorder %s28, 1
      %p238 = por %p236, %p237
      %p239 = scmp.ne.s32.totalorder %s231, %s234
      %p240 = scmp.eq.s32.totalorder %s28, 0
      %p241 = por %p239, %p240
      %p242 = scmp.ne.s32.totalorder %s231, %s234
      %p243 = scmp.eq.s32.totalorder %s33, 1
      %p244 = por %p242, %p243
      %p245 = scmp.ne.s32.totalorder %s234, %s235
      %p246 = scmp.eq.s32.totalorder %s33, 0
      %p247 = por %p245, %p246
      %p248 = scmp.ne.s32.totalorder %s234, %s235
      %p249 = scmp.eq.s32.totalorder %s34, 1
      %p250 = por %p248, %p249
      %p252 = scmp.ne.s32.totalorder %s235, %s251
      %p253 = scmp.eq.s32.totalorder %s34, 0
      %p254 = por %p252, %p253
      %s255 = ssub.s32 %s28, %s35
      %p256 = scmp.eq.s32.totalorder %s255, 0
      %s258 = sadd.s32 %s257, 1
      %s259 = scalar_select %p256, %s257, %s258
      %p262 = pneg %p256
      %p263 = scmp.eq.s32.totalorder %s28, 1
      %p264 = por %p262, %p263
      %p265 = scmp.ne.s32.totalorder %s257, %s260
      %p266 = scmp.eq.s32.totalorder %s28, 0
      %p267 = por %p265, %p266
      %p268 = scmp.ne.s32.totalorder %s257, %s260
      %p269 = scmp.eq.s32.totalorder %s33, 1
      %p270 = por %p268, %p269
      %p271 = scmp.ne.s32.totalorder %s260, %s261
      %p272 = scmp.eq.s32.totalorder %s33, 0
      %p273 = por %p271, %p272
      %p274 = scmp.ne.s32.totalorder %s260, %s261
      %p275 = scmp.eq.s32.totalorder %s34, 1
      %p276 = por %p274, %p275
      %p278 = scmp.ne.s32.totalorder %s261, %s277
      %p279 = scmp.eq.s32.totalorder %s34, 0
      %p280 = por %p278, %p279
      %s281 = ssub.s32 %s28, %s35
      %p282 = scmp.eq.s32.totalorder %s281, 0
      %s284 = sadd.s32 %s283, 1
      %s285 = scalar_select %p282, %s283, %s284
      %p288 = pneg %p282
      %p289 = scmp.eq.s32.totalorder %s28, 1
      %p290 = por %p288, %p289
      %p291 = scmp.ne.s32.totalorder %s283, %s286
      %p292 = scmp.eq.s32.totalorder %s28, 0
      %p293 = por %p291, %p292
      %p294 = scmp.ne.s32.totalorder %s283, %s286
      %p295 = scmp.eq.s32.totalorder %s33, 1
      %p296 = por %p294, %p295
      %p297 = scmp.ne.s32.totalorder %s286, %s287
      %p298 = scmp.eq.s32.totalorder %s33, 0
      %p299 = por %p297, %p298
      %p300 = scmp.ne.s32.totalorder %s286, %s287
      %p301 = scmp.eq.s32.totalorder %s34, 1
      %p302 = por %p300, %p301
      %p304 = scmp.ne.s32.totalorder %s287, %s303
      %p305 = scmp.eq.s32.totalorder %s34, 0
      %p306 = por %p304, %p305
      %s307 = ssub.s32 %s28, %s35
      %p308 = scmp.eq.s32.totalorder %s307, 0
      %s310 = sadd.s32 %s309, 1
      %s311 = scalar_select %p308, %s309, %s310
      %p314 = pneg %p308
      %p315 = scmp.eq.s32.totalorder %s28, 1
      %p316 = por %p314, %p315
      %p317 = scmp.ne.s32.totalorder %s309, %s312
      %p318 = scmp.eq.s32.totalorder %s28, 0
      %p319 = por %p317, %p318
      %p320 = scmp.ne.s32.totalorder %s309, %s312
      %p321 = scmp.eq.s32.totalorder %s33, 1
      %p322 = por %p320, %p321
      %p323 = scmp.ne.s32.totalorder %s312, %s313
      %p324 = scmp.eq.s32.totalorder %s33, 0
      %p325 = por %p323, %p324
      %p326 = scmp.ne.s32.totalorder %s312, %s313
      %p327 = scmp.eq.s32.totalorder %s34, 1
      %p328 = por %p326, %p327
      %p330 = scmp.ne.s32.totalorder %s313, %s329
      %p331 = scmp.eq.s32.totalorder %s34, 0
      %p332 = por %p330, %p331
      %s333 = ssub.s32 %s28, %s35
      %p334 = scmp.eq.s32.totalorder %s333, 0
      %s336 = sadd.s32 %s335, 1
      %s337 = scalar_select %p334, %s335, %s336
      %p340 = pneg %p334
      %p341 = scmp.eq.s32.totalorder %s28, 1
      %p342 = por %p340, %p341
      %p343 = scmp.ne.s32.totalorder %s335, %s338
      %p344 = scmp.eq.s32.totalorder %s28, 0
      %p345 = por %p343, %p344
      %p346 = scmp.ne.s32.totalorder %s335, %s338
      %p347 = scmp.eq.s32.totalorder %s33, 1
      %p348 = por %p346, %p347
      %p349 = scmp.ne.s32.totalorder %s338, %s339
      %p350 = scmp.eq.s32.totalorder %s33, 0
      %p351 = por %p349, %p350
      %p352 = scmp.ne.s32.totalorder %s338, %s339
      %p353 = scmp.eq.s32.totalorder %s34, 1
      %p354 = por %p352, %p353
      %p356 = scmp.ne.s32.totalorder %s339, %s355
      %p357 = scmp.eq.s32.totalorder %s34, 0
      %p358 = por %p356, %p357
      %s359 = ssub.s32 %s28, %s35
      %p360 = scmp.eq.s32.totalorder %s359, 0
      %s362 = sadd.s32 %s361, 1
      %s363 = scalar_select %p360, %s361, %s362
      %p366 = pneg %p360
      %p367 = scmp.eq.s32.totalorder %s28, 1
      %p368 = por %p366, %p367
      %p369 = scmp.ne.s32.totalorder %s361, %s364
      %p370 = scmp.eq.s32.totalorder %s28, 0
      %p371 = por %p369, %p370
      %p372 = scmp.ne.s32.totalorder %s361, %s364
      %p373 = scmp.eq.s32.totalorder %s33, 1
      %p374 = por %p372, %p373
      %p375 = scmp.ne.s32.totalorder %s364, %s365
      %p376 = scmp.eq.s32.totalorder %s33, 0
      %p377 = por %p375, %p376
      %p378 = scmp.ne.s32.totalorder %s364, %s365
      %p379 = scmp.eq.s32.totalorder %s34, 1
      %p380 = por %p378, %p379
      %p382 = scmp.ne.s32.totalorder %s365, %s381
      %p383 = scmp.eq.s32.totalorder %s34, 0
      %p384 = por %p382, %p383
      %s385 = ssub.s32 %s28, %s35
      %p386 = scmp.eq.s32.totalorder %s385, 0
      %s388 = sadd.s32 %s387, 1
      %s389 = scalar_select %p386, %s387, %s388
      %p392 = pneg %p386
      %p393 = scmp.eq.s32.totalorder %s28, 1
      %p394 = por %p392, %p393
      %p395 = scmp.ne.s32.totalorder %s387, %s390
      %p396 = scmp.eq.s32.totalorder %s28, 0
      %p397 = por %p395, %p396
      %p398 = scmp.ne.s32.totalorder %s387, %s390
      %p399 = scmp.eq.s32.totalorder %s33, 1
      %p400 = por %p398, %p399
      %p401 = scmp.ne.s32.totalorder %s390, %s391
      %p402 = scmp.eq.s32.totalorder %s33, 0
      %p403 = por %p401, %p402
      %p404 = scmp.ne.s32.totalorder %s390, %s391
      %p405 = scmp.eq.s32.totalorder %s34, 1
      %p406 = por %p404, %p405
      %p408 = scmp.ne.s32.totalorder %s391, %s407
      %p409 = scmp.eq.s32.totalorder %s34, 0
      %p410 = por %p408, %p409
      %s412 = sadd.s32 %s411, 1
      %p415 = scmp.eq.s32.totalorder %s28, 1
      %p416 = scmp.ne.s32.totalorder %s411, %s413
      %p417 = scmp.eq.s32.totalorder %s28, 0
      %p418 = por %p416, %p417
      %p419 = scmp.ne.s32.totalorder %s411, %s413
      %p420 = scmp.eq.s32.totalorder %s33, 1
      %p421 = por %p419, %p420
      %p422 = scmp.ne.s32.totalorder %s413, %s414
      %p423 = scmp.eq.s32.totalorder %s33, 0
      %p424 = por %p422, %p423
      %p425 = scmp.ne.s32.totalorder %s413, %s414
      %p426 = scmp.eq.s32.totalorder %s34, 1
      %p427 = por %p425, %p426
      %p429 = scmp.ne.s32.totalorder %s414, %s428
      %p430 = scmp.eq.s32.totalorder %s34, 0
      %p431 = por %p429, %p430
      %s433 = sadd.s32 %s432, 1
      %p436 = scmp.eq.s32.totalorder %s28, 1
      %p437 = scmp.ne.s32.totalorder %s432, %s434
      %p438 = scmp.eq.s32.totalorder %s28, 0
      %p439 = por %p437, %p438
      %p440 = scmp.ne.s32.totalorder %s432, %s434
      %p441 = scmp.eq.s32.totalorder %s33, 1
      %p442 = por %p440, %p441
      %p443 = scmp.ne.s32.totalorder %s434, %s435
      %p444 = scmp.eq.s32.totalorder %s33, 0
      %p445 = por %p443, %p444
      %p446 = scmp.ne.s32.totalorder %s434, %s435
      %p447 = scmp.eq.s32.totalorder %s34, 1
      %p448 = por %p446, %p447
      %p450 = scmp.ne.s32.totalorder %s435, %s449
      %p451 = scmp.eq.s32.totalorder %s34, 0
      %p452 = por %p450, %p451
      %s454 = sadd.s32 %s453, 1
      %p457 = scmp.eq.s32.totalorder %s28, 1
      %p458 = scmp.ne.s32.totalorder %s453, %s455
      %p459 = scmp.eq.s32.totalorder %s28, 0
      %p460 = por %p458, %p459
      %p461 = scmp.ne.s32.totalorder %s453, %s455
      %p462 = scmp.eq.s32.totalorder %s33, 1
      %p463 = por %p461, %p462
      %p464 = scmp.ne.s32.totalorder %s455, %s456
      %p465 = scmp.eq.s32.totalorder %s33, 0
      %p466 = por %p464, %p465
      %p467 = scmp.ne.s32.totalorder %s455, %s456
      %p468 = scmp.eq.s32.totalorder %s34, 1
      %p469 = por %p467, %p468
      %p471 = scmp.ne.s32.totalorder %s456, %s470
      %p472 = scmp.eq.s32.totalorder %s34, 0
      %p473 = por %p471, %p472
      %s475 = sadd.s32 %s474, 1
      %p478 = scmp.eq.s32.totalorder %s28, 1
      %p479 = scmp.ne.s32.totalorder %s474, %s476
      %p480 = scmp.eq.s32.totalorder %s28, 0
      %p481 = por %p479, %p480
      %p482 = scmp.ne.s32.totalorder %s474, %s476
      %p483 = scmp.eq.s32.totalorder %s33, 1
      %p484 = por %p482, %p483
      %p485 = scmp.ne.s32.totalorder %s476, %s477
      %p486 = scmp.eq.s32.totalorder %s33, 0
      %p487 = por %p485, %p486
      %p488 = scmp.ne.s32.totalorder %s476, %s477
      %p489 = scmp.eq.s32.totalorder %s34, 1
      %p490 = por %p488, %p489
      %p492 = scmp.ne.s32.totalorder %s477, %s491
      %p493 = scmp.eq.s32.totalorder %s34, 0
      %p494 = por %p492, %p493
      %s496 = sadd.s32 %s495, 1
      %p499 = scmp.eq.s32.totalorder %s28, 1
      %p500 = scmp.ne.s32.totalorder %s495, %s497
      %p501 = scmp.eq.s32.totalorder %s28, 0
      %p502 = por %p500, %p501
      %p503 = scmp.ne.s32.totalorder %s495, %s497
      %p504 = scmp.eq.s32.totalorder %s33, 1
      %p505 = por %p503, %p504
      %p506 = scmp.ne.s32.totalorder %s497, %s498
      %p507 = scmp.eq.s32.totalorder %s33, 0
      %p508 = por %p506, %p507
      %p509 = scmp.ne.s32.totalorder %s497, %s498
      %p510 = scmp.eq.s32.totalorder %s34, 1
      %p511 = por %p509, %p510
      %p513 = scmp.ne.s32.totalorder %s498, %s512
      %p514 = scmp.eq.s32.totalorder %s34, 0
      %p515 = por %p513, %p514
      %s517 = sadd.s32 %s516, 1
      %p520 = scmp.eq.s32.totalorder %s28, 1
      %p521 = scmp.ne.s32.totalorder %s516, %s518
      %p522 = scmp.eq.s32.totalorder %s28, 0
      %p523 = por %p521, %p522
      %p524 = scmp.ne.s32.totalorder %s516, %s518
      %p525 = scmp.eq.s32.totalorder %s33, 1
      %p526 = por %p524, %p525
      %p527 = scmp.ne.s32.totalorder %s518, %s519
      %p528 = scmp.eq.s32.totalorder %s33, 0
      %p529 = por %p527, %p528
      %p530 = scmp.ne.s32.totalorder %s518, %s519
      %p531 = scmp.eq.s32.totalorder %s34, 1
      %p532 = por %p530, %p531
      %p534 = scmp.ne.s32.totalorder %s519, %s533
      %p535 = scmp.eq.s32.totalorder %s34, 0
      %p536 = por %p534, %p535
      %p537 = scmp.le.s32.totalorder 1, %s28
      %p538 = scmp.lt.s32.totalorder %s28, 3
      %p539 = pnand %p537, %p538
      %p540 = pneg %p539
      // Predicated region
      $region9: #{_lambda_.1} parent=5 // pred_check
        _
      $region10: #{_lambda_.1} parent=5 // pred_check_branch
        %542 = sbr.rel (%p539) target = $region12
      $region11: #{_lambda_.1} parent=5 // pred_region
        %s543 = ssub.s32 %s28, 1
        // Predicated region
        $region13: #{_lambda_.1} parent=11 // pred_check
          %p544 = pneg %p49
        $region14: #{_lambda_.1} parent=11 // pred_check_branch
          %546 = sbr.rel (%p544) target = $region16
        $region15: #{_lambda_.1} parent=11 // pred_region
          _
        $region16: #{_lambda_.1} parent=11 // pred_fallthru
          _
        // Predicated region
        $region17: #{_lambda_.1} parent=11 // pred_check
          %p547 = pneg %p70
        $region18: #{_lambda_.1} parent=11 // pred_check_branch
          %549 = sbr.rel (%p547) target = $region20
        $region19: #{_lambda_.1} parent=11 // pred_region
          _
        $region20: #{_lambda_.1} parent=11 // pred_fallthru
          _
        // Predicated region
        $region21: #{_lambda_.1} parent=11 // pred_check
          %p550 = pneg %p91
        $region22: #{_lambda_.1} parent=11 // pred_check_branch
          %552 = sbr.rel (%p550) target = $region24
        $region23: #{_lambda_.1} parent=11 // pred_region
          _
        $region24: #{_lambda_.1} parent=11 // pred_fallthru
          _
        // Predicated region
        $region25: #{_lambda_.1} parent=11 // pred_check
          %p553 = pneg %p424
        $region26: #{_lambda_.1} parent=11 // pred_check_branch
          %555 = sbr.rel (%p553) target = $region28
        $region27: #{_lambda_.1} parent=11 // pred_region
          _
        $region28: #{_lambda_.1} parent=11 // pred_fallthru
          _
        // Predicated region
        $region29: #{_lambda_.1} parent=11 // pred_check
          %p556 = pneg %p445
        $region30: #{_lambda_.1} parent=11 // pred_check_branch
          %558 = sbr.rel (%p556) target = $region32
        $region31: #{_lambda_.1} parent=11 // pred_region
          _
        $region32: #{_lambda_.1} parent=11 // pred_fallthru
          _
        // Predicated region
        $region33: #{_lambda_.1} parent=11 // pred_check
          %p559 = pneg %p466
        $region34: #{_lambda_.1} parent=11 // pred_check_branch
          %561 = sbr.rel (%p559) target = $region36
        $region35: #{_lambda_.1} parent=11 // pred_region
          _
        $region36: #{_lambda_.1} parent=11 // pred_fallthru
          _
        // Predicated region
        $region37: #{_lambda_.1} parent=11 // pred_check
          %p562 = pneg %p487
        $region38: #{_lambda_.1} parent=11 // pred_check_branch
          %564 = sbr.rel (%p562) target = $region40
        $region39: #{_lambda_.1} parent=11 // pred_region
          _
        $region40: #{_lambda_.1} parent=11 // pred_fallthru
          _
      $region12: #{_lambda_.1} parent=5 // pred_fallthru
        _
      %p565 = scmp.lt.s32.totalorder %s28, 2
      // Predicated region
      $region41: #{_lambda_.1} parent=5 // pred_check
        %p566 = pneg %p565
      $region42: #{_lambda_.1} parent=5 // pred_check_branch
        %568 = sbr.rel (%p566) target = $region44
      $region43: #{_lambda_.1} parent=5 // pred_region
        // Predicated region
        $region45: #{_lambda_.1} parent=43 // pred_check
          %p569 = pneg %p111
        $region46: #{_lambda_.1} parent=43 // pred_check_branch
          %571 = sbr.rel (%p569) target = $region48
        $region47: #{_lambda_.1} parent=43 // pred_region
          %p572 = scmp.lt.s32.totalorder %s28, 1
          %s573 = scalar_select %p572, %s28, 1
          %s574 = scalar_lea.vmem %s3, %s573
        $region48: #{_lambda_.1} parent=43 // pred_fallthru
          _
        // Predicated region
        $region49: #{_lambda_.1} parent=43 // pred_check
          %p575 = pneg %p137
        $region50: #{_lambda_.1} parent=43 // pred_check_branch
          %577 = sbr.rel (%p575) target = $region52
        $region51: #{_lambda_.1} parent=43 // pred_region
          %p578 = scmp.lt.s32.totalorder %s28, 1
          %s579 = scalar_select %p578, %s28, 1
          %s580 = scalar_lea.vmem %s4, %s579
        $region52: #{_lambda_.1} parent=43 // pred_fallthru
          _
        // Predicated region
        $region53: #{_lambda_.1} parent=43 // pred_check
          %p581 = pneg %p163
        $region54: #{_lambda_.1} parent=43 // pred_check_branch
          %583 = sbr.rel (%p581) target = $region56
        $region55: #{_lambda_.1} parent=43 // pred_region
          %p584 = scmp.lt.s32.totalorder %s28, 1
          %s585 = scalar_select %p584, %s28, 1
          %s586 = smul.addr %s585, 48
          %s587 = smul.addr %s586, 4
          %s588 = scalar_lea.vmem %s5, %s587
        $region56: #{_lambda_.1} parent=43 // pred_fallthru
          _
        // Predicated region
        $region57: #{_lambda_.1} parent=43 // pred_check
          %p589 = pneg %p189
        $region58: #{_lambda_.1} parent=43 // pred_check_branch
          %591 = sbr.rel (%p589) target = $region60
        $region59: #{_lambda_.1} parent=43 // pred_region
          %p592 = scmp.lt.s32.totalorder %s28, 1
          %s593 = scalar_select %p592, %s28, 1
          %s594 = smul.addr %s593, 3
          %s595 = scalar_lea.vmem %s6, %s594
        $region60: #{_lambda_.1} parent=43 // pred_fallthru
          _
        // Predicated region
        $region61: #{_lambda_.1} parent=43 // pred_check
          %p596 = pneg %p215
        $region62: #{_lambda_.1} parent=43 // pred_check_branch
          %598 = sbr.rel (%p596) target = $region64
        $region63: #{_lambda_.1} parent=43 // pred_region
          %p599 = scmp.lt.s32.totalorder %s28, 1
          %s600 = scalar_select %p599, %s28, 1
          %s601 = smul.addr %s600, 16
          %s602 = smul.addr %s601, 4
          %s603 = scalar_lea.vmem %s7, %s602
        $region64: #{_lambda_.1} parent=43 // pred_fallthru
          _
        // Predicated region
        $region65: #{_lambda_.1} parent=43 // pred_check
          %p604 = pneg %p241
        $region66: #{_lambda_.1} parent=43 // pred_check_branch
          %606 = sbr.rel (%p604) target = $region68
        $region67: #{_lambda_.1} parent=43 // pred_region
          %p607 = scmp.lt.s32.totalorder %s28, 1
          %s608 = scalar_select %p607, %s28, 1
          %s609 = scalar_lea.vmem %s8, %s608
        $region68: #{_lambda_.1} parent=43 // pred_fallthru
          _
        // Predicated region
        $region69: #{_lambda_.1} parent=43 // pred_check
          %p610 = pneg %p267
        $region70: #{_lambda_.1} parent=43 // pred_check_branch
          %612 = sbr.rel (%p610) target = $region72
        $region71: #{_lambda_.1} parent=43 // pred_region
          %p613 = scmp.lt.s32.totalorder %s28, 1
          %s614 = scalar_select %p613, %s28, 1
          %s615 = scalar_lea.vmem %s9, %s614
        $region72: #{_lambda_.1} parent=43 // pred_fallthru
          _
        // Predicated region
        $region73: #{_lambda_.1} parent=43 // pred_check
          %p616 = pneg %p293
        $region74: #{_lambda_.1} parent=43 // pred_check_branch
          %618 = sbr.rel (%p616) target = $region76
        $region75: #{_lambda_.1} parent=43 // pred_region
          %p619 = scmp.lt.s32.totalorder %s28, 1
          %s620 = scalar_select %p619, %s28, 1
          %s621 = scalar_lea.vmem %s10, %s620
        $region76: #{_lambda_.1} parent=43 // pred_fallthru
          _
        // Predicated region
        $region77: #{_lambda_.1} parent=43 // pred_check
          %p622 = pneg %p319
        $region78: #{_lambda_.1} parent=43 // pred_check_branch
          %624 = sbr.rel (%p622) target = $region80
        $region79: #{_lambda_.1} parent=43 // pred_region
          %p625 = scmp.lt.s32.totalorder %s28, 1
          %s626 = scalar_select %p625, %s28, 1
          %s627 = smul.addr %s626, 64
          %s628 = smul.addr %s627, 4
          %s629 = scalar_lea.vmem %s11, %s628
        $region80: #{_lambda_.1} parent=43 // pred_fallthru
          _
        // Predicated region
        $region81: #{_lambda_.1} parent=43 // pred_check
          %p630 = pneg %p345
        $region82: #{_lambda_.1} parent=43 // pred_check_branch
          %632 = sbr.rel (%p630) target = $region84
        $region83: #{_lambda_.1} parent=43 // pred_region
          %p633 = scmp.lt.s32.totalorder %s28, 1
          %s634 = scalar_select %p633, %s28, 1
          %s635 = smul.addr %s634, 4
          %s636 = scalar_lea.vmem %s12, %s635
        $region84: #{_lambda_.1} parent=43 // pred_fallthru
          _
        // Predicated region
        $region85: #{_lambda_.1} parent=43 // pred_check
          %p637 = pneg %p371
        $region86: #{_lambda_.1} parent=43 // pred_check_branch
          %639 = sbr.rel (%p637) target = $region88
        $region87: #{_lambda_.1} parent=43 // pred_region
          %p640 = scmp.lt.s32.totalorder %s28, 1
          %s641 = scalar_select %p640, %s28, 1
          %s642 = smul.addr %s641, 64
          %s643 = smul.addr %s642, 4
          %s644 = scalar_lea.vmem %s13, %s643
        $region88: #{_lambda_.1} parent=43 // pred_fallthru
          _
        // Predicated region
        $region89: #{_lambda_.1} parent=43 // pred_check
          %p645 = pneg %p397
        $region90: #{_lambda_.1} parent=43 // pred_check_branch
          %647 = sbr.rel (%p645) target = $region92
        $region91: #{_lambda_.1} parent=43 // pred_region
          %p648 = scmp.lt.s32.totalorder %s28, 1
          %s649 = scalar_select %p648, %s28, 1
          %s650 = scalar_lea.vmem %s14, %s649
        $region92: #{_lambda_.1} parent=43 // pred_fallthru
          _
      $region44: #{_lambda_.1} parent=5 // pred_fallthru
        _
      %p651 = scmp.le.s32.totalorder 1, %s28
      %p652 = scmp.lt.s32.totalorder %s28, 3
      %p653 = pnand %p651, %p652
      %p654 = pneg %p653
      // Predicated region
      $region93: #{_lambda_.1} parent=5 // pred_check
        _
      $region94: #{_lambda_.1} parent=5 // pred_check_branch
        %656 = sbr.rel (%p653) target = $region96
      $region95: #{_lambda_.1} parent=5 // pred_region
        %s657 = ssub.s32 %s28, 1
        %p658 = pneg %p49
        %p659 = pneg %p46
        %p660 = pneg %p70
        %p661 = pneg %p67
        %p662 = pneg %p91
        %p663 = pneg %p88
        %p664 = scmp.lt.s32.totalorder %s33, 1
        %s665 = scalar_select %p664, %s33, 1
        %s666 = scalar_lea.vmem %s3, %s665
        %p667 = pneg %p117
        %p668 = pneg %p114
        %p669 = scmp.lt.s32.totalorder %s33, 1
        %s670 = scalar_select %p669, %s33, 1
        %s671 = scalar_lea.vmem %s4, %s670
        %p672 = pneg %p143
        %p673 = pneg %p140
        %p674 = scmp.lt.s32.totalorder %s33, 1
        %s675 = scalar_select %p674, %s33, 1
        %s676 = smul.addr %s675, 48
        %s677 = smul.addr %s676, 4
        %s678 = scalar_lea.vmem %s5, %s677
        %p679 = pneg %p169
        %p680 = pneg %p166
        %p681 = scmp.lt.s32.totalorder %s33, 1
        %s682 = scalar_select %p681, %s33, 1
        %s683 = smul.addr %s682, 3
        %s684 = scalar_lea.vmem %s6, %s683
        %p685 = pneg %p195
        %p686 = pneg %p192
        %p687 = scmp.lt.s32.totalorder %s33, 1
        %s688 = scalar_select %p687, %s33, 1
        %s689 = smul.addr %s688, 16
        %s690 = smul.addr %s689, 4
        %s691 = scalar_lea.vmem %s7, %s690
        %p692 = pneg %p221
        %p693 = pneg %p218
        %p694 = scmp.lt.s32.totalorder %s33, 1
        %s695 = scalar_select %p694, %s33, 1
        %s696 = scalar_lea.vmem %s8, %s695
        %p697 = pneg %p247
        %p698 = pneg %p244
        %p699 = scmp.lt.s32.totalorder %s33, 1
        %s700 = scalar_select %p699, %s33, 1
        %s701 = scalar_lea.vmem %s9, %s700
        %p702 = pneg %p273
        %p703 = pneg %p270
        %p704 = scmp.lt.s32.totalorder %s33, 1
        %s705 = scalar_select %p704, %s33, 1
        %s706 = scalar_lea.vmem %s10, %s705
        %p707 = pneg %p299
        %p708 = pneg %p296
        %p709 = scmp.lt.s32.totalorder %s33, 1
        %s710 = scalar_select %p709, %s33, 1
        %s711 = smul.addr %s710, 64
        %s712 = smul.addr %s711, 4
        %s713 = scalar_lea.vmem %s11, %s712
        %p714 = pneg %p325
        %p715 = pneg %p322
        %p716 = scmp.lt.s32.totalorder %s33, 1
        %s717 = scalar_select %p716, %s33, 1
        %s718 = smul.addr %s717, 4
        %s719 = scalar_lea.vmem %s12, %s718
        %p720 = pneg %p351
        %p721 = pneg %p348
        %p722 = scmp.lt.s32.totalorder %s33, 1
        %s723 = scalar_select %p722, %s33, 1
        %s724 = smul.addr %s723, 64
        %s725 = smul.addr %s724, 4
        %s726 = scalar_lea.vmem %s13, %s725
        %p727 = pneg %p377
        %p728 = pneg %p374
        %p729 = scmp.lt.s32.totalorder %s33, 1
        %s730 = scalar_select %p729, %s33, 1
        %s731 = scalar_lea.vmem %s14, %s730
        %p732 = pneg %p403
        %p733 = pneg %p400
        %p734 = pneg %p424
        %p735 = pneg %p421
        %p736 = pneg %p445
        %p737 = pneg %p442
        %p738 = pneg %p466
        %p739 = pneg %p463
        %p740 = pneg %p487
        %p741 = pneg %p484
        %p742 = pneg %p508
        %p743 = pneg %p505
        %p744 = pneg %p529
        %p745 = pneg %p526
        %p746 = scmp.lt.s32.totalorder %s33, 1
        %s747 = scalar_select %p746, %s33, 1
        %s748 = scalar_lea.vmem %s3, %s747
        %p749 = scmp.lt.s32.totalorder %s33, 1
        %s750 = scalar_select %p749, %s33, 1
        %s751 = scalar_lea.vmem %s4, %s750
        %p752 = scmp.lt.s32.totalorder %s33, 1
        %s753 = scalar_select %p752, %s33, 1
        %s754 = smul.addr %s753, 48
        %s755 = smul.addr %s754, 4
        %s756 = scalar_lea.vmem %s5, %s755
        %p757 = scmp.lt.s32.totalorder %s33, 1
        %s758 = scalar_select %p757, %s33, 1
        %s759 = smul.addr %s758, 3
        %s760 = scalar_lea.vmem %s6, %s759
        %p761 = scmp.lt.s32.totalorder %s33, 1
        %s762 = scalar_select %p761, %s33, 1
        %s763 = smul.addr %s762, 16
        %s764 = smul.addr %s763, 4
        %s765 = scalar_lea.vmem %s7, %s764
        %p766 = scmp.lt.s32.totalorder %s33, 1
        %s767 = scalar_select %p766, %s33, 1
        %s768 = scalar_lea.vmem %s8, %s767
        %p769 = scmp.lt.s32.totalorder %s33, 1
        %s770 = scalar_select %p769, %s33, 1
        %s771 = scalar_lea.vmem %s9, %s770
        %p772 = scmp.lt.s32.totalorder %s33, 1
        %s773 = scalar_select %p772, %s33, 1
        %s774 = scalar_lea.vmem %s10, %s773
        %p775 = scmp.lt.s32.totalorder %s33, 1
        %s776 = scalar_select %p775, %s33, 1
        %s777 = smul.addr %s776, 64
        %s778 = smul.addr %s777, 4
        %s779 = scalar_lea.vmem %s11, %s778
        %p780 = scmp.lt.s32.totalorder %s33, 1
        %s781 = scalar_select %p780, %s33, 1
        %s782 = smul.addr %s781, 4
        %s783 = scalar_lea.vmem %s12, %s782
        %p784 = scmp.lt.s32.totalorder %s33, 1
        %s785 = scalar_select %p784, %s33, 1
        %s786 = smul.addr %s785, 64
        %s787 = smul.addr %s786, 4
        %s788 = scalar_lea.vmem %s13, %s787
        %p789 = scmp.lt.s32.totalorder %s33, 1
        %s790 = scalar_select %p789, %s33, 1
        %s791 = scalar_lea.vmem %s14, %s790
        %p793 = scmp.eq.s32.totalorder %s33, 0
        // Predicated region
        $region97: #{_lambda_.1} parent=95 // pred_check
          %p794 = pneg %p793
        $region98: #{_lambda_.1} parent=95 // pred_check_branch
          %796 = sbr.rel (%p794) target = $region100
        $region99: #{_lambda_.1} parent=95 // pred_region
          %v797 = vld [vmem:[%s0] sm:$0xff]
          %v798 = vld [vmem:[%s0 + $0x8] sm:$0xff]
          %v799 = vld [vmem:[%s0 + $0x10] sm:$0xff]
          %v800 = vld [vmem:[%s0 + $0x18] sm:$0xff]
          %v801 = vld [vmem:[%s0 + $0x20] sm:$0xff]
          %v802 = vld [vmem:[%s0 + $0x28] sm:$0xff]
          %v803 = vld [vmem:[%s0 + $0x30] sm:$0xff]
          %v804 = vld [vmem:[%s0 + $0x38] sm:$0xff]
          %v805 = vld [vmem:[%s0 + $0x40] sm:$0xff]
          %v806 = vld [vmem:[%s0 + $0x48] sm:$0xff]
          %v807 = vld [vmem:[%s0 + $0x50] sm:$0xff]
          %v808 = vld [vmem:[%s0 + $0x58] sm:$0xff]
          %v809 = vpack.c.bf16 %v803, %v797
          %v810 = vpack.c.bf16 %v804, %v798
          %v811 = vpack.c.bf16 %v805, %v799
          %v812 = vpack.c.bf16 %v806, %v800
          %v813 = vpack.c.bf16 %v807, %v801
          %v814 = vpack.c.bf16 %v808, %v802
          %v815 = vld [vmem:[%s1] sm:$0xf]
          %v816 = vld [vmem:[%s1 + $0x4] sm:$0xf]
          %v817 = vld [vmem:[%s1 + $0x8] sm:$0xf]
          %v818 = vld [vmem:[%s1 + $0xc] sm:$0xf]
          %v819 = vld [vmem:[%s1 + $0x10] sm:$0xf]
          %v820 = vld [vmem:[%s1 + $0x14] sm:$0xf]
          %v821 = vld [vmem:[%s1 + $0x18] sm:$0xf]
          %v822 = vld [vmem:[%s1 + $0x1c] sm:$0xf]
          %v823 = vld [vmem:[%s1 + $0x20] sm:$0xf]
          %v824 = vld [vmem:[%s1 + $0x24] sm:$0xf]
          %v825 = vld [vmem:[%s1 + $0x28] sm:$0xf]
          %v826 = vld [vmem:[%s1 + $0x2c] sm:$0xf]
          %v827 = vld [vmem:[%s1 + $0x30] sm:$0xf]
          %v828 = vld [vmem:[%s1 + $0x34] sm:$0xf]
          %v829 = vld [vmem:[%s1 + $0x38] sm:$0xf]
          %v830 = vld [vmem:[%s1 + $0x3c] sm:$0xf]
          %v831 = vld [vmem:[%s1 + $0x40] sm:$0xf]
          %v832 = vld [vmem:[%s1 + $0x44] sm:$0xf]
          %v833 = vld [vmem:[%s1 + $0x48] sm:$0xf]
          %v834 = vld [vmem:[%s1 + $0x4c] sm:$0xf]
          %v835 = vld [vmem:[%s1 + $0x50] sm:$0xf]
          %v836 = vld [vmem:[%s1 + $0x54] sm:$0xf]
          %v837 = vld [vmem:[%s1 + $0x58] sm:$0xf]
          %v838 = vld [vmem:[%s1 + $0x5c] sm:$0xf]
          %v839 = vld [vmem:[%s1 + $0x60] sm:$0xf]
          %v840 = vld [vmem:[%s1 + $0x64] sm:$0xf]
          %v841 = vld [vmem:[%s1 + $0x68] sm:$0xf]
          %v842 = vld [vmem:[%s1 + $0x6c] sm:$0xf]
          %v843 = vld [vmem:[%s1 + $0x70] sm:$0xf]
          %v844 = vld [vmem:[%s1 + $0x74] sm:$0xf]
          %v845 = vld [vmem:[%s1 + $0x78] sm:$0xf]
          %v846 = vld [vmem:[%s1 + $0x7c] sm:$0xf]
          %v847 = vld [vmem:[%s1 + $0x80] sm:$0xf]
          %v848 = vld [vmem:[%s1 + $0x84] sm:$0xf]
          %v849 = vld [vmem:[%s1 + $0x88] sm:$0xf]
          %v850 = vld [vmem:[%s1 + $0x8c] sm:$0xf]
          %v851 = vld [vmem:[%s1 + $0x90] sm:$0xf]
          %v852 = vld [vmem:[%s1 + $0x94] sm:$0xf]
          %v853 = vld [vmem:[%s1 + $0x98] sm:$0xf]
          %v854 = vld [vmem:[%s1 + $0x9c] sm:$0xf]
          %v855 = vld [vmem:[%s1 + $0xa0] sm:$0xf]
          %v856 = vld [vmem:[%s1 + $0xa4] sm:$0xf]
          %v857 = vld [vmem:[%s1 + $0xa8] sm:$0xf]
          %v858 = vld [vmem:[%s1 + $0xac] sm:$0xf]
          %v859 = vld [vmem:[%s1 + $0xb0] sm:$0xf]
          %v860 = vld [vmem:[%s1 + $0xb4] sm:$0xf]
          %v861 = vld [vmem:[%s1 + $0xb8] sm:$0xf]
          %v862 = vld [vmem:[%s1 + $0xbc] sm:$0xf]
          %v863 = vld [vmem:[%s1 + $0xc0] sm:$0xf]
          %v864 = vld [vmem:[%s1 + $0xc4] sm:$0xf]
          %v865 = vld [vmem:[%s1 + $0xc8] sm:$0xf]
          %v866 = vld [vmem:[%s1 + $0xcc] sm:$0xf]
          %v867 = vld [vmem:[%s1 + $0xd0] sm:$0xf]
          %v868 = vld [vmem:[%s1 + $0xd4] sm:$0xf]
          %v869 = vld [vmem:[%s1 + $0xd8] sm:$0xf]
          %v870 = vld [vmem:[%s1 + $0xdc] sm:$0xf]
          %v871 = vld [vmem:[%s1 + $0xe0] sm:$0xf]
          %v872 = vld [vmem:[%s1 + $0xe4] sm:$0xf]
          %v873 = vld [vmem:[%s1 + $0xe8] sm:$0xf]
          %v874 = vld [vmem:[%s1 + $0xec] sm:$0xf]
          %v875 = vld [vmem:[%s1 + $0xf0] sm:$0xf]
          %v876 = vld [vmem:[%s1 + $0xf4] sm:$0xf]
          %v877 = vld [vmem:[%s1 + $0xf8] sm:$0xf]
          %v878 = vld [vmem:[%s1 + $0xfc] sm:$0xf]
          %v879 = vld [vmem:[%s1 + $0x100] sm:$0xf]
          %v880 = vld [vmem:[%s1 + $0x104] sm:$0xf]
          %v881 = vld [vmem:[%s1 + $0x108] sm:$0xf]
          %v882 = vld [vmem:[%s1 + $0x10c] sm:$0xf]
          %v883 = vld [vmem:[%s1 + $0x110] sm:$0xf]
          %v884 = vld [vmem:[%s1 + $0x114] sm:$0xf]
          %v885 = vld [vmem:[%s1 + $0x118] sm:$0xf]
          %v886 = vld [vmem:[%s1 + $0x11c] sm:$0xf]
          %v887 = vld [vmem:[%s1 + $0x120] sm:$0xf]
          %v888 = vld [vmem:[%s1 + $0x124] sm:$0xf]
          %v889 = vld [vmem:[%s1 + $0x128] sm:$0xf]
          %v890 = vld [vmem:[%s1 + $0x12c] sm:$0xf]
          %v891 = vld [vmem:[%s1 + $0x130] sm:$0xf]
          %v892 = vld [vmem:[%s1 + $0x134] sm:$0xf]
          %v893 = vld [vmem:[%s1 + $0x138] sm:$0xf]
          %v894 = vld [vmem:[%s1 + $0x13c] sm:$0xf]
          %v895 = vld [vmem:[%s1 + $0x140] sm:$0xf]
          %v896 = vld [vmem:[%s1 + $0x144] sm:$0xf]
          %v897 = vld [vmem:[%s1 + $0x148] sm:$0xf]
          %v898 = vld [vmem:[%s1 + $0x14c] sm:$0xf]
          %v899 = vld [vmem:[%s1 + $0x150] sm:$0xf]
          %v900 = vld [vmem:[%s1 + $0x154] sm:$0xf]
          %v901 = vld [vmem:[%s1 + $0x158] sm:$0xf]
          %v902 = vld [vmem:[%s1 + $0x15c] sm:$0xf]
          %v903 = vld [vmem:[%s1 + $0x160] sm:$0xf]
          %v904 = vld [vmem:[%s1 + $0x164] sm:$0xf]
          %v905 = vld [vmem:[%s1 + $0x168] sm:$0xf]
          %v906 = vld [vmem:[%s1 + $0x16c] sm:$0xf]
          %v907 = vld [vmem:[%s1 + $0x170] sm:$0xf]
          %v908 = vld [vmem:[%s1 + $0x174] sm:$0xf]
          %v909 = vld [vmem:[%s1 + $0x178] sm:$0xf]
          %v910 = vld [vmem:[%s1 + $0x17c] sm:$0xf]
          %v911 = vld [vmem:[%s2] sm:$0xff]
          %v912 = vld [vmem:[%s2 + $0x8] sm:$0xff]
          %v1009 = vunpack.c.l.b16 %v815
          %v1010 = vunpack.c.l.b16 %v816
          %v1011 = vunpack.c.l.b16 %v817
          %v1012 = vunpack.c.l.b16 %v818
          %v1013 = vunpack.c.l.b16 %v819
          %v1014 = vunpack.c.l.b16 %v820
          %v1015 = vunpack.c.l.b16 %v821
          %v1016 = vunpack.c.l.b16 %v822
          %v1017 = vunpack.c.l.b16 %v823
          %v1018 = vunpack.c.l.b16 %v824
          %v1019 = vunpack.c.l.b16 %v825
          %v1020 = vunpack.c.l.b16 %v826
          %v1021 = vunpack.c.l.b16 %v827
          %v1022 = vunpack.c.l.b16 %v828
          %v1023 = vunpack.c.l.b16 %v829
          %v1024 = vunpack.c.l.b16 %v830
          %v1025 = vunpack.c.l.b16 %v831
          %v1026 = vunpack.c.l.b16 %v832
          %v1027 = vunpack.c.l.b16 %v833
          %v1028 = vunpack.c.l.b16 %v834
          %v1029 = vunpack.c.l.b16 %v835
          %v1030 = vunpack.c.l.b16 %v836
          %v1031 = vunpack.c.l.b16 %v837
          %v1032 = vunpack.c.l.b16 %v838
          %v1033 = vunpack.c.l.b16 %v839
          %v1034 = vunpack.c.l.b16 %v840
          %v1035 = vunpack.c.l.b16 %v841
          %v1036 = vunpack.c.l.b16 %v842
          %v1037 = vunpack.c.l.b16 %v843
          %v1038 = vunpack.c.l.b16 %v844
          %v1039 = vunpack.c.l.b16 %v845
          %v1040 = vunpack.c.l.b16 %v846
          %v1041 = vunpack.c.l.b16 %v847
          %v1042 = vunpack.c.l.b16 %v848
          %v1043 = vunpack.c.l.b16 %v849
          %v1044 = vunpack.c.l.b16 %v850
          %v1045 = vunpack.c.l.b16 %v851
          %v1046 = vunpack.c.l.b16 %v852
          %v1047 = vunpack.c.l.b16 %v853
          %v1048 = vunpack.c.l.b16 %v854
          %v1049 = vunpack.c.l.b16 %v855
          %v1050 = vunpack.c.l.b16 %v856
          %v1051 = vunpack.c.l.b16 %v857
          %v1052 = vunpack.c.l.b16 %v858
          %v1053 = vunpack.c.l.b16 %v859
          %v1054 = vunpack.c.l.b16 %v860
          %v1055 = vunpack.c.l.b16 %v861
          %v1056 = vunpack.c.l.b16 %v862
          %v1057 = vunpack.c.l.b16 %v863
          %v1058 = vunpack.c.l.b16 %v864
          %v1059 = vunpack.c.l.b16 %v865
          %v1060 = vunpack.c.l.b16 %v866
          %v1061 = vunpack.c.l.b16 %v867
          %v1062 = vunpack.c.l.b16 %v868
          %v1063 = vunpack.c.l.b16 %v869
          %v1064 = vunpack.c.l.b16 %v870
          %v1065 = vunpack.c.l.b16 %v871
          %v1066 = vunpack.c.l.b16 %v872
          %v1067 = vunpack.c.l.b16 %v873
          %v1068 = vunpack.c.l.b16 %v874
          %v1069 = vunpack.c.l.b16 %v875
          %v1070 = vunpack.c.l.b16 %v876
          %v1071 = vunpack.c.l.b16 %v877
          %v1072 = vunpack.c.l.b16 %v878
          %v1073 = vunpack.c.l.b16 %v879
          %v1074 = vunpack.c.l.b16 %v880
          %v1075 = vunpack.c.l.b16 %v881
          %v1076 = vunpack.c.l.b16 %v882
          %v1077 = vunpack.c.l.b16 %v883
          %v1078 = vunpack.c.l.b16 %v884
          %v1079 = vunpack.c.l.b16 %v885
          %v1080 = vunpack.c.l.b16 %v886
          %v1081 = vunpack.c.l.b16 %v887
          %v1082 = vunpack.c.l.b16 %v888
          %v1083 = vunpack.c.l.b16 %v889
          %v1084 = vunpack.c.l.b16 %v890
          %v1085 = vunpack.c.l.b16 %v891
          %v1086 = vunpack.c.l.b16 %v892
          %v1087 = vunpack.c.l.b16 %v893
          %v1088 = vunpack.c.l.b16 %v894
          %v1089 = vunpack.c.l.b16 %v895
          %v1090 = vunpack.c.l.b16 %v896
          %v1091 = vunpack.c.l.b16 %v897
          %v1092 = vunpack.c.l.b16 %v898
          %v1093 = vunpack.c.l.b16 %v899
          %v1094 = vunpack.c.l.b16 %v900
          %v1095 = vunpack.c.l.b16 %v901
          %v1096 = vunpack.c.l.b16 %v902
          %v1097 = vunpack.c.l.b16 %v903
          %v1098 = vunpack.c.l.b16 %v904
          %v1099 = vunpack.c.l.b16 %v905
          %v1100 = vunpack.c.l.b16 %v906
          %v1101 = vunpack.c.l.b16 %v907
          %v1102 = vunpack.c.l.b16 %v908
          %v1103 = vunpack.c.l.b16 %v909
          %v1104 = vunpack.c.l.b16 %v910
          %v1105 = vpack.c.b16 %v1010, %v1009
          %v1106 = vpack.c.b16 %v1012, %v1011
          %v1107 = vpack.c.b16 %v1014, %v1013
          %v1108 = vpack.c.b16 %v1016, %v1015
          %v1109 = vpack.c.b16 %v1018, %v1017
          %v1110 = vpack.c.b16 %v1020, %v1019
          %v1111 = vpack.c.b16 %v1022, %v1021
          %v1112 = vpack.c.b16 %v1024, %v1023
          %v1113 = vpack.c.b16 %v1026, %v1025
          %v1114 = vpack.c.b16 %v1028, %v1027
          %v1115 = vpack.c.b16 %v1030, %v1029
          %v1116 = vpack.c.b16 %v1032, %v1031
          %v1117 = vpack.c.b16 %v1034, %v1033
          %v1118 = vpack.c.b16 %v1036, %v1035
          %v1119 = vpack.c.b16 %v1038, %v1037
          %v1120 = vpack.c.b16 %v1040, %v1039
          %v1121 = vpack.c.b16 %v1042, %v1041
          %v1122 = vpack.c.b16 %v1044, %v1043
          %v1123 = vpack.c.b16 %v1046, %v1045
          %v1124 = vpack.c.b16 %v1048, %v1047
          %v1125 = vpack.c.b16 %v1050, %v1049
          %v1126 = vpack.c.b16 %v1052, %v1051
          %v1127 = vpack.c.b16 %v1054, %v1053
          %v1128 = vpack.c.b16 %v1056, %v1055
          %v1129 = vpack.c.b16 %v1058, %v1057
          %v1130 = vpack.c.b16 %v1060, %v1059
          %v1131 = vpack.c.b16 %v1062, %v1061
          %v1132 = vpack.c.b16 %v1064, %v1063
          %v1133 = vpack.c.b16 %v1066, %v1065
          %v1134 = vpack.c.b16 %v1068, %v1067
          %v1135 = vpack.c.b16 %v1070, %v1069
          %v1136 = vpack.c.b16 %v1072, %v1071
          %v1137 = vpack.c.b16 %v1074, %v1073
          %v1138 = vpack.c.b16 %v1076, %v1075
          %v1139 = vpack.c.b16 %v1078, %v1077
          %v1140 = vpack.c.b16 %v1080, %v1079
          %v1141 = vpack.c.b16 %v1082, %v1081
          %v1142 = vpack.c.b16 %v1084, %v1083
          %v1143 = vpack.c.b16 %v1086, %v1085
          %v1144 = vpack.c.b16 %v1088, %v1087
          %v1145 = vpack.c.b16 %v1090, %v1089
          %v1146 = vpack.c.b16 %v1092, %v1091
          %v1147 = vpack.c.b16 %v1094, %v1093
          %v1148 = vpack.c.b16 %v1096, %v1095
          %v1149 = vpack.c.b16 %v1098, %v1097
          %v1150 = vpack.c.b16 %v1100, %v1099
          %v1151 = vpack.c.b16 %v1102, %v1101
          %v1152 = vpack.c.b16 %v1104, %v1103
          %1201 = vmatprep.subr.bf16.mxu0 0
          %1202 = vmatpush1.bf16.msra.mxu0 %v1112
          %1203 = vmatprep.subr.bf16.mxu0 0
          %1204 = vmatpush1.bf16.msra.mxu0 %v1111
          %1205 = vmatprep.subr.bf16.mxu0 0
          %1206 = vmatpush1.bf16.msra.mxu0 %v1110
          %1207 = vmatprep.subr.bf16.mxu0 0
          %1208 = vmatpush1.bf16.msra.mxu0 %v1109
          %1209 = vmatprep.subr.bf16.mxu0 0
          %1210 = vmatpush1.bf16.msra.mxu0 %v1108
          %1211 = vmatprep.subr.bf16.mxu0 0
          %1212 = vmatpush1.bf16.msra.mxu0 %v1107
          %1213 = vmatprep.subr.bf16.mxu0 0
          %1214 = vmatpush1.bf16.msra.mxu0 %v1106
          %1215 = vmatprep.subr.bf16.mxu0 0
          %1216 = vmatpush1.bf16.msra.mxu0 %v1105
          %1217 = vmatprep.subr.bf16.mxu0 0
          %1218 = vmatpush2.bf16.msra.mxu0 %v1120
          %1219 = vmatprep.subr.bf16.mxu0 0
          %1220 = vmatpush2.bf16.msra.mxu0 %v1119
          %1221 = vmatprep.subr.bf16.mxu0 0
          %1222 = vmatpush2.bf16.msra.mxu0 %v1118
          %1223 = vmatprep.subr.bf16.mxu0 0
          %1224 = vmatpush2.bf16.msra.mxu0 %v1117
          %1225 = vmatprep.subr.bf16.mxu0 0
          %1226 = vmatpush2.bf16.msra.mxu0 %v1116
          %1227 = vmatprep.subr.bf16.mxu0 0
          %1228 = vmatpush2.bf16.msra.mxu0 %v1115
          %1229 = vmatprep.subr.bf16.mxu0 0
          %1230 = vmatpush2.bf16.msra.mxu0 %v1114
          %1231 = vmatprep.subr.bf16.mxu0 0
          %1232 = vmatpush2.bf16.msra.mxu0 %v1113
          %1233 = vmatprep.mubr.bf16.mxu0 %v810
          %1234 = vmatmul.mubr.bf16.gmra.mxu0 %v809
          %v1235 = vpop.f32.mrf.mxu0
          %v1236 = vadd.f32 %v911, %v1235
          %v1237 = vpop.f32.mrf.mxu0
          %v1238 = vpop.f32.mrf.mxu0
          %v1239 = vadd.f32 %v912, %v1238
          %v1240 = vpop.f32.mrf.mxu0
          %1241 = vdwg.mxu0
          %1242 = vmatprep.subr.bf16.mxu0 0
          %1243 = vmatpush1.bf16.msra.mxu0 %v1128
          %1244 = vmatprep.subr.bf16.mxu0 0
          %1245 = vmatpush1.bf16.msra.mxu0 %v1127
          %1246 = vmatprep.subr.bf16.mxu0 0
          %1247 = vmatpush1.bf16.msra.mxu0 %v1126
          %1248 = vmatprep.subr.bf16.mxu0 0
          %1249 = vmatpush1.bf16.msra.mxu0 %v1125
          %1250 = vmatprep.subr.bf16.mxu0 0
          %1251 = vmatpush1.bf16.msra.mxu0 %v1124
          %1252 = vmatprep.subr.bf16.mxu0 0
          %1253 = vmatpush1.bf16.msra.mxu0 %v1123
          %1254 = vmatprep.subr.bf16.mxu0 0
          %1255 = vmatpush1.bf16.msra.mxu0 %v1122
          %1256 = vmatprep.subr.bf16.mxu0 0
          %1257 = vmatpush1.bf16.msra.mxu0 %v1121
          %1258 = vmatprep.subr.bf16.mxu0 0
          %1259 = vmatpush2.bf16.msra.mxu0 %v1136
          %1260 = vmatprep.subr.bf16.mxu0 0
          %1261 = vmatpush2.bf16.msra.mxu0 %v1135
          %1262 = vmatprep.subr.bf16.mxu0 0
          %1263 = vmatpush2.bf16.msra.mxu0 %v1134
          %1264 = vmatprep.subr.bf16.mxu0 0
          %1265 = vmatpush2.bf16.msra.mxu0 %v1133
          %1266 = vmatprep.subr.bf16.mxu0 0
          %1267 = vmatpush2.bf16.msra.mxu0 %v1132
          %1268 = vmatprep.subr.bf16.mxu0 0
          %1269 = vmatpush2.bf16.msra.mxu0 %v1131
          %1270 = vmatprep.subr.bf16.mxu0 0
          %1271 = vmatpush2.bf16.msra.mxu0 %v1130
          %1272 = vmatprep.subr.bf16.mxu0 0
          %1273 = vmatpush2.bf16.msra.mxu0 %v1129
          %1274 = vmatprep.mubr.bf16.mxu0 %v812
          %1275 = vmatmul.mubr.bf16.gmra.mxu0 %v811
          %v1276 = vpop.f32.mrf.mxu0
          %v1277 = vadd.f32 %v1236, %v1276
          %v1278 = vpop.f32.mrf.mxu0
          %v1279 = vpop.f32.mrf.mxu0
          %v1280 = vadd.f32 %v1239, %v1279
          %v1281 = vpop.f32.mrf.mxu0
          %1282 = vdwg.mxu0
          %1283 = vmatprep.subr.bf16.mxu0 0
          %1284 = vmatpush1.bf16.msra.mxu0 %v1144
          %1285 = vmatprep.subr.bf16.mxu0 0
          %1286 = vmatpush1.bf16.msra.mxu0 %v1143
          %1287 = vmatprep.subr.bf16.mxu0 0
          %1288 = vmatpush1.bf16.msra.mxu0 %v1142
          %1289 = vmatprep.subr.bf16.mxu0 0
          %1290 = vmatpush1.bf16.msra.mxu0 %v1141
          %1291 = vmatprep.subr.bf16.mxu0 0
          %1292 = vmatpush1.bf16.msra.mxu0 %v1140
          %1293 = vmatprep.subr.bf16.mxu0 0
          %1294 = vmatpush1.bf16.msra.mxu0 %v1139
          %1295 = vmatprep.subr.bf16.mxu0 0
          %1296 = vmatpush1.bf16.msra.mxu0 %v1138
          %1297 = vmatprep.subr.bf16.mxu0 0
          %1298 = vmatpush1.bf16.msra.mxu0 %v1137
          %1299 = vmatprep.subr.bf16.mxu0 0
          %1300 = vmatpush2.bf16.msra.mxu0 %v1152
          %1301 = vmatprep.subr.bf16.mxu0 0
          %1302 = vmatpush2.bf16.msra.mxu0 %v1151
          %1303 = vmatprep.subr.bf16.mxu0 0
          %1304 = vmatpush2.bf16.msra.mxu0 %v1150
          %1305 = vmatprep.subr.bf16.mxu0 0
          %1306 = vmatpush2.bf16.msra.mxu0 %v1149
          %1307 = vmatprep.subr.bf16.mxu0 0
          %1308 = vmatpush2.bf16.msra.mxu0 %v1148
          %1309 = vmatprep.subr.bf16.mxu0 0
          %1310 = vmatpush2.bf16.msra.mxu0 %v1147
          %1311 = vmatprep.subr.bf16.mxu0 0
          %1312 = vmatpush2.bf16.msra.mxu0 %v1146
          %1313 = vmatprep.subr.bf16.mxu0 0
          %1314 = vmatpush2.bf16.msra.mxu0 %v1145
          %1315 = vmatprep.mubr.bf16.mxu0 %v814
          %1316 = vmatmul.mubr.bf16.gmra.mxu0 %v813
          %v1317 = vpop.f32.mrf.mxu0
          %v1318 = vadd.f32 %v1277, %v1317
          %v1319 = vpop.f32.mrf.mxu0
          %v1320 = vpop.f32.mrf.mxu0
          %v1321 = vadd.f32 %v1280, %v1320
          %v1322 = vpop.f32.mrf.mxu0
          %1323 = vdwg.mxu0
          %1324 = vst [vmem:[#allocation2] sm:$0xff] %v1318
          %1325 = vst [vmem:[#allocation2 + $0x8] sm:$0xff] %v1321
        $region100: #{_lambda_.1} parent=95 // pred_fallthru
          _
        %v1326 = vld [vmem:[#allocation2] sm:$0xff]
        %v1327 = vld [vmem:[#allocation2 + $0x8] sm:$0xff]
        %v1328 = vld [vmem:[%s748] sm:$0x1]
        %v1329 = vld [vmem:[%s751] sm:$0x1]
        %1330 = vadd.xlane.f32.xlu0 %v1326
        %v1331 = vpop.xlane.xlu0 %1330
        %1332 = vadd.xlane.f32.xlu0 %v1327
        %v1333 = vpop.xlane.xlu0 %1332
        %v1334 = vrcp.pop 128.0
        %v1335 = vmul.f32 %v1331, %v1334
        %v1336 = vmul.f32 %v1333, %v1334
        %v1337 = vsub.f32 %v1326, %v1335
        %v1338 = vsub.f32 %v1327, %v1336
        %v1339 = vmul.f32 %v1337, %v1337
        %v1340 = vmul.f32 %v1338, %v1338
        %1341 = vadd.xlane.f32.xlu0 %v1339
        %v1342 = vpop.xlane.xlu0 %1341
        %1343 = vadd.xlane.f32.xlu0 %v1340
        %v1344 = vpop.xlane.xlu0 %1343
        %v1345 = vmul.f32 %v1342, %v1334
        %v1346 = vmul.f32 %v1344, %v1334
        %v1347 = vadd.f32 %v1345, 1e-06
        %v1348 = vadd.f32 %v1346, 1e-06
        %v1349 = vrsqrt.pop %v1347
        %v1350 = vrsqrt.pop %v1348
        %v1351 = vmul.f32 %v1337, %v1349
        %v1352 = vmul.f32 %v1338, %v1350
        %v1354 = vlaneseq
        %v1355 = vshrl.u32 %v1354, 7
        %v1356 = vsub.s32 0, %v1355
        %v1357 = vrot.slane %v1328, %v1356
        %v1359 = vmul.f32 %v1351, %v1357
        %v1360 = vmul.f32 %v1352, %v1357
        %v1362 = vlaneseq
        %v1363 = vshrl.u32 %v1362, 7
        %v1364 = vsub.s32 0, %v1363
        %v1365 = vrot.slane %v1329, %v1364
        %v1367 = vadd.f32 %v1359, %v1365
        %v1368 = vadd.f32 %v1360, %v1365
        %v1369 = vpack.c.bf16 %v1368, %v1367
        %v1370 = vld [vmem:[%s756] sm:$0xff]
        %v1371 = vld [vmem:[%s756 + $0x8] sm:$0xf]
        %v1372 = vld [vmem:[%s756 + $0xc] sm:$0xff]
        %v1373 = vld [vmem:[%s756 + $0x14] sm:$0xf]
        %v1374 = vld [vmem:[%s756 + $0x18] sm:$0xff]
        %v1375 = vld [vmem:[%s756 + $0x20] sm:$0xf]
        %v1376 = vld [vmem:[%s756 + $0x24] sm:$0xff]
        %v1377 = vld [vmem:[%s756 + $0x2c] sm:$0xf]
        %v1378 = vld [vmem:[%s756 + $0x30] sm:$0xff]
        %v1379 = vld [vmem:[%s756 + $0x38] sm:$0xf]
        %v1380 = vld [vmem:[%s756 + $0x3c] sm:$0xff]
        %v1381 = vld [vmem:[%s756 + $0x44] sm:$0xf]
        %v1382 = vld [vmem:[%s756 + $0x48] sm:$0xff]
        %v1383 = vld [vmem:[%s756 + $0x50] sm:$0xf]
        %v1384 = vld [vmem:[%s756 + $0x54] sm:$0xff]
        %v1385 = vld [vmem:[%s756 + $0x5c] sm:$0xf]
        %v1386 = vld [vmem:[%s756 + $0x60] sm:$0xff]
        %v1387 = vld [vmem:[%s756 + $0x68] sm:$0xf]
        %v1388 = vld [vmem:[%s756 + $0x6c] sm:$0xff]
        %v1389 = vld [vmem:[%s756 + $0x74] sm:$0xf]
        %v1390 = vld [vmem:[%s756 + $0x78] sm:$0xff]
        %v1391 = vld [vmem:[%s756 + $0x80] sm:$0xf]
        %v1392 = vld [vmem:[%s756 + $0x84] sm:$0xff]
        %v1393 = vld [vmem:[%s756 + $0x8c] sm:$0xf]
        %v1394 = vld [vmem:[%s756 + $0x90] sm:$0xff]
        %v1395 = vld [vmem:[%s756 + $0x98] sm:$0xf]
        %v1396 = vld [vmem:[%s756 + $0x9c] sm:$0xff]
        %v1397 = vld [vmem:[%s756 + $0xa4] sm:$0xf]
        %v1398 = vld [vmem:[%s756 + $0xa8] sm:$0xff]
        %v1399 = vld [vmem:[%s756 + $0xb0] sm:$0xf]
        %v1400 = vld [vmem:[%s756 + $0xb4] sm:$0xff]
        %v1401 = vld [vmem:[%s756 + $0xbc] sm:$0xf]
        %v1402 = vld [vmem:[%s760] sm:$0x7]
        %v1404 = vlaneseq
        %v1405 = vshrl.u32 %v1404, 7
        %v1406 = vsub.s32 0, %v1405
        %v1407 = vrot.slane %v1402, %v1406
        %v1408 = vlaneseq
        %v1409 = vshrl.u32 %v1408, 7
        %v1410 = vsub.s32 1, %v1409
        %v1411 = vrot.slane %v1402, %v1410
        %v1412 = vlaneseq
        %v1413 = vshrl.u32 %v1412, 7
        %v1414 = vsub.s32 2, %v1413
        %v1415 = vrot.slane %v1402, %v1414
        %v1451 = vunpack.c.l.b16 %v1370
        %v1452 = vunpack.c.h.b16 %v1370
        %v1453 = vunpack.c.l.b16 %v1371
        %v1454 = vunpack.c.l.b16 %v1372
        %v1455 = vunpack.c.h.b16 %v1372
        %v1456 = vunpack.c.l.b16 %v1373
        %v1457 = vunpack.c.l.b16 %v1374
        %v1458 = vunpack.c.h.b16 %v1374
        %v1459 = vunpack.c.l.b16 %v1375
        %v1460 = vunpack.c.l.b16 %v1376
        %v1461 = vunpack.c.h.b16 %v1376
        %v1462 = vunpack.c.l.b16 %v1377
        %v1463 = vunpack.c.l.b16 %v1378
        %v1464 = vunpack.c.h.b16 %v1378
        %v1465 = vunpack.c.l.b16 %v1379
        %v1466 = vunpack.c.l.b16 %v1380
        %v1467 = vunpack.c.h.b16 %v1380
        %v1468 = vunpack.c.l.b16 %v1381
        %v1469 = vunpack.c.l.b16 %v1382
        %v1470 = vunpack.c.h.b16 %v1382
        %v1471 = vunpack.c.l.b16 %v1383
        %v1472 = vunpack.c.l.b16 %v1384
        %v1473 = vunpack.c.h.b16 %v1384
        %v1474 = vunpack.c.l.b16 %v1385
        %v1475 = vunpack.c.l.b16 %v1386
        %v1476 = vunpack.c.h.b16 %v1386
        %v1477 = vunpack.c.l.b16 %v1387
        %v1478 = vunpack.c.l.b16 %v1388
        %v1479 = vunpack.c.h.b16 %v1388
        %v1480 = vunpack.c.l.b16 %v1389
        %v1481 = vunpack.c.l.b16 %v1390
        %v1482 = vunpack.c.h.b16 %v1390
        %v1483 = vunpack.c.l.b16 %v1391
        %v1484 = vunpack.c.l.b16 %v1392
        %v1485 = vunpack.c.h.b16 %v1392
        %v1486 = vunpack.c.l.b16 %v1393
        %v1487 = vunpack.c.l.b16 %v1394
        %v1488 = vunpack.c.h.b16 %v1394
        %v1489 = vunpack.c.l.b16 %v1395
        %v1490 = vunpack.c.l.b16 %v1396
        %v1491 = vunpack.c.h.b16 %v1396
        %v1492 = vunpack.c.l.b16 %v1397
        %v1493 = vunpack.c.l.b16 %v1398
        %v1494 = vunpack.c.h.b16 %v1398
        %v1495 = vunpack.c.l.b16 %v1399
        %v1496 = vunpack.c.l.b16 %v1400
        %v1497 = vunpack.c.h.b16 %v1400
        %v1498 = vunpack.c.l.b16 %v1401
        %v1499 = vpack.c.b16 %v1454, %v1451
        %v1500 = vpack.c.b16 %v1455, %v1452
        %v1501 = vpack.c.b16 %v1456, %v1453
        %v1502 = vpack.c.b16 %v1460, %v1457
        %v1503 = vpack.c.b16 %v1461, %v1458
        %v1504 = vpack.c.b16 %v1462, %v1459
        %v1505 = vpack.c.b16 %v1466, %v1463
        %v1506 = vpack.c.b16 %v1467, %v1464
        %v1507 = vpack.c.b16 %v1468, %v1465
        %v1508 = vpack.c.b16 %v1472, %v1469
        %v1509 = vpack.c.b16 %v1473, %v1470
        %v1510 = vpack.c.b16 %v1474, %v1471
        %v1511 = vpack.c.b16 %v1478, %v1475
        %v1512 = vpack.c.b16 %v1479, %v1476
        %v1513 = vpack.c.b16 %v1480, %v1477
        %v1514 = vpack.c.b16 %v1484, %v1481
        %v1515 = vpack.c.b16 %v1485, %v1482
        %v1516 = vpack.c.b16 %v1486, %v1483
        %v1517 = vpack.c.b16 %v1490, %v1487
        %v1518 = vpack.c.b16 %v1491, %v1488
        %v1519 = vpack.c.b16 %v1492, %v1489
        %v1520 = vpack.c.b16 %v1496, %v1493
        %v1521 = vpack.c.b16 %v1497, %v1494
        %v1522 = vpack.c.b16 %v1498, %v1495
        %1547 = vmatprep.subr.bf16.mxu0 %v1521
        %1548 = vmatpush1.bf16.msra.mxu0 %v1520
        %1549 = vmatprep.subr.bf16.mxu0 %v1518
        %1550 = vmatpush1.bf16.msra.mxu0 %v1517
        %1551 = vmatprep.subr.bf16.mxu0 %v1515
        %1552 = vmatpush1.bf16.msra.mxu0 %v1514
        %1553 = vmatprep.subr.bf16.mxu0 %v1512
        %1554 = vmatpush1.bf16.msra.mxu0 %v1511
        %1555 = vmatprep.subr.bf16.mxu0 %v1509
        %1556 = vmatpush1.bf16.msra.mxu0 %v1508
        %1557 = vmatprep.subr.bf16.mxu0 %v1506
        %1558 = vmatpush1.bf16.msra.mxu0 %v1505
        %1559 = vmatprep.subr.bf16.mxu0 %v1503
        %1560 = vmatpush1.bf16.msra.mxu0 %v1502
        %1561 = vmatprep.subr.bf16.mxu0 %v1500
        %1562 = vmatpush1.bf16.msra.mxu0 %v1499
        %1563 = vmatprep.subr.bf16.mxu0 0
        %1564 = vmatpush2.bf16.msra.mxu0 0
        %1565 = vmatprep.subr.bf16.mxu0 0
        %1566 = vmatpush2.bf16.msra.mxu0 0
        %1567 = vmatprep.subr.bf16.mxu0 0
        %1568 = vmatpush2.bf16.msra.mxu0 0
        %1569 = vmatprep.subr.bf16.mxu0 0
        %1570 = vmatpush2.bf16.msra.mxu0 0
        %1571 = vmatprep.subr.bf16.mxu0 0
        %1572 = vmatpush2.bf16.msra.mxu0 0
        %1573 = vmatprep.subr.bf16.mxu0 0
        %1574 = vmatpush2.bf16.msra.mxu0 0
        %1575 = vmatprep.subr.bf16.mxu0 0
        %1576 = vmatpush2.bf16.msra.mxu0 0
        %1577 = vmatprep.subr.bf16.mxu0 0
        %1578 = vmatpush2.bf16.msra.mxu0 0
        %1579 = vmatprep.mubr.bf16.mxu0 0
        %1580 = vmatmul.mubr.bf16.gmra.mxu0 %v1369
        %v1581 = vpop.f32.mrf.mxu0
        %v1582 = vadd.f32 %v1407, %v1581
        %v1583 = vpop.f32.mrf.mxu0
        %v1584 = vadd.f32 %v1411, %v1583
        %v1585 = vpop.f32.mrf.mxu0
        %v1586 = vadd.f32 %v1407, %v1585
        %v1587 = vpop.f32.mrf.mxu0
        %v1588 = vadd.f32 %v1411, %v1587
        %1589 = vdwg.mxu0
        %1590 = vmatprep.subr.bf16.mxu0 0
        %1591 = vmatpush1.bf16.msra.mxu0 %v1522
        %1592 = vmatprep.subr.bf16.mxu0 0
        %1593 = vmatpush1.bf16.msra.mxu0 %v1519
        %1594 = vmatprep.subr.bf16.mxu0 0
        %1595 = vmatpush1.bf16.msra.mxu0 %v1516
        %1596 = vmatprep.subr.bf16.mxu0 0
        %1597 = vmatpush1.bf16.msra.mxu0 %v1513
        %1598 = vmatprep.subr.bf16.mxu0 0
        %1599 = vmatpush1.bf16.msra.mxu0 %v1510
        %1600 = vmatprep.subr.bf16.mxu0 0
        %1601 = vmatpush1.bf16.msra.mxu0 %v1507
        %1602 = vmatprep.subr.bf16.mxu0 0
        %1603 = vmatpush1.bf16.msra.mxu0 %v1504
        %1604 = vmatprep.subr.bf16.mxu0 0
        %1605 = vmatpush1.bf16.msra.mxu0 %v1501
        %1606 = vmatprep.subr.bf16.mxu0 0
        %1607 = vmatpush2.bf16.msra.mxu0 0
        %1608 = vmatprep.subr.bf16.mxu0 0
        %1609 = vmatpush2.bf16.msra.mxu0 0
        %1610 = vmatprep.subr.bf16.mxu0 0
        %1611 = vmatpush2.bf16.msra.mxu0 0
        %1612 = vmatprep.subr.bf16.mxu0 0
        %1613 = vmatpush2.bf16.msra.mxu0 0
        %1614 = vmatprep.subr.bf16.mxu0 0
        %1615 = vmatpush2.bf16.msra.mxu0 0
        %1616 = vmatprep.subr.bf16.mxu0 0
        %1617 = vmatpush2.bf16.msra.mxu0 0
        %1618 = vmatprep.subr.bf16.mxu0 0
        %1619 = vmatpush2.bf16.msra.mxu0 0
        %1620 = vmatprep.subr.bf16.mxu0 0
        %1621 = vmatpush2.bf16.msra.mxu0 0
        %1622 = vmatprep.mubr.bf16.mxu0 0
        %1623 = vmatmul.mubr.bf16.gmra.mxu0 %v1369
        %v1624 = vpop.f32.mrf.mxu0
        %v1625 = vadd.f32 %v1415, %v1624
        %v1626 = vpop.f32.mrf.mxu0
        %v1627 = vpop.f32.mrf.mxu0
        %v1628 = vadd.f32 %v1415, %v1627
        %v1629 = vpop.f32.mrf.mxu0
        %1630 = vdwg.mxu0
        %v1631 = vmul.f32 %v1582, 0.125
        %v1632 = vmul.f32 %v1586, 0.125
        %v1633 = vlaneseq
        %v1634 = vand.u32 %v1633, 127
        %vm1635 = vcmp.lt.s32.totalorder %v1634, 5
        %v1636 = vsel %vm1635, 0.0, -1e+30
        %v1637 = vpack.c.bf16 %v1631, %v1631
        %v1638 = vpack.c.bf16 %v1632, %v1632
        %v1639 = vpack.c.bf16 %v1584, %v1584
        %v1640 = vpack.c.bf16 %v1588, %v1588
        %v1641 = vpack.c.bf16 %v1625, %v1625
        %v1642 = vpack.c.bf16 %v1628, %v1628
        %vm1643 = vcmask 523264
        %v1645 = vsel %vm1643, %v1637, 0
        %v1648 = vsel %vm1643, %v1639, 0
        %1650 = vmatprep.subr.bf16.mxu0 0
        %1651 = vmatpush1.bf16.xpose.msra.mxu0 0
        %1652 = vmatprep.subr.bf16.mxu0 0
        %1653 = vmatpush1.bf16.xpose.msra.mxu0 0
        %1654 = vmatprep.subr.bf16.mxu0 0
        %1655 = vmatpush1.bf16.xpose.msra.mxu0 0
        %1656 = vmatprep.subr.bf16.mxu0 0
        %1657 = vmatpush1.bf16.xpose.msra.mxu0 0
        %1658 = vmatprep.subr.bf16.mxu0 0
        %1659 = vmatpush1.bf16.xpose.msra.mxu0 0
        %1660 = vmatprep.subr.bf16.mxu0 0
        %1661 = vmatpush1.bf16.xpose.msra.mxu0 0
        %1662 = vmatprep.subr.bf16.mxu0 0
        %1663 = vmatpush1.bf16.xpose.msra.mxu0 0
        %1664 = vmatprep.subr.bf16.mxu0 0
        %1665 = vmatpush1.bf16.xpose.msra.mxu0 %v1648
        %1666 = vmatprep.subr.bf16.mxu0 0
        %1667 = vmatpush2.bf16.xpose.msra.mxu0 0
        %1668 = vmatprep.subr.bf16.mxu0 0
        %1669 = vmatpush2.bf16.xpose.msra.mxu0 0
        %1670 = vmatprep.subr.bf16.mxu0 0
        %1671 = vmatpush2.bf16.xpose.msra.mxu0 0
        %1672 = vmatprep.subr.bf16.mxu0 0
        %1673 = vmatpush2.bf16.xpose.msra.mxu0 0
        %1674 = vmatprep.subr.bf16.mxu0 0
        %1675 = vmatpush2.bf16.xpose.msra.mxu0 0
        %1676 = vmatprep.subr.bf16.mxu0 0
        %1677 = vmatpush2.bf16.xpose.msra.mxu0 0
        %1678 = vmatprep.subr.bf16.mxu0 0
        %1679 = vmatpush2.bf16.xpose.msra.mxu0 0
        %1680 = vmatprep.subr.bf16.mxu0 0
        %1681 = vmatpush2.bf16.xpose.msra.mxu0 0
        %1682 = vmatprep.mubr.bf16.mxu0 0
        %1683 = vmatmul.mubr.bf16.gmra.mxu0 %v1645
        %v1684 = vpop.f32.mrf.mxu0
        %v1685 = vadd.f32 %v1636, %v1684
        %v1686 = vpop.f32.mrf.mxu0
        %v1687 = vpop.f32.mrf.mxu0
        %v1688 = vpop.f32.mrf.mxu0
        %1689 = vdwg.mxu0
        %v1691 = vsel %vm1643, %v1638, 0
        %v1694 = vsel %vm1643, %v1640, 0
        %1696 = vmatprep.subr.bf16.mxu0 0
        %1697 = vmatpush1.bf16.xpose.msra.mxu0 0
        %1698 = vmatprep.subr.bf16.mxu0 0
        %1699 = vmatpush1.bf16.xpose.msra.mxu0 0
        %1700 = vmatprep.subr.bf16.mxu0 0
        %1701 = vmatpush1.bf16.xpose.msra.mxu0 0
        %1702 = vmatprep.subr.bf16.mxu0 0
        %1703 = vmatpush1.bf16.xpose.msra.mxu0 0
        %1704 = vmatprep.subr.bf16.mxu0 0
        %1705 = vmatpush1.bf16.xpose.msra.mxu0 0
        %1706 = vmatprep.subr.bf16.mxu0 0
        %1707 = vmatpush1.bf16.xpose.msra.mxu0 0
        %1708 = vmatprep.subr.bf16.mxu0 0
        %1709 = vmatpush1.bf16.xpose.msra.mxu0 0
        %1710 = vmatprep.subr.bf16.mxu0 0
        %1711 = vmatpush1.bf16.xpose.msra.mxu0 %v1694
        %1712 = vmatprep.subr.bf16.mxu0 0
        %1713 = vmatpush2.bf16.xpose.msra.mxu0 0
        %1714 = vmatprep.subr.bf16.mxu0 0
        %1715 = vmatpush2.bf16.xpose.msra.mxu0 0
        %1716 = vmatprep.subr.bf16.mxu0 0
        %1717 = vmatpush2.bf16.xpose.msra.mxu0 0
        %1718 = vmatprep.subr.bf16.mxu0 0
        %1719 = vmatpush2.bf16.xpose.msra.mxu0 0
        %1720 = vmatprep.subr.bf16.mxu0 0
        %1721 = vmatpush2.bf16.xpose.msra.mxu0 0
        %1722 = vmatprep.subr.bf16.mxu0 0
        %1723 = vmatpush2.bf16.xpose.msra.mxu0 0
        %1724 = vmatprep.subr.bf16.mxu0 0
        %1725 = vmatpush2.bf16.xpose.msra.mxu0 0
        %1726 = vmatprep.subr.bf16.mxu0 0
        %1727 = vmatpush2.bf16.xpose.msra.mxu0 0
        %1728 = vmatprep.mubr.bf16.mxu0 0
        %1729 = vmatmul.mubr.bf16.gmra.mxu0 %v1691
        %v1730 = vpop.f32.mrf.mxu0
        %v1731 = vadd.f32 %v1636, %v1730
        %v1732 = vpop.f32.mrf.mxu0
        %v1733 = vpop.f32.mrf.mxu0
        %v1734 = vpop.f32.mrf.mxu0
        %1735 = vdwg.mxu0
        %vm1736 = vcmask 64512
        %v1737 = vsel %vm1736, %v1685, -inf
        %1738 = vmax.xlane.f32.xlu0 %v1737
        %v1739 = vpop.xlane.xlu0 %1738
        %v1740 = vsel %vm1736, %v1731, -inf
        %1741 = vmax.xlane.f32.xlu0 %v1740
        %v1742 = vpop.xlane.xlu0 %1741
        %v1743 = vsub.f32 %v1685, %v1739
        %v1744 = vsub.f32 %v1731, %v1742
        %v1745 = vmul.f32 %v1743, 1.442695
        %v1746 = vpow.pop %v1745
        %v1747 = vmul.f32 %v1744, 1.442695
        %v1748 = vpow.pop %v1747
        %v1749 = vsel %vm1736, %v1746, 0.0
        %1750 = vadd.xlane.f32.xlu0 %v1749
        %v1751 = vpop.xlane.xlu0 %1750
        %v1752 = vsel %vm1736, %v1748, 0.0
        %1753 = vadd.xlane.f32.xlu0 %v1752
        %v1754 = vpop.xlane.xlu0 %1753
        %v1755 = vrcp.pop %v1751
        %v1756 = vrcp.pop %v1754
        %v1757 = vmul.f32 %v1746, %v1755
        %v1758 = vmul.f32 %v1748, %v1756
        %v1759 = vpack.c.bf16 %v1757, %v1757
        %v1760 = vpack.c.bf16 %v1758, %v1758
        %v1762 = vsel %vm1736, %v1759, 0
        %vm1764 = vcmask 1043456
        %v1766 = vsel %vm1764, %v1641, 0
        %1768 = vmatprep.subr.bf16.mxu0 0
        %1769 = vmatpush1.bf16.msra.mxu0 0
        %1770 = vmatprep.subr.bf16.mxu0 0
        %1771 = vmatpush1.bf16.msra.mxu0 0
        %1772 = vmatprep.subr.bf16.mxu0 0
        %1773 = vmatpush1.bf16.msra.mxu0 0
        %1774 = vmatprep.subr.bf16.mxu0 0
        %1775 = vmatpush1.bf16.msra.mxu0 0
        %1776 = vmatprep.subr.bf16.mxu0 0
        %1777 = vmatpush1.bf16.msra.mxu0 0
        %1778 = vmatprep.subr.bf16.mxu0 0
        %1779 = vmatpush1.bf16.msra.mxu0 0
        %1780 = vmatprep.subr.bf16.mxu0 0
        %1781 = vmatpush1.bf16.msra.mxu0 0
        %1782 = vmatprep.subr.bf16.mxu0 0
        %1783 = vmatpush1.bf16.msra.mxu0 %v1766
        %1784 = vmatprep.subr.bf16.mxu0 0
        %1785 = vmatpush2.bf16.msra.mxu0 0
        %1786 = vmatprep.subr.bf16.mxu0 0
        %1787 = vmatpush2.bf16.msra.mxu0 0
        %1788 = vmatprep.subr.bf16.mxu0 0
        %1789 = vmatpush2.bf16.msra.mxu0 0
        %1790 = vmatprep.subr.bf16.mxu0 0
        %1791 = vmatpush2.bf16.msra.mxu0 0
        %1792 = vmatprep.subr.bf16.mxu0 0
        %1793 = vmatpush2.bf16.msra.mxu0 0
        %1794 = vmatprep.subr.bf16.mxu0 0
        %1795 = vmatpush2.bf16.msra.mxu0 0
        %1796 = vmatprep.subr.bf16.mxu0 0
        %1797 = vmatpush2.bf16.msra.mxu0 0
        %1798 = vmatprep.subr.bf16.mxu0 0
        %1799 = vmatpush2.bf16.msra.mxu0 0
        %1800 = vmatprep.mubr.bf16.mxu0 0
        %1801 = vmatmul.mubr.bf16.gmra.mxu0 %v1762
        %v1802 = vpop.f32.mrf.mxu0
        %v1803 = vadd.f32 0.0, %v1802
        %v1804 = vpop.f32.mrf.mxu0
        %v1805 = vpop.f32.mrf.mxu0
        %v1806 = vpop.f32.mrf.mxu0
        %1807 = vdwg.mxu0
        %v1809 = vsel %vm1736, %v1760, 0
        %v1812 = vsel %vm1764, %v1642, 0
        %1814 = vmatprep.subr.bf16.mxu0 0
        %1815 = vmatpush1.bf16.msra.mxu0 0
        %1816 = vmatprep.subr.bf16.mxu0 0
        %1817 = vmatpush1.bf16.msra.mxu0 0
        %1818 = vmatprep.subr.bf16.mxu0 0
        %1819 = vmatpush1.bf16.msra.mxu0 0
        %1820 = vmatprep.subr.bf16.mxu0 0
        %1821 = vmatpush1.bf16.msra.mxu0 0
        %1822 = vmatprep.subr.bf16.mxu0 0
        %1823 = vmatpush1.bf16.msra.mxu0 0
        %1824 = vmatprep.subr.bf16.mxu0 0
        %1825 = vmatpush1.bf16.msra.mxu0 0
        %1826 = vmatprep.subr.bf16.mxu0 0
        %1827 = vmatpush1.bf16.msra.mxu0 0
        %1828 = vmatprep.subr.bf16.mxu0 0
        %1829 = vmatpush1.bf16.msra.mxu0 %v1812
        %1830 = vmatprep.subr.bf16.mxu0 0
        %1831 = vmatpush2.bf16.msra.mxu0 0
        %1832 = vmatprep.subr.bf16.mxu0 0
        %1833 = vmatpush2.bf16.msra.mxu0 0
        %1834 = vmatprep.subr.bf16.mxu0 0
        %1835 = vmatpush2.bf16.msra.mxu0 0
        %1836 = vmatprep.subr.bf16.mxu0 0
        %1837 = vmatpush2.bf16.msra.mxu0 0
        %1838 = vmatprep.subr.bf16.mxu0 0
        %1839 = vmatpush2.bf16.msra.mxu0 0
        %1840 = vmatprep.subr.bf16.mxu0 0
        %1841 = vmatpush2.bf16.msra.mxu0 0
        %1842 = vmatprep.subr.bf16.mxu0 0
        %1843 = vmatpush2.bf16.msra.mxu0 0
        %1844 = vmatprep.subr.bf16.mxu0 0
        %1845 = vmatpush2.bf16.msra.mxu0 0
        %1846 = vmatprep.mubr.bf16.mxu0 0
        %1847 = vmatmul.mubr.bf16.gmra.mxu0 %v1809
        %v1848 = vpop.f32.mrf.mxu0
        %v1849 = vadd.f32 0.0, %v1848
        %v1850 = vpop.f32.mrf.mxu0
        %v1851 = vpop.f32.mrf.mxu0
        %v1852 = vpop.f32.mrf.mxu0
        %1853 = vdwg.mxu0
        %1855 = vrot.lane.b32.xlu0 %v1637, 64
        %v1856 = vpop.permute.xlu0 %1855
        %1858 = vrot.lane.b32.xlu0 %v1639, 64
        %v1859 = vpop.permute.xlu0 %1858
        %v1861 = vsel %vm1643, %v1856, 0
        %v1864 = vsel %vm1643, %v1859, 0
        %1866 = vmatprep.subr.bf16.mxu0 0
        %1867 = vmatpush1.bf16.xpose.msra.mxu0 0
        %1868 = vmatprep.subr.bf16.mxu0 0
        %1869 = vmatpush1.bf16.xpose.msra.mxu0 0
        %1870 = vmatprep.subr.bf16.mxu0 0
        %1871 = vmatpush1.bf16.xpose.msra.mxu0 0
        %1872 = vmatprep.subr.bf16.mxu0 0
        %1873 = vmatpush1.bf16.xpose.msra.mxu0 0
        %1874 = vmatprep.subr.bf16.mxu0 0
        %1875 = vmatpush1.bf16.xpose.msra.mxu0 0
        %1876 = vmatprep.subr.bf16.mxu0 0
        %1877 = vmatpush1.bf16.xpose.msra.mxu0 0
        %1878 = vmatprep.subr.bf16.mxu0 0
        %1879 = vmatpush1.bf16.xpose.msra.mxu0 0
        %1880 = vmatprep.subr.bf16.mxu0 0
        %1881 = vmatpush1.bf16.xpose.msra.mxu0 %v1864
        %1882 = vmatprep.subr.bf16.mxu0 0
        %1883 = vmatpush2.bf16.xpose.msra.mxu0 0
        %1884 = vmatprep.subr.bf16.mxu0 0
        %1885 = vmatpush2.bf16.xpose.msra.mxu0 0
        %1886 = vmatprep.subr.bf16.mxu0 0
        %1887 = vmatpush2.bf16.xpose.msra.mxu0 0
        %1888 = vmatprep.subr.bf16.mxu0 0
        %1889 = vmatpush2.bf16.xpose.msra.mxu0 0
        %1890 = vmatprep.subr.bf16.mxu0 0
        %1891 = vmatpush2.bf16.xpose.msra.mxu0 0
        %1892 = vmatprep.subr.bf16.mxu0 0
        %1893 = vmatpush2.bf16.xpose.msra.mxu0 0
        %1894 = vmatprep.subr.bf16.mxu0 0
        %1895 = vmatpush2.bf16.xpose.msra.mxu0 0
        %1896 = vmatprep.subr.bf16.mxu0 0
        %1897 = vmatpush2.bf16.xpose.msra.mxu0 0
        %1898 = vmatprep.mubr.bf16.mxu0 0
        %1899 = vmatmul.mubr.bf16.gmra.mxu0 %v1861
        %v1900 = vpop.f32.mrf.mxu0
        %v1901 = vadd.f32 %v1636, %v1900
        %v1902 = vpop.f32.mrf.mxu0
        %v1903 = vpop.f32.mrf.mxu0
        %v1904 = vpop.f32.mrf.mxu0
        %1905 = vdwg.mxu0
        %1907 = vrot.lane.b32.xlu0 %v1638, 64
        %v1908 = vpop.permute.xlu0 %1907
        %1910 = vrot.lane.b32.xlu0 %v1640, 64
        %v1911 = vpop.permute.xlu0 %1910
        %v1913 = vsel %vm1643, %v1908, 0
        %v1916 = vsel %vm1643, %v1911, 0
        %1918 = vmatprep.subr.bf16.mxu0 0
        %1919 = vmatpush1.bf16.xpose.msra.mxu0 0
        %1920 = vmatprep.subr.bf16.mxu0 0
        %1921 = vmatpush1.bf16.xpose.msra.mxu0 0
        %1922 = vmatprep.subr.bf16.mxu0 0
        %1923 = vmatpush1.bf16.xpose.msra.mxu0 0
        %1924 = vmatprep.subr.bf16.mxu0 0
        %1925 = vmatpush1.bf16.xpose.msra.mxu0 0
        %1926 = vmatprep.subr.bf16.mxu0 0
        %1927 = vmatpush1.bf16.xpose.msra.mxu0 0
        %1928 = vmatprep.subr.bf16.mxu0 0
        %1929 = vmatpush1.bf16.xpose.msra.mxu0 0
        %1930 = vmatprep.subr.bf16.mxu0 0
        %1931 = vmatpush1.bf16.xpose.msra.mxu0 0
        %1932 = vmatprep.subr.bf16.mxu0 0
        %1933 = vmatpush1.bf16.xpose.msra.mxu0 %v1916
        %1934 = vmatprep.subr.bf16.mxu0 0
        %1935 = vmatpush2.bf16.xpose.msra.mxu0 0
        %1936 = vmatprep.subr.bf16.mxu0 0
        %1937 = vmatpush2.bf16.xpose.msra.mxu0 0
        %1938 = vmatprep.subr.bf16.mxu0 0
        %1939 = vmatpush2.bf16.xpose.msra.mxu0 0
        %1940 = vmatprep.subr.bf16.mxu0 0
        %1941 = vmatpush2.bf16.xpose.msra.mxu0 0
        %1942 = vmatprep.subr.bf16.mxu0 0
        %1943 = vmatpush2.bf16.xpose.msra.mxu0 0
        %1944 = vmatprep.subr.bf16.mxu0 0
        %1945 = vmatpush2.bf16.xpose.msra.mxu0 0
        %1946 = vmatprep.subr.bf16.mxu0 0
        %1947 = vmatpush2.bf16.xpose.msra.mxu0 0
        %1948 = vmatprep.subr.bf16.mxu0 0
        %1949 = vmatpush2.bf16.xpose.msra.mxu0 0
        %1950 = vmatprep.mubr.bf16.mxu0 0
        %1951 = vmatmul.mubr.bf16.gmra.mxu0 %v1913
        %v1952 = vpop.f32.mrf.mxu0
        %v1953 = vadd.f32 %v1636, %v1952
        %v1954 = vpop.f32.mrf.mxu0
        %v1955 = vpop.f32.mrf.mxu0
        %v1956 = vpop.f32.mrf.mxu0
        %1957 = vdwg.mxu0
        %v1958 = vsel %vm1736, %v1901, -inf
        %1959 = vmax.xlane.f32.xlu0 %v1958
        %v1960 = vpop.xlane.xlu0 %1959
        %v1961 = vsel %vm1736, %v1953, -inf
        %1962 = vmax.xlane.f32.xlu0 %v1961
        %v1963 = vpop.xlane.xlu0 %1962
        %v1964 = vsub.f32 %v1901, %v1960
        %v1965 = vsub.f32 %v1953, %v1963
        %v1966 = vmul.f32 %v1964, 1.442695
        %v1967 = vpow.pop %v1966
        %v1968 = vmul.f32 %v1965, 1.442695
        %v1969 = vpow.pop %v1968
        %v1970 = vsel %vm1736, %v1967, 0.0
        %1971 = vadd.xlane.f32.xlu0 %v1970
        %v1972 = vpop.xlane.xlu0 %1971
        %v1973 = vsel %vm1736, %v1969, 0.0
        %1974 = vadd.xlane.f32.xlu0 %v1973
        %v1975 = vpop.xlane.xlu0 %1974
        %v1976 = vrcp.pop %v1972
        %v1977 = vrcp.pop %v1975
        %v1978 = vmul.f32 %v1967, %v1976
        %v1979 = vmul.f32 %v1969, %v1977
        %v1980 = vpack.c.bf16 %v1978, %v1978
        %v1981 = vpack.c.bf16 %v1979, %v1979
        %1983 = vrot.lane.b32.xlu0 %v1641, 64
        %v1984 = vpop.permute.xlu0 %1983
        %v1986 = vsel %vm1736, %v1980, 0
        %v1989 = vsel %vm1764, %v1984, 0
        %1991 = vmatprep.subr.bf16.mxu0 0
        %1992 = vmatpush1.bf16.msra.mxu0 0
        %1993 = vmatprep.subr.bf16.mxu0 0
        %1994 = vmatpush1.bf16.msra.mxu0 0
        %1995 = vmatprep.subr.bf16.mxu0 0
        %1996 = vmatpush1.bf16.msra.mxu0 0
        %1997 = vmatprep.subr.bf16.mxu0 0
        %1998 = vmatpush1.bf16.msra.mxu0 0
        %1999 = vmatprep.subr.bf16.mxu0 0
        %2000 = vmatpush1.bf16.msra.mxu0 0
        %2001 = vmatprep.subr.bf16.mxu0 0
        %2002 = vmatpush1.bf16.msra.mxu0 0
        %2003 = vmatprep.subr.bf16.mxu0 0
        %2004 = vmatpush1.bf16.msra.mxu0 0
        %2005 = vmatprep.subr.bf16.mxu0 0
        %2006 = vmatpush1.bf16.msra.mxu0 %v1989
        %2007 = vmatprep.subr.bf16.mxu0 0
        %2008 = vmatpush2.bf16.msra.mxu0 0
        %2009 = vmatprep.subr.bf16.mxu0 0
        %2010 = vmatpush2.bf16.msra.mxu0 0
        %2011 = vmatprep.subr.bf16.mxu0 0
        %2012 = vmatpush2.bf16.msra.mxu0 0
        %2013 = vmatprep.subr.bf16.mxu0 0
        %2014 = vmatpush2.bf16.msra.mxu0 0
        %2015 = vmatprep.subr.bf16.mxu0 0
        %2016 = vmatpush2.bf16.msra.mxu0 0
        %2017 = vmatprep.subr.bf16.mxu0 0
        %2018 = vmatpush2.bf16.msra.mxu0 0
        %2019 = vmatprep.subr.bf16.mxu0 0
        %2020 = vmatpush2.bf16.msra.mxu0 0
        %2021 = vmatprep.subr.bf16.mxu0 0
        %2022 = vmatpush2.bf16.msra.mxu0 0
        %2023 = vmatprep.mubr.bf16.mxu0 0
        %2024 = vmatmul.mubr.bf16.gmra.mxu0 %v1986
        %v2025 = vpop.f32.mrf.mxu0
        %v2026 = vadd.f32 0.0, %v2025
        %v2027 = vpop.f32.mrf.mxu0
        %v2028 = vpop.f32.mrf.mxu0
        %v2029 = vpop.f32.mrf.mxu0
        %2030 = vdwg.mxu0
        %2032 = vrot.lane.b32.xlu0 %v1642, 64
        %v2033 = vpop.permute.xlu0 %2032
        %v2035 = vsel %vm1736, %v1981, 0
        %v2038 = vsel %vm1764, %v2033, 0
        %2040 = vmatprep.subr.bf16.mxu0 0
        %2041 = vmatpush1.bf16.msra.mxu0 0
        %2042 = vmatprep.subr.bf16.mxu0 0
        %2043 = vmatpush1.bf16.msra.mxu0 0
        %2044 = vmatprep.subr.bf16.mxu0 0
        %2045 = vmatpush1.bf16.msra.mxu0 0
        %2046 = vmatprep.subr.bf16.mxu0 0
        %2047 = vmatpush1.bf16.msra.mxu0 0
        %2048 = vmatprep.subr.bf16.mxu0 0
        %2049 = vmatpush1.bf16.msra.mxu0 0
        %2050 = vmatprep.subr.bf16.mxu0 0
        %2051 = vmatpush1.bf16.msra.mxu0 0
        %2052 = vmatprep.subr.bf16.mxu0 0
        %2053 = vmatpush1.bf16.msra.mxu0 0
        %2054 = vmatprep.subr.bf16.mxu0 0
        %2055 = vmatpush1.bf16.msra.mxu0 %v2038
        %2056 = vmatprep.subr.bf16.mxu0 0
        %2057 = vmatpush2.bf16.msra.mxu0 0
        %2058 = vmatprep.subr.bf16.mxu0 0
        %2059 = vmatpush2.bf16.msra.mxu0 0
        %2060 = vmatprep.subr.bf16.mxu0 0
        %2061 = vmatpush2.bf16.msra.mxu0 0
        %2062 = vmatprep.subr.bf16.mxu0 0
        %2063 = vmatpush2.bf16.msra.mxu0 0
        %2064 = vmatprep.subr.bf16.mxu0 0
        %2065 = vmatpush2.bf16.msra.mxu0 0
        %2066 = vmatprep.subr.bf16.mxu0 0
        %2067 = vmatpush2.bf16.msra.mxu0 0
        %2068 = vmatprep.subr.bf16.mxu0 0
        %2069 = vmatpush2.bf16.msra.mxu0 0
        %2070 = vmatprep.subr.bf16.mxu0 0
        %2071 = vmatpush2.bf16.msra.mxu0 0
        %2072 = vmatprep.mubr.bf16.mxu0 0
        %2073 = vmatmul.mubr.bf16.gmra.mxu0 %v2035
        %v2074 = vpop.f32.mrf.mxu0
        %v2075 = vadd.f32 0.0, %v2074
        %v2076 = vpop.f32.mrf.mxu0
        %v2077 = vpop.f32.mrf.mxu0
        %v2078 = vpop.f32.mrf.mxu0
        %2079 = vdwg.mxu0
        %2082 = vrot.lane.b32.xlu0 %v2026, 64
        %v2083 = vpop.permute.xlu0 %2082
        %2084 = vrot.lane.b32.xlu0 %v2075, 64
        %v2085 = vpop.permute.xlu0 %2084
        %v2088 = vsel %vm1643, %v1803, %v2083
        %v2089 = vsel %vm1643, %v1849, %v2085
        %v2090 = vpack.c.bf16 %v2089, %v2088
        %v2091 = vld [vmem:[%s765] sm:$0xf]
        %v2092 = vld [vmem:[%s765 + $0x4] sm:$0xf]
        %v2093 = vld [vmem:[%s765 + $0x8] sm:$0xf]
        %v2094 = vld [vmem:[%s765 + $0xc] sm:$0xf]
        %v2095 = vld [vmem:[%s765 + $0x10] sm:$0xf]
        %v2096 = vld [vmem:[%s765 + $0x14] sm:$0xf]
        %v2097 = vld [vmem:[%s765 + $0x18] sm:$0xf]
        %v2098 = vld [vmem:[%s765 + $0x1c] sm:$0xf]
        %v2099 = vld [vmem:[%s765 + $0x20] sm:$0xf]
        %v2100 = vld [vmem:[%s765 + $0x24] sm:$0xf]
        %v2101 = vld [vmem:[%s765 + $0x28] sm:$0xf]
        %v2102 = vld [vmem:[%s765 + $0x2c] sm:$0xf]
        %v2103 = vld [vmem:[%s765 + $0x30] sm:$0xf]
        %v2104 = vld [vmem:[%s765 + $0x34] sm:$0xf]
        %v2105 = vld [vmem:[%s765 + $0x38] sm:$0xf]
        %v2106 = vld [vmem:[%s765 + $0x3c] sm:$0xf]
        %v2123 = vunpack.c.l.b16 %v2091
        %v2124 = vunpack.c.l.b16 %v2092
        %v2125 = vunpack.c.l.b16 %v2093
        %v2126 = vunpack.c.l.b16 %v2094
        %v2127 = vunpack.c.l.b16 %v2095
        %v2128 = vunpack.c.l.b16 %v2096
        %v2129 = vunpack.c.l.b16 %v2097
        %v2130 = vunpack.c.l.b16 %v2098
        %v2131 = vunpack.c.l.b16 %v2099
        %v2132 = vunpack.c.l.b16 %v2100
        %v2133 = vunpack.c.l.b16 %v2101
        %v2134 = vunpack.c.l.b16 %v2102
        %v2135 = vunpack.c.l.b16 %v2103
        %v2136 = vunpack.c.l.b16 %v2104
        %v2137 = vunpack.c.l.b16 %v2105
        %v2138 = vunpack.c.l.b16 %v2106
        %v2139 = vpack.c.b16 %v2124, %v2123
        %v2140 = vpack.c.b16 %v2126, %v2125
        %v2141 = vpack.c.b16 %v2128, %v2127
        %v2142 = vpack.c.b16 %v2130, %v2129
        %v2143 = vpack.c.b16 %v2132, %v2131
        %v2144 = vpack.c.b16 %v2134, %v2133
        %v2145 = vpack.c.b16 %v2136, %v2135
        %v2146 = vpack.c.b16 %v2138, %v2137
        %2155 = vmatprep.subr.bf16.mxu0 0
        %2156 = vmatpush1.bf16.msra.mxu0 %v2146
        %2157 = vmatprep.subr.bf16.mxu0 0
        %2158 = vmatpush1.bf16.msra.mxu0 %v2145
        %2159 = vmatprep.subr.bf16.mxu0 0
        %2160 = vmatpush1.bf16.msra.mxu0 %v2144
        %2161 = vmatprep.subr.bf16.mxu0 0
        %2162 = vmatpush1.bf16.msra.mxu0 %v2143
        %2163 = vmatprep.subr.bf16.mxu0 0
        %2164 = vmatpush1.bf16.msra.mxu0 %v2142
        %2165 = vmatprep.subr.bf16.mxu0 0
        %2166 = vmatpush1.bf16.msra.mxu0 %v2141
        %2167 = vmatprep.subr.bf16.mxu0 0
        %2168 = vmatpush1.bf16.msra.mxu0 %v2140
        %2169 = vmatprep.subr.bf16.mxu0 0
        %2170 = vmatpush1.bf16.msra.mxu0 %v2139
        %2171 = vmatprep.subr.bf16.mxu0 0
        %2172 = vmatpush2.bf16.msra.mxu0 0
        %2173 = vmatprep.subr.bf16.mxu0 0
        %2174 = vmatpush2.bf16.msra.mxu0 0
        %2175 = vmatprep.subr.bf16.mxu0 0
        %2176 = vmatpush2.bf16.msra.mxu0 0
        %2177 = vmatprep.subr.bf16.mxu0 0
        %2178 = vmatpush2.bf16.msra.mxu0 0
        %2179 = vmatprep.subr.bf16.mxu0 0
        %2180 = vmatpush2.bf16.msra.mxu0 0
        %2181 = vmatprep.subr.bf16.mxu0 0
        %2182 = vmatpush2.bf16.msra.mxu0 0
        %2183 = vmatprep.subr.bf16.mxu0 0
        %2184 = vmatpush2.bf16.msra.mxu0 0
        %2185 = vmatprep.subr.bf16.mxu0 0
        %2186 = vmatpush2.bf16.msra.mxu0 0
        %2187 = vmatprep.mubr.bf16.mxu0 0
        %2188 = vmatmul.mubr.bf16.gmra.mxu0 %v2090
        %v2189 = vpop.f32.mrf.mxu0
        %v2190 = vadd.f32 0.0, %v2189
        %v2191 = vpop.f32.mrf.mxu0
        %v2192 = vpop.f32.mrf.mxu0
        %v2193 = vadd.f32 0.0, %v2192
        %v2194 = vpop.f32.mrf.mxu0
        %2195 = vdwg.mxu0
        %v2196 = vadd.f32 %v1326, %v2190
        %v2197 = vadd.f32 %v1327, %v2193
        %v2198 = vld [vmem:[%s768] sm:$0x1]
        %v2200 = vlaneseq
        %v2201 = vshrl.u32 %v2200, 7
        %v2202 = vsub.s32 0, %v2201
        %v2203 = vrot.slane %v2198, %v2202
        %v2205 = vadd.f32 %v2196, %v2203
        %v2206 = vadd.f32 %v2197, %v2203
        %v2207 = vld [vmem:[%s771] sm:$0x1]
        %v2208 = vld [vmem:[%s774] sm:$0x1]
        %2209 = vadd.xlane.f32.xlu0 %v2205
        %v2210 = vpop.xlane.xlu0 %2209
        %2211 = vadd.xlane.f32.xlu0 %v2206
        %v2212 = vpop.xlane.xlu0 %2211
        %v2213 = vmul.f32 %v2210, %v1334
        %v2214 = vmul.f32 %v2212, %v1334
        %v2215 = vsub.f32 %v2205, %v2213
        %v2216 = vsub.f32 %v2206, %v2214
        %v2217 = vmul.f32 %v2215, %v2215
        %v2218 = vmul.f32 %v2216, %v2216
        %2219 = vadd.xlane.f32.xlu0 %v2217
        %v2220 = vpop.xlane.xlu0 %2219
        %2221 = vadd.xlane.f32.xlu0 %v2218
        %v2222 = vpop.xlane.xlu0 %2221
        %v2223 = vmul.f32 %v2220, %v1334
        %v2224 = vmul.f32 %v2222, %v1334
        %v2225 = vadd.f32 %v2223, 1e-06
        %v2226 = vadd.f32 %v2224, 1e-06
        %v2227 = vrsqrt.pop %v2225
        %v2228 = vrsqrt.pop %v2226
        %v2229 = vmul.f32 %v2215, %v2227
        %v2230 = vmul.f32 %v2216, %v2228
        %v2232 = vlaneseq
        %v2233 = vshrl.u32 %v2232, 7
        %v2234 = vsub.s32 0, %v2233
        %v2235 = vrot.slane %v2207, %v2234
        %v2237 = vmul.f32 %v2229, %v2235
        %v2238 = vmul.f32 %v2230, %v2235
        %v2240 = vlaneseq
        %v2241 = vshrl.u32 %v2240, 7
        %v2242 = vsub.s32 0, %v2241
        %v2243 = vrot.slane %v2208, %v2242
        %v2245 = vadd.f32 %v2237, %v2243
        %v2246 = vadd.f32 %v2238, %v2243
        %v2247 = vpack.c.bf16 %v2246, %v2245
        %v2248 = vld [vmem:[%s779] sm:$0xff]
        %v2249 = vld [vmem:[%s779 + $0x8] sm:$0xff]
        %v2250 = vld [vmem:[%s779 + $0x10] sm:$0xff]
        %v2251 = vld [vmem:[%s779 + $0x18] sm:$0xff]
        %v2252 = vld [vmem:[%s779 + $0x20] sm:$0xff]
        %v2253 = vld [vmem:[%s779 + $0x28] sm:$0xff]
        %v2254 = vld [vmem:[%s779 + $0x30] sm:$0xff]
        %v2255 = vld [vmem:[%s779 + $0x38] sm:$0xff]
        %v2256 = vld [vmem:[%s779 + $0x40] sm:$0xff]
        %v2257 = vld [vmem:[%s779 + $0x48] sm:$0xff]
        %v2258 = vld [vmem:[%s779 + $0x50] sm:$0xff]
        %v2259 = vld [vmem:[%s779 + $0x58] sm:$0xff]
        %v2260 = vld [vmem:[%s779 + $0x60] sm:$0xff]
        %v2261 = vld [vmem:[%s779 + $0x68] sm:$0xff]
        %v2262 = vld [vmem:[%s779 + $0x70] sm:$0xff]
        %v2263 = vld [vmem:[%s779 + $0x78] sm:$0xff]
        %v2264 = vld [vmem:[%s779 + $0x80] sm:$0xff]
        %v2265 = vld [vmem:[%s779 + $0x88] sm:$0xff]
        %v2266 = vld [vmem:[%s779 + $0x90] sm:$0xff]
        %v2267 = vld [vmem:[%s779 + $0x98] sm:$0xff]
        %v2268 = vld [vmem:[%s779 + $0xa0] sm:$0xff]
        %v2269 = vld [vmem:[%s779 + $0xa8] sm:$0xff]
        %v2270 = vld [vmem:[%s779 + $0xb0] sm:$0xff]
        %v2271 = vld [vmem:[%s779 + $0xb8] sm:$0xff]
        %v2272 = vld [vmem:[%s779 + $0xc0] sm:$0xff]
        %v2273 = vld [vmem:[%s779 + $0xc8] sm:$0xff]
        %v2274 = vld [vmem:[%s779 + $0xd0] sm:$0xff]
        %v2275 = vld [vmem:[%s779 + $0xd8] sm:$0xff]
        %v2276 = vld [vmem:[%s779 + $0xe0] sm:$0xff]
        %v2277 = vld [vmem:[%s779 + $0xe8] sm:$0xff]
        %v2278 = vld [vmem:[%s779 + $0xf0] sm:$0xff]
        %v2279 = vld [vmem:[%s779 + $0xf8] sm:$0xff]
        %v2280 = vld [vmem:[%s783] sm:$0xf]
        %v2282 = vlaneseq
        %v2283 = vshrl.u32 %v2282, 7
        %v2284 = vsub.s32 0, %v2283
        %v2285 = vrot.slane %v2280, %v2284
        %v2286 = vlaneseq
        %v2287 = vshrl.u32 %v2286, 7
        %v2288 = vsub.s32 1, %v2287
        %v2289 = vrot.slane %v2280, %v2288
        %v2290 = vlaneseq
        %v2291 = vshrl.u32 %v2290, 7
        %v2292 = vsub.s32 2, %v2291
        %v2293 = vrot.slane %v2280, %v2292
        %v2294 = vlaneseq
        %v2295 = vshrl.u32 %v2294, 7
        %v2296 = vsub.s32 3, %v2295
        %v2297 = vrot.slane %v2280, %v2296
        %v2334 = vunpack.c.l.b16 %v2248
        %v2335 = vunpack.c.h.b16 %v2248
        %v2336 = vunpack.c.l.b16 %v2249
        %v2337 = vunpack.c.h.b16 %v2249
        %v2338 = vunpack.c.l.b16 %v2250
        %v2339 = vunpack.c.h.b16 %v2250
        %v2340 = vunpack.c.l.b16 %v2251
        %v2341 = vunpack.c.h.b16 %v2251
        %v2342 = vunpack.c.l.b16 %v2252
        %v2343 = vunpack.c.h.b16 %v2252
        %v2344 = vunpack.c.l.b16 %v2253
        %v2345 = vunpack.c.h.b16 %v2253
        %v2346 = vunpack.c.l.b16 %v2254
        %v2347 = vunpack.c.h.b16 %v2254
        %v2348 = vunpack.c.l.b16 %v2255
        %v2349 = vunpack.c.h.b16 %v2255
        %v2350 = vunpack.c.l.b16 %v2256
        %v2351 = vunpack.c.h.b16 %v2256
        %v2352 = vunpack.c.l.b16 %v2257
        %v2353 = vunpack.c.h.b16 %v2257
        %v2354 = vunpack.c.l.b16 %v2258
        %v2355 = vunpack.c.h.b16 %v2258
        %v2356 = vunpack.c.l.b16 %v2259
        %v2357 = vunpack.c.h.b16 %v2259
        %v2358 = vunpack.c.l.b16 %v2260
        %v2359 = vunpack.c.h.b16 %v2260
        %v2360 = vunpack.c.l.b16 %v2261
        %v2361 = vunpack.c.h.b16 %v2261
        %v2362 = vunpack.c.l.b16 %v2262
        %v2363 = vunpack.c.h.b16 %v2262
        %v2364 = vunpack.c.l.b16 %v2263
        %v2365 = vunpack.c.h.b16 %v2263
        %v2366 = vunpack.c.l.b16 %v2264
        %v2367 = vunpack.c.h.b16 %v2264
        %v2368 = vunpack.c.l.b16 %v2265
        %v2369 = vunpack.c.h.b16 %v2265
        %v2370 = vunpack.c.l.b16 %v2266
        %v2371 = vunpack.c.h.b16 %v2266
        %v2372 = vunpack.c.l.b16 %v2267
        %v2373 = vunpack.c.h.b16 %v2267
        %v2374 = vunpack.c.l.b16 %v2268
        %v2375 = vunpack.c.h.b16 %v2268
        %v2376 = vunpack.c.l.b16 %v2269
        %v2377 = vunpack.c.h.b16 %v2269
        %v2378 = vunpack.c.l.b16 %v2270
        %v2379 = vunpack.c.h.b16 %v2270
        %v2380 = vunpack.c.l.b16 %v2271
        %v2381 = vunpack.c.h.b16 %v2271
        %v2382 = vunpack.c.l.b16 %v2272
        %v2383 = vunpack.c.h.b16 %v2272
        %v2384 = vunpack.c.l.b16 %v2273
        %v2385 = vunpack.c.h.b16 %v2273
        %v2386 = vunpack.c.l.b16 %v2274
        %v2387 = vunpack.c.h.b16 %v2274
        %v2388 = vunpack.c.l.b16 %v2275
        %v2389 = vunpack.c.h.b16 %v2275
        %v2390 = vunpack.c.l.b16 %v2276
        %v2391 = vunpack.c.h.b16 %v2276
        %v2392 = vunpack.c.l.b16 %v2277
        %v2393 = vunpack.c.h.b16 %v2277
        %v2394 = vunpack.c.l.b16 %v2278
        %v2395 = vunpack.c.h.b16 %v2278
        %v2396 = vunpack.c.l.b16 %v2279
        %v2397 = vunpack.c.h.b16 %v2279
        %v2398 = vpack.c.b16 %v2338, %v2334
        %v2399 = vpack.c.b16 %v2339, %v2335
        %v2400 = vpack.c.b16 %v2340, %v2336
        %v2401 = vpack.c.b16 %v2341, %v2337
        %v2402 = vpack.c.b16 %v2346, %v2342
        %v2403 = vpack.c.b16 %v2347, %v2343
        %v2404 = vpack.c.b16 %v2348, %v2344
        %v2405 = vpack.c.b16 %v2349, %v2345
        %v2406 = vpack.c.b16 %v2354, %v2350
        %v2407 = vpack.c.b16 %v2355, %v2351
        %v2408 = vpack.c.b16 %v2356, %v2352
        %v2409 = vpack.c.b16 %v2357, %v2353
        %v2410 = vpack.c.b16 %v2362, %v2358
        %v2411 = vpack.c.b16 %v2363, %v2359
        %v2412 = vpack.c.b16 %v2364, %v2360
        %v2413 = vpack.c.b16 %v2365, %v2361
        %v2414 = vpack.c.b16 %v2370, %v2366
        %v2415 = vpack.c.b16 %v2371, %v2367
        %v2416 = vpack.c.b16 %v2372, %v2368
        %v2417 = vpack.c.b16 %v2373, %v2369
        %v2418 = vpack.c.b16 %v2378, %v2374
        %v2419 = vpack.c.b16 %v2379, %v2375
        %v2420 = vpack.c.b16 %v2380, %v2376
        %v2421 = vpack.c.b16 %v2381, %v2377
        %v2422 = vpack.c.b16 %v2386, %v2382
        %v2423 = vpack.c.b16 %v2387, %v2383
        %v2424 = vpack.c.b16 %v2388, %v2384
        %v2425 = vpack.c.b16 %v2389, %v2385
        %v2426 = vpack.c.b16 %v2394, %v2390
        %v2427 = vpack.c.b16 %v2395, %v2391
        %v2428 = vpack.c.b16 %v2396, %v2392
        %v2429 = vpack.c.b16 %v2397, %v2393
        %2462 = vmatprep.subr.bf16.mxu0 %v2427
        %2463 = vmatpush1.bf16.msra.mxu0 %v2426
        %2464 = vmatprep.subr.bf16.mxu0 %v2423
        %2465 = vmatpush1.bf16.msra.mxu0 %v2422
        %2466 = vmatprep.subr.bf16.mxu0 %v2419
        %2467 = vmatpush1.bf16.msra.mxu0 %v2418
        %2468 = vmatprep.subr.bf16.mxu0 %v2415
        %2469 = vmatpush1.bf16.msra.mxu0 %v2414
        %2470 = vmatprep.subr.bf16.mxu0 %v2411
        %2471 = vmatpush1.bf16.msra.mxu0 %v2410
        %2472 = vmatprep.subr.bf16.mxu0 %v2407
        %2473 = vmatpush1.bf16.msra.mxu0 %v2406
        %2474 = vmatprep.subr.bf16.mxu0 %v2403
        %2475 = vmatpush1.bf16.msra.mxu0 %v2402
        %2476 = vmatprep.subr.bf16.mxu0 %v2399
        %2477 = vmatpush1.bf16.msra.mxu0 %v2398
        %2478 = vmatprep.subr.bf16.mxu0 0
        %2479 = vmatpush2.bf16.msra.mxu0 0
        %2480 = vmatprep.subr.bf16.mxu0 0
        %2481 = vmatpush2.bf16.msra.mxu0 0
        %2482 = vmatprep.subr.bf16.mxu0 0
        %2483 = vmatpush2.bf16.msra.mxu0 0
        %2484 = vmatprep.subr.bf16.mxu0 0
        %2485 = vmatpush2.bf16.msra.mxu0 0
        %2486 = vmatprep.subr.bf16.mxu0 0
        %2487 = vmatpush2.bf16.msra.mxu0 0
        %2488 = vmatprep.subr.bf16.mxu0 0
        %2489 = vmatpush2.bf16.msra.mxu0 0
        %2490 = vmatprep.subr.bf16.mxu0 0
        %2491 = vmatpush2.bf16.msra.mxu0 0
        %2492 = vmatprep.subr.bf16.mxu0 0
        %2493 = vmatpush2.bf16.msra.mxu0 0
        %2494 = vmatprep.mubr.bf16.mxu0 0
        %2495 = vmatmul.mubr.bf16.gmra.mxu0 %v2247
        %v2496 = vpop.f32.mrf.mxu0
        %v2497 = vadd.f32 %v2285, %v2496
        %v2498 = vpop.f32.mrf.mxu0
        %v2499 = vadd.f32 %v2289, %v2498
        %v2500 = vpop.f32.mrf.mxu0
        %v2501 = vadd.f32 %v2285, %v2500
        %v2502 = vpop.f32.mrf.mxu0
        %v2503 = vadd.f32 %v2289, %v2502
        %2504 = vdwg.mxu0
        %2505 = vmatprep.subr.bf16.mxu0 %v2429
        %2506 = vmatpush1.bf16.msra.mxu0 %v2428
        %2507 = vmatprep.subr.bf16.mxu0 %v2425
        %2508 = vmatpush1.bf16.msra.mxu0 %v2424
        %2509 = vmatprep.subr.bf16.mxu0 %v2421
        %2510 = vmatpush1.bf16.msra.mxu0 %v2420
        %2511 = vmatprep.subr.bf16.mxu0 %v2417
        %2512 = vmatpush1.bf16.msra.mxu0 %v2416
        %2513 = vmatprep.subr.bf16.mxu0 %v2413
        %2514 = vmatpush1.bf16.msra.mxu0 %v2412
        %2515 = vmatprep.subr.bf16.mxu0 %v2409
        %2516 = vmatpush1.bf16.msra.mxu0 %v2408
        %2517 = vmatprep.subr.bf16.mxu0 %v2405
        %2518 = vmatpush1.bf16.msra.mxu0 %v2404
        %2519 = vmatprep.subr.bf16.mxu0 %v2401
        %2520 = vmatpush1.bf16.msra.mxu0 %v2400
        %2521 = vmatprep.subr.bf16.mxu0 0
        %2522 = vmatpush2.bf16.msra.mxu0 0
        %2523 = vmatprep.subr.bf16.mxu0 0
        %2524 = vmatpush2.bf16.msra.mxu0 0
        %2525 = vmatprep.subr.bf16.mxu0 0
        %2526 = vmatpush2.bf16.msra.mxu0 0
        %2527 = vmatprep.subr.bf16.mxu0 0
        %2528 = vmatpush2.bf16.msra.mxu0 0
        %2529 = vmatprep.subr.bf16.mxu0 0
        %2530 = vmatpush2.bf16.msra.mxu0 0
        %2531 = vmatprep.subr.bf16.mxu0 0
        %2532 = vmatpush2.bf16.msra.mxu0 0
        %2533 = vmatprep.subr.bf16.mxu0 0
        %2534 = vmatpush2.bf16.msra.mxu0 0
        %2535 = vmatprep.subr.bf16.mxu0 0
        %2536 = vmatpush2.bf16.msra.mxu0 0
        %2537 = vmatprep.mubr.bf16.mxu0 0
        %2538 = vmatmul.mubr.bf16.gmra.mxu0 %v2247
        %v2539 = vpop.f32.mrf.mxu0
        %v2540 = vadd.f32 %v2293, %v2539
        %v2541 = vpop.f32.mrf.mxu0
        %v2542 = vadd.f32 %v2297, %v2541
        %v2543 = vpop.f32.mrf.mxu0
        %v2544 = vadd.f32 %v2293, %v2543
        %v2545 = vpop.f32.mrf.mxu0
        %v2546 = vadd.f32 %v2297, %v2545
        %2547 = vdwg.mxu0
        %v2548 = vmul.f32 %v2497, %v2497
        %v2549 = vmul.f32 %v2499, %v2499
        %v2550 = vmul.f32 %v2540, %v2540
        %v2551 = vmul.f32 %v2542, %v2542
        %v2552 = vmul.f32 %v2501, %v2501
        %v2553 = vmul.f32 %v2503, %v2503
        %v2554 = vmul.f32 %v2544, %v2544
        %v2555 = vmul.f32 %v2546, %v2546
        %v2556 = vmul.f32 %v2497, %v2548
        %v2557 = vmul.f32 %v2499, %v2549
        %v2558 = vmul.f32 %v2540, %v2550
        %v2559 = vmul.f32 %v2542, %v2551
        %v2560 = vmul.f32 %v2501, %v2552
        %v2561 = vmul.f32 %v2503, %v2553
        %v2562 = vmul.f32 %v2544, %v2554
        %v2563 = vmul.f32 %v2546, %v2555
        %v2564 = vmul.f32 %v2556, 0.044715
        %v2565 = vmul.f32 %v2557, 0.044715
        %v2566 = vmul.f32 %v2558, 0.044715
        %v2567 = vmul.f32 %v2559, 0.044715
        %v2568 = vmul.f32 %v2560, 0.044715
        %v2569 = vmul.f32 %v2561, 0.044715
        %v2570 = vmul.f32 %v2562, 0.044715
        %v2571 = vmul.f32 %v2563, 0.044715
        %v2572 = vadd.f32 %v2497, %v2564
        %v2573 = vadd.f32 %v2499, %v2565
        %v2574 = vadd.f32 %v2540, %v2566
        %v2575 = vadd.f32 %v2542, %v2567
        %v2576 = vadd.f32 %v2501, %v2568
        %v2577 = vadd.f32 %v2503, %v2569
        %v2578 = vadd.f32 %v2544, %v2570
        %v2579 = vadd.f32 %v2546, %v2571
        %v2580 = vmul.f32 %v2572, 0.7978846
        %v2581 = vmul.f32 %v2573, 0.7978846
        %v2582 = vmul.f32 %v2574, 0.7978846
        %v2583 = vmul.f32 %v2575, 0.7978846
        %v2584 = vmul.f32 %v2576, 0.7978846
        %v2585 = vmul.f32 %v2577, 0.7978846
        %v2586 = vmul.f32 %v2578, 0.7978846
        %v2587 = vmul.f32 %v2579, 0.7978846
        %v2588 = vtanh.pop %v2580
        %v2589 = vtanh.pop %v2581
        %v2590 = vtanh.pop %v2582
        %v2591 = vtanh.pop %v2583
        %v2592 = vtanh.pop %v2584
        %v2593 = vtanh.pop %v2585
        %v2594 = vtanh.pop %v2586
        %v2595 = vtanh.pop %v2587
        %v2596 = vadd.f32 %v2588, 1.0
        %v2597 = vadd.f32 %v2589, 1.0
        %v2598 = vadd.f32 %v2590, 1.0
        %v2599 = vadd.f32 %v2591, 1.0
        %v2600 = vadd.f32 %v2592, 1.0
        %v2601 = vadd.f32 %v2593, 1.0
        %v2602 = vadd.f32 %v2594, 1.0
        %v2603 = vadd.f32 %v2595, 1.0
        %v2604 = vmul.f32 %v2596, 0.5
        %v2605 = vmul.f32 %v2597, 0.5
        %v2606 = vmul.f32 %v2598, 0.5
        %v2607 = vmul.f32 %v2599, 0.5
        %v2608 = vmul.f32 %v2600, 0.5
        %v2609 = vmul.f32 %v2601, 0.5
        %v2610 = vmul.f32 %v2602, 0.5
        %v2611 = vmul.f32 %v2603, 0.5
        %v2612 = vmul.f32 %v2497, %v2604
        %v2613 = vmul.f32 %v2499, %v2605
        %v2614 = vmul.f32 %v2540, %v2606
        %v2615 = vmul.f32 %v2542, %v2607
        %v2616 = vmul.f32 %v2501, %v2608
        %v2617 = vmul.f32 %v2503, %v2609
        %v2618 = vmul.f32 %v2544, %v2610
        %v2619 = vmul.f32 %v2546, %v2611
        %v2620 = vpack.c.bf16 %v2616, %v2612
        %v2621 = vpack.c.bf16 %v2617, %v2613
        %v2622 = vpack.c.bf16 %v2618, %v2614
        %v2623 = vpack.c.bf16 %v2619, %v2615
        %v2624 = vld [vmem:[%s788] sm:$0xf]
        %v2625 = vld [vmem:[%s788 + $0x4] sm:$0xf]
        %v2626 = vld [vmem:[%s788 + $0x8] sm:$0xf]
        %v2627 = vld [vmem:[%s788 + $0xc] sm:$0xf]
        %v2628 = vld [vmem:[%s788 + $0x10] sm:$0xf]
        %v2629 = vld [vmem:[%s788 + $0x14] sm:$0xf]
        %v2630 = vld [vmem:[%s788 + $0x18] sm:$0xf]
        %v2631 = vld [vmem:[%s788 + $0x1c] sm:$0xf]
        %v2632 = vld [vmem:[%s788 + $0x20] sm:$0xf]
        %v2633 = vld [vmem:[%s788 + $0x24] sm:$0xf]
        %v2634 = vld [vmem:[%s788 + $0x28] sm:$0xf]
        %v2635 = vld [vmem:[%s788 + $0x2c] sm:$0xf]
        %v2636 = vld [vmem:[%s788 + $0x30] sm:$0xf]
        %v2637 = vld [vmem:[%s788 + $0x34] sm:$0xf]
        %v2638 = vld [vmem:[%s788 + $0x38] sm:$0xf]
        %v2639 = vld [vmem:[%s788 + $0x3c] sm:$0xf]
        %v2640 = vld [vmem:[%s788 + $0x40] sm:$0xf]
        %v2641 = vld [vmem:[%s788 + $0x44] sm:$0xf]
        %v2642 = vld [vmem:[%s788 + $0x48] sm:$0xf]
        %v2643 = vld [vmem:[%s788 + $0x4c] sm:$0xf]
        %v2644 = vld [vmem:[%s788 + $0x50] sm:$0xf]
        %v2645 = vld [vmem:[%s788 + $0x54] sm:$0xf]
        %v2646 = vld [vmem:[%s788 + $0x58] sm:$0xf]
        %v2647 = vld [vmem:[%s788 + $0x5c] sm:$0xf]
        %v2648 = vld [vmem:[%s788 + $0x60] sm:$0xf]
        %v2649 = vld [vmem:[%s788 + $0x64] sm:$0xf]
        %v2650 = vld [vmem:[%s788 + $0x68] sm:$0xf]
        %v2651 = vld [vmem:[%s788 + $0x6c] sm:$0xf]
        %v2652 = vld [vmem:[%s788 + $0x70] sm:$0xf]
        %v2653 = vld [vmem:[%s788 + $0x74] sm:$0xf]
        %v2654 = vld [vmem:[%s788 + $0x78] sm:$0xf]
        %v2655 = vld [vmem:[%s788 + $0x7c] sm:$0xf]
        %v2656 = vld [vmem:[%s788 + $0x80] sm:$0xf]
        %v2657 = vld [vmem:[%s788 + $0x84] sm:$0xf]
        %v2658 = vld [vmem:[%s788 + $0x88] sm:$0xf]
        %v2659 = vld [vmem:[%s788 + $0x8c] sm:$0xf]
        %v2660 = vld [vmem:[%s788 + $0x90] sm:$0xf]
        %v2661 = vld [vmem:[%s788 + $0x94] sm:$0xf]
        %v2662 = vld [vmem:[%s788 + $0x98] sm:$0xf]
        %v2663 = vld [vmem:[%s788 + $0x9c] sm:$0xf]
        %v2664 = vld [vmem:[%s788 + $0xa0] sm:$0xf]
        %v2665 = vld [vmem:[%s788 + $0xa4] sm:$0xf]
        %v2666 = vld [vmem:[%s788 + $0xa8] sm:$0xf]
        %v2667 = vld [vmem:[%s788 + $0xac] sm:$0xf]
        %v2668 = vld [vmem:[%s788 + $0xb0] sm:$0xf]
        %v2669 = vld [vmem:[%s788 + $0xb4] sm:$0xf]
        %v2670 = vld [vmem:[%s788 + $0xb8] sm:$0xf]
        %v2671 = vld [vmem:[%s788 + $0xbc] sm:$0xf]
        %v2672 = vld [vmem:[%s788 + $0xc0] sm:$0xf]
        %v2673 = vld [vmem:[%s788 + $0xc4] sm:$0xf]
        %v2674 = vld [vmem:[%s788 + $0xc8] sm:$0xf]
        %v2675 = vld [vmem:[%s788 + $0xcc] sm:$0xf]
        %v2676 = vld [vmem:[%s788 + $0xd0] sm:$0xf]
        %v2677 = vld [vmem:[%s788 + $0xd4] sm:$0xf]
        %v2678 = vld [vmem:[%s788 + $0xd8] sm:$0xf]
        %v2679 = vld [vmem:[%s788 + $0xdc] sm:$0xf]
        %v2680 = vld [vmem:[%s788 + $0xe0] sm:$0xf]
        %v2681 = vld [vmem:[%s788 + $0xe4] sm:$0xf]
        %v2682 = vld [vmem:[%s788 + $0xe8] sm:$0xf]
        %v2683 = vld [vmem:[%s788 + $0xec] sm:$0xf]
        %v2684 = vld [vmem:[%s788 + $0xf0] sm:$0xf]
        %v2685 = vld [vmem:[%s788 + $0xf4] sm:$0xf]
        %v2686 = vld [vmem:[%s788 + $0xf8] sm:$0xf]
        %v2687 = vld [vmem:[%s788 + $0xfc] sm:$0xf]
        %v2752 = vunpack.c.l.b16 %v2624
        %v2753 = vunpack.c.l.b16 %v2625
        %v2754 = vunpack.c.l.b16 %v2626
        %v2755 = vunpack.c.l.b16 %v2627
        %v2756 = vunpack.c.l.b16 %v2628
        %v2757 = vunpack.c.l.b16 %v2629
        %v2758 = vunpack.c.l.b16 %v2630
        %v2759 = vunpack.c.l.b16 %v2631
        %v2760 = vunpack.c.l.b16 %v2632
        %v2761 = vunpack.c.l.b16 %v2633
        %v2762 = vunpack.c.l.b16 %v2634
        %v2763 = vunpack.c.l.b16 %v2635
        %v2764 = vunpack.c.l.b16 %v2636
        %v2765 = vunpack.c.l.b16 %v2637
        %v2766 = vunpack.c.l.b16 %v2638
        %v2767 = vunpack.c.l.b16 %v2639
        %v2768 = vunpack.c.l.b16 %v2640
        %v2769 = vunpack.c.l.b16 %v2641
        %v2770 = vunpack.c.l.b16 %v2642
        %v2771 = vunpack.c.l.b16 %v2643
        %v2772 = vunpack.c.l.b16 %v2644
        %v2773 = vunpack.c.l.b16 %v2645
        %v2774 = vunpack.c.l.b16 %v2646
        %v2775 = vunpack.c.l.b16 %v2647
        %v2776 = vunpack.c.l.b16 %v2648
        %v2777 = vunpack.c.l.b16 %v2649
        %v2778 = vunpack.c.l.b16 %v2650
        %v2779 = vunpack.c.l.b16 %v2651
        %v2780 = vunpack.c.l.b16 %v2652
        %v2781 = vunpack.c.l.b16 %v2653
        %v2782 = vunpack.c.l.b16 %v2654
        %v2783 = vunpack.c.l.b16 %v2655
        %v2784 = vunpack.c.l.b16 %v2656
        %v2785 = vunpack.c.l.b16 %v2657
        %v2786 = vunpack.c.l.b16 %v2658
        %v2787 = vunpack.c.l.b16 %v2659
        %v2788 = vunpack.c.l.b16 %v2660
        %v2789 = vunpack.c.l.b16 %v2661
        %v2790 = vunpack.c.l.b16 %v2662
        %v2791 = vunpack.c.l.b16 %v2663
        %v2792 = vunpack.c.l.b16 %v2664
        %v2793 = vunpack.c.l.b16 %v2665
        %v2794 = vunpack.c.l.b16 %v2666
        %v2795 = vunpack.c.l.b16 %v2667
        %v2796 = vunpack.c.l.b16 %v2668
        %v2797 = vunpack.c.l.b16 %v2669
        %v2798 = vunpack.c.l.b16 %v2670
        %v2799 = vunpack.c.l.b16 %v2671
        %v2800 = vunpack.c.l.b16 %v2672
        %v2801 = vunpack.c.l.b16 %v2673
        %v2802 = vunpack.c.l.b16 %v2674
        %v2803 = vunpack.c.l.b16 %v2675
        %v2804 = vunpack.c.l.b16 %v2676
        %v2805 = vunpack.c.l.b16 %v2677
        %v2806 = vunpack.c.l.b16 %v2678
        %v2807 = vunpack.c.l.b16 %v2679
        %v2808 = vunpack.c.l.b16 %v2680
        %v2809 = vunpack.c.l.b16 %v2681
        %v2810 = vunpack.c.l.b16 %v2682
        %v2811 = vunpack.c.l.b16 %v2683
        %v2812 = vunpack.c.l.b16 %v2684
        %v2813 = vunpack.c.l.b16 %v2685
        %v2814 = vunpack.c.l.b16 %v2686
        %v2815 = vunpack.c.l.b16 %v2687
        %v2816 = vpack.c.b16 %v2753, %v2752
        %v2817 = vpack.c.b16 %v2755, %v2754
        %v2818 = vpack.c.b16 %v2757, %v2756
        %v2819 = vpack.c.b16 %v2759, %v2758
        %v2820 = vpack.c.b16 %v2761, %v2760
        %v2821 = vpack.c.b16 %v2763, %v2762
        %v2822 = vpack.c.b16 %v2765, %v2764
        %v2823 = vpack.c.b16 %v2767, %v2766
        %v2824 = vpack.c.b16 %v2769, %v2768
        %v2825 = vpack.c.b16 %v2771, %v2770
        %v2826 = vpack.c.b16 %v2773, %v2772
        %v2827 = vpack.c.b16 %v2775, %v2774
        %v2828 = vpack.c.b16 %v2777, %v2776
        %v2829 = vpack.c.b16 %v2779, %v2778
        %v2830 = vpack.c.b16 %v2781, %v2780
        %v2831 = vpack.c.b16 %v2783, %v2782
        %v2832 = vpack.c.b16 %v2785, %v2784
        %v2833 = vpack.c.b16 %v2787, %v2786
        %v2834 = vpack.c.b16 %v2789, %v2788
        %v2835 = vpack.c.b16 %v2791, %v2790
        %v2836 = vpack.c.b16 %v2793, %v2792
        %v2837 = vpack.c.b16 %v2795, %v2794
        %v2838 = vpack.c.b16 %v2797, %v2796
        %v2839 = vpack.c.b16 %v2799, %v2798
        %v2840 = vpack.c.b16 %v2801, %v2800
        %v2841 = vpack.c.b16 %v2803, %v2802
        %v2842 = vpack.c.b16 %v2805, %v2804
        %v2843 = vpack.c.b16 %v2807, %v2806
        %v2844 = vpack.c.b16 %v2809, %v2808
        %v2845 = vpack.c.b16 %v2811, %v2810
        %v2846 = vpack.c.b16 %v2813, %v2812
        %v2847 = vpack.c.b16 %v2815, %v2814
        %2880 = vmatprep.subr.bf16.mxu0 0
        %2881 = vmatpush1.bf16.msra.mxu0 %v2823
        %2882 = vmatprep.subr.bf16.mxu0 0
        %2883 = vmatpush1.bf16.msra.mxu0 %v2822
        %2884 = vmatprep.subr.bf16.mxu0 0
        %2885 = vmatpush1.bf16.msra.mxu0 %v2821
        %2886 = vmatprep.subr.bf16.mxu0 0
        %2887 = vmatpush1.bf16.msra.mxu0 %v2820
        %2888 = vmatprep.subr.bf16.mxu0 0
        %2889 = vmatpush1.bf16.msra.mxu0 %v2819
        %2890 = vmatprep.subr.bf16.mxu0 0
        %2891 = vmatpush1.bf16.msra.mxu0 %v2818
        %2892 = vmatprep.subr.bf16.mxu0 0
        %2893 = vmatpush1.bf16.msra.mxu0 %v2817
        %2894 = vmatprep.subr.bf16.mxu0 0
        %2895 = vmatpush1.bf16.msra.mxu0 %v2816
        %2896 = vmatprep.subr.bf16.mxu0 0
        %2897 = vmatpush2.bf16.msra.mxu0 %v2831
        %2898 = vmatprep.subr.bf16.mxu0 0
        %2899 = vmatpush2.bf16.msra.mxu0 %v2830
        %2900 = vmatprep.subr.bf16.mxu0 0
        %2901 = vmatpush2.bf16.msra.mxu0 %v2829
        %2902 = vmatprep.subr.bf16.mxu0 0
        %2903 = vmatpush2.bf16.msra.mxu0 %v2828
        %2904 = vmatprep.subr.bf16.mxu0 0
        %2905 = vmatpush2.bf16.msra.mxu0 %v2827
        %2906 = vmatprep.subr.bf16.mxu0 0
        %2907 = vmatpush2.bf16.msra.mxu0 %v2826
        %2908 = vmatprep.subr.bf16.mxu0 0
        %2909 = vmatpush2.bf16.msra.mxu0 %v2825
        %2910 = vmatprep.subr.bf16.mxu0 0
        %2911 = vmatpush2.bf16.msra.mxu0 %v2824
        %2912 = vmatprep.mubr.bf16.mxu0 %v2621
        %2913 = vmatmul.mubr.bf16.gmra.mxu0 %v2620
        %v2914 = vpop.f32.mrf.mxu0
        %v2915 = vadd.f32 0.0, %v2914
        %v2916 = vpop.f32.mrf.mxu0
        %v2917 = vpop.f32.mrf.mxu0
        %v2918 = vadd.f32 0.0, %v2917
        %v2919 = vpop.f32.mrf.mxu0
        %2920 = vdwg.mxu0
        %2921 = vmatprep.subr.bf16.mxu0 0
        %2922 = vmatpush1.bf16.msra.mxu0 %v2839
        %2923 = vmatprep.subr.bf16.mxu0 0
        %2924 = vmatpush1.bf16.msra.mxu0 %v2838
        %2925 = vmatprep.subr.bf16.mxu0 0
        %2926 = vmatpush1.bf16.msra.mxu0 %v2837
        %2927 = vmatprep.subr.bf16.mxu0 0
        %2928 = vmatpush1.bf16.msra.mxu0 %v2836
        %2929 = vmatprep.subr.bf16.mxu0 0
        %2930 = vmatpush1.bf16.msra.mxu0 %v2835
        %2931 = vmatprep.subr.bf16.mxu0 0
        %2932 = vmatpush1.bf16.msra.mxu0 %v2834
        %2933 = vmatprep.subr.bf16.mxu0 0
        %2934 = vmatpush1.bf16.msra.mxu0 %v2833
        %2935 = vmatprep.subr.bf16.mxu0 0
        %2936 = vmatpush1.bf16.msra.mxu0 %v2832
        %2937 = vmatprep.subr.bf16.mxu0 0
        %2938 = vmatpush2.bf16.msra.mxu0 %v2847
        %2939 = vmatprep.subr.bf16.mxu0 0
        %2940 = vmatpush2.bf16.msra.mxu0 %v2846
        %2941 = vmatprep.subr.bf16.mxu0 0
        %2942 = vmatpush2.bf16.msra.mxu0 %v2845
        %2943 = vmatprep.subr.bf16.mxu0 0
        %2944 = vmatpush2.bf16.msra.mxu0 %v2844
        %2945 = vmatprep.subr.bf16.mxu0 0
        %2946 = vmatpush2.bf16.msra.mxu0 %v2843
        %2947 = vmatprep.subr.bf16.mxu0 0
        %2948 = vmatpush2.bf16.msra.mxu0 %v2842
        %2949 = vmatprep.subr.bf16.mxu0 0
        %2950 = vmatpush2.bf16.msra.mxu0 %v2841
        %2951 = vmatprep.subr.bf16.mxu0 0
        %2952 = vmatpush2.bf16.msra.mxu0 %v2840
        %2953 = vmatprep.mubr.bf16.mxu0 %v2623
        %2954 = vmatmul.mubr.bf16.gmra.mxu0 %v2622
        %v2955 = vpop.f32.mrf.mxu0
        %v2956 = vadd.f32 %v2915, %v2955
        %v2957 = vpop.f32.mrf.mxu0
        %v2958 = vpop.f32.mrf.mxu0
        %v2959 = vadd.f32 %v2918, %v2958
        %v2960 = vpop.f32.mrf.mxu0
        %2961 = vdwg.mxu0
        %v2962 = vadd.f32 %v2205, %v2956
        %v2963 = vadd.f32 %v2206, %v2959
        %v2964 = vld [vmem:[%s791] sm:$0x1]
        %v2966 = vlaneseq
        %v2967 = vshrl.u32 %v2966, 7
        %v2968 = vsub.s32 0, %v2967
        %v2969 = vrot.slane %v2964, %v2968
        %v2971 = vadd.f32 %v2962, %v2969
        %v2972 = vadd.f32 %v2963, %v2969
        %2973 = vst [vmem:[#allocation2] sm:$0xff] %v2971
        %2974 = vst [vmem:[#allocation2 + $0x8] sm:$0xff] %v2972
        %p2975 = scmp.eq.s32.totalorder %s33, 1
        // Predicated region
        $region101: #{_lambda_.1} parent=95 // pred_check
          %p2976 = pneg %p2975
        $region102: #{_lambda_.1} parent=95 // pred_check_branch
          %2978 = sbr.rel (%p2976) target = $region104
        $region103: #{_lambda_.1} parent=95 // pred_region
          %v2979 = vld [vmem:[%s15] sm:$0x1]
          %v2980 = vld [vmem:[%s16] sm:$0x1]
          %v2983 = vrot.slane %v2972, 7
          %vm2984 = vcmask 1041409
          %v2985 = vsel %vm2984, %v2983, %v2971
          %vm2987 = vcmask 1041408
          %v2988 = vsel %vm2987, %v2985, 0.0
          %2989 = vadd.xlane.f32.xlu0 %v2988
          %v2990 = vpop.xlane.xlu0 %2989
          %v2991 = vmul.f32 %v2990, %v1334
          %v2993 = vrot.slane %v2991, 1
          %v2996 = vsub.f32 %v2971, %v2991
          %v2997 = vsub.f32 %v2972, %v2993
          %v2998 = vmul.f32 %v2996, %v2996
          %v2999 = vmul.f32 %v2997, %v2997
          %v3002 = vrot.slane %v2999, 7
          %v3003 = vsel %vm2984, %v3002, %v2998
          %v3005 = vsel %vm2987, %v3003, 0.0
          %3006 = vadd.xlane.f32.xlu0 %v3005
          %v3007 = vpop.xlane.xlu0 %3006
          %v3008 = vmul.f32 %v3007, %v1334
          %v3009 = vadd.f32 %v3008, 1e-06
          %v3010 = vrsqrt.pop %v3009
          %v3012 = vrot.slane %v3010, 1
          %v3015 = vmul.f32 %v2996, %v3010
          %v3016 = vmul.f32 %v2997, %v3012
          %v3018 = vlaneseq
          %v3019 = vshrl.u32 %v3018, 7
          %v3020 = vsub.s32 0, %v3019
          %v3021 = vrot.slane %v2979, %v3020
          %v3023 = vmul.f32 %v3015, %v3021
          %v3024 = vmul.f32 %v3016, %v3021
          %v3026 = vlaneseq
          %v3027 = vshrl.u32 %v3026, 7
          %v3028 = vsub.s32 0, %v3027
          %v3029 = vrot.slane %v2980, %v3028
          %v3031 = vadd.f32 %v3023, %v3029
          %v3032 = vadd.f32 %v3024, %v3029
          %v3035 = vrot.slane %v3032, 7
          %v3036 = vsel %vm2984, %v3035, %v3031
          %3038 = vst [vmem:[#allocation3] sm:$0x3] %v3036
          %v3039 = vsel %vm2987, %v3036, 0.0
          %v3040 = vrot.slane %v3039, 4
          %v3041 = vadd.f32 %v3039, %v3040
          %v3042 = vrot.slane %v3041, 2
          %v3043 = vadd.f32 %v3041, %v3042
          %v3044 = vrot.slane %v3043, 1
          %v3045 = vadd.f32 %v3043, %v3044
          %v3046 = vrcp.pop 2.0
          %v3047 = vmul.f32 %v3045, %v3046
          %v3048 = vlaneseq
          %v3049 = vshrl.u32 %v3048, 7
          %v3050 = vsub.s32 0, %v3049
          %v3051 = vrot.slane %v3047, %v3050
          %v3052 = vsub.f32 %v3031, %v3051
          %v3053 = vsub.f32 %v3032, %v3051
          %v3054 = vmul.f32 %v3052, %v3052
          %v3055 = vmul.f32 %v3053, %v3053
          %v3058 = vrot.slane %v3055, 7
          %v3059 = vsel %vm2984, %v3058, %v3054
          %v3061 = vsel %vm2987, %v3059, 0.0
          %v3062 = vrot.slane %v3061, 4
          %v3063 = vadd.f32 %v3061, %v3062
          %v3064 = vrot.slane %v3063, 2
          %v3065 = vadd.f32 %v3063, %v3064
          %v3066 = vrot.slane %v3065, 1
          %v3067 = vadd.f32 %v3065, %v3066
          %v3068 = vmul.f32 %v3067, %v3046
          %v3069 = vadd.f32 %v3068, 1e-05
          %v3070 = vrsqrt.pop %v3069
          %v3071 = vlaneseq
          %v3072 = vshrl.u32 %v3071, 7
          %v3073 = vsub.s32 0, %v3072
          %v3074 = vrot.slane %v3070, %v3073
          %v3075 = vmul.f32 %v3052, %v3074
          %v3076 = vmul.f32 %v3053, %v3074
          %v3077 = vpack.c.bf16 %v3075, %v3075
          %v3078 = vpack.c.bf16 %v3076, %v3076
          %v3079 = vld [vmem:[%s17] sm:$0xf]
          %v3080 = vld [vmem:[%s17 + $0x4] sm:$0xf]
          %v3081 = vld [vmem:[%s17 + $0x8] sm:$0xf]
          %v3082 = vld [vmem:[%s17 + $0xc] sm:$0xf]
          %v3083 = vld [vmem:[%s17 + $0x10] sm:$0xf]
          %v3084 = vld [vmem:[%s17 + $0x14] sm:$0xf]
          %v3085 = vld [vmem:[%s17 + $0x18] sm:$0xf]
          %v3086 = vld [vmem:[%s17 + $0x1c] sm:$0xf]
          %v3087 = vld [vmem:[%s17 + $0x20] sm:$0xf]
          %v3088 = vld [vmem:[%s17 + $0x24] sm:$0xf]
          %v3089 = vld [vmem:[%s17 + $0x28] sm:$0xf]
          %v3090 = vld [vmem:[%s17 + $0x2c] sm:$0xf]
          %v3091 = vld [vmem:[%s17 + $0x30] sm:$0xf]
          %v3092 = vld [vmem:[%s17 + $0x34] sm:$0xf]
          %v3093 = vld [vmem:[%s17 + $0x38] sm:$0xf]
          %v3094 = vld [vmem:[%s17 + $0x3c] sm:$0xf]
          %v3095 = vld [vmem:[%s18] sm:$0x1]
          %v3097 = vlaneseq
          %v3098 = vshrl.u32 %v3097, 7
          %v3099 = vsub.s32 0, %v3098
          %v3100 = vrot.slane %v3095, %v3099
          %v3104 = vunpack.c.l.b16 %v3077
          %v3105 = vunpack.c.l.b16 %v3078
          %v3106 = vrot.slane %v3105, 7
          %v3107 = vsel %vm2984, %v3106, %v3104
          %v3108 = vpack.c.b16 %v3107, %v3107
          %v3126 = vunpack.c.l.b16 %v3079
          %v3127 = vunpack.c.l.b16 %v3080
          %v3128 = vunpack.c.l.b16 %v3081
          %v3129 = vunpack.c.l.b16 %v3082
          %v3130 = vunpack.c.l.b16 %v3083
          %v3131 = vunpack.c.l.b16 %v3084
          %v3132 = vunpack.c.l.b16 %v3085
          %v3133 = vunpack.c.l.b16 %v3086
          %v3134 = vunpack.c.l.b16 %v3087
          %v3135 = vunpack.c.l.b16 %v3088
          %v3136 = vunpack.c.l.b16 %v3089
          %v3137 = vunpack.c.l.b16 %v3090
          %v3138 = vunpack.c.l.b16 %v3091
          %v3139 = vunpack.c.l.b16 %v3092
          %v3140 = vunpack.c.l.b16 %v3093
          %v3141 = vunpack.c.l.b16 %v3094
          %v3142 = vpack.c.b16 %v3127, %v3126
          %v3143 = vpack.c.b16 %v3129, %v3128
          %v3144 = vpack.c.b16 %v3131, %v3130
          %v3145 = vpack.c.b16 %v3133, %v3132
          %v3146 = vpack.c.b16 %v3135, %v3134
          %v3147 = vpack.c.b16 %v3137, %v3136
          %v3148 = vpack.c.b16 %v3139, %v3138
          %v3149 = vpack.c.b16 %v3141, %v3140
          %3158 = vmatprep.subr.bf16.mxu0 0
          %3159 = vmatpush1.bf16.msra.mxu0 %v3149
          %3160 = vmatprep.subr.bf16.mxu0 0
          %3161 = vmatpush1.bf16.msra.mxu0 %v3148
          %3162 = vmatprep.subr.bf16.mxu0 0
          %3163 = vmatpush1.bf16.msra.mxu0 %v3147
          %3164 = vmatprep.subr.bf16.mxu0 0
          %3165 = vmatpush1.bf16.msra.mxu0 %v3146
          %3166 = vmatprep.subr.bf16.mxu0 0
          %3167 = vmatpush1.bf16.msra.mxu0 %v3145
          %3168 = vmatprep.subr.bf16.mxu0 0
          %3169 = vmatpush1.bf16.msra.mxu0 %v3144
          %3170 = vmatprep.subr.bf16.mxu0 0
          %3171 = vmatpush1.bf16.msra.mxu0 %v3143
          %3172 = vmatprep.subr.bf16.mxu0 0
          %3173 = vmatpush1.bf16.msra.mxu0 %v3142
          %3174 = vmatprep.subr.bf16.mxu0 0
          %3175 = vmatpush2.bf16.msra.mxu0 0
          %3176 = vmatprep.subr.bf16.mxu0 0
          %3177 = vmatpush2.bf16.msra.mxu0 0
          %3178 = vmatprep.subr.bf16.mxu0 0
          %3179 = vmatpush2.bf16.msra.mxu0 0
          %3180 = vmatprep.subr.bf16.mxu0 0
          %3181 = vmatpush2.bf16.msra.mxu0 0
          %3182 = vmatprep.subr.bf16.mxu0 0
          %3183 = vmatpush2.bf16.msra.mxu0 0
          %3184 = vmatprep.subr.bf16.mxu0 0
          %3185 = vmatpush2.bf16.msra.mxu0 0
          %3186 = vmatprep.subr.bf16.mxu0 0
          %3187 = vmatpush2.bf16.msra.mxu0 0
          %3188 = vmatprep.subr.bf16.mxu0 0
          %3189 = vmatpush2.bf16.msra.mxu0 0
          %3190 = vmatprep.mubr.bf16.mxu0 0
          %3191 = vmatmul.mubr.bf16.gmra.mxu0 %v3108
          %v3192 = vpop.f32.mrf.mxu0
          %v3193 = vadd.f32 %v3100, %v3192
          %v3194 = vpop.f32.mrf.mxu0
          %v3195 = vpop.f32.mrf.mxu0
          %v3196 = vpop.f32.mrf.mxu0
          %3197 = vdwg.mxu0
          %3198 = vst [vmem:[%s19] sm:$0x3] %v3193
        $region104: #{_lambda_.1} parent=95 // pred_fallthru
          _
        // Predicated region
        $region105: #{_lambda_.1} parent=95 // pred_check
          %p3199 = pneg %p505
        $region106: #{_lambda_.1} parent=95 // pred_check_branch
          %3201 = sbr.rel (%p3199) target = $region108
        $region107: #{_lambda_.1} parent=95 // pred_region
          _
        $region108: #{_lambda_.1} parent=95 // pred_fallthru
          _
        // Predicated region
        $region109: #{_lambda_.1} parent=95 // pred_check
          %p3202 = pneg %p526
        $region110: #{_lambda_.1} parent=95 // pred_check_branch
          %3204 = sbr.rel (%p3202) target = $region112
        $region111: #{_lambda_.1} parent=95 // pred_region
          %s3206 = ssub.s32 32, 32
          %3207 = vsyncadd [#allocation4], %s3206
          %s3209 = sshll.u32 [#allocation3], 4
          %s3210 = int_to_ptr.vmem [resolvable:$true] %s3209
          %3212 = dma.vmem_to_hbm [thread:$0]  %s3210, 32, %s20, [#allocation4]
        $region112: #{_lambda_.1} parent=95 // pred_fallthru
          _
        // Predicated region
        $region113: #{_lambda_.1} parent=95 // pred_check
          %p3213 = pneg %p505
        $region114: #{_lambda_.1} parent=95 // pred_check_branch
          %3215 = sbr.rel (%p3213) target = $region116
        $region115: #{_lambda_.1} parent=95 // pred_region
          _
        $region116: #{_lambda_.1} parent=95 // pred_fallthru
          _
        // Predicated region
        $region117: #{_lambda_.1} parent=95 // pred_check
          %p3216 = pneg %p526
        $region118: #{_lambda_.1} parent=95 // pred_check_branch
          %3218 = sbr.rel (%p3216) target = $region120
        $region119: #{_lambda_.1} parent=95 // pred_region
          %3219 = dma.done [#allocation4], 32
        $region120: #{_lambda_.1} parent=95 // pred_fallthru
          _
      $region96: #{_lambda_.1} parent=5 // pred_fallthru
        _
      %p3220 = scmp.le.s32.totalorder 2, %s28
      // Predicated region
      $region121: #{_lambda_.1} parent=5 // pred_check
        %p3221 = pneg %p3220
      $region122: #{_lambda_.1} parent=5 // pred_check_branch
        %3223 = sbr.rel (%p3221) target = $region124
      $region123: #{_lambda_.1} parent=5 // pred_region
        %s3224 = ssub.s32 %s28, 2
      $region124: #{_lambda_.1} parent=5 // pred_fallthru
        _
    $region6: #{_lambda_.1} parent=1 // loop_footer
      %s32 = sadd.s32 1, %s28
    $region7: #{_lambda_.1} parent=1 // loop_footer_branch
      %27 = sbr.rel target = $region3
    $region8: #{_lambda_.1} parent=1 // loop_exit
      _
    %3225 = vsyncpa [#allocation4], 1
    %s3226 = scalar_lea.sflag [#allocation4], 1
    %3227 = vsyncpa %s3226, 1

</llo_original>
